<compile_context>
chip_gen: v7x
topology: tpu7x:2x2x1
jax: 0.10.0
libtpu: 0.0.40
codegen_flags: <defaults>
</compile_context>

<pallas_src>
import jax
import jax.numpy as jnp
from jax.experimental import pallas as pl
from jax.experimental.pallas import tpu as pltpu


# ----------------------------------------------------------------------------
# Fused Pallas kernel: entire MASoftQCritic forward for one batch tile.
# ----------------------------------------------------------------------------
def _fused_critic_kernel(
    state_ref, action_ref,
    ws0, bs0, ws1, bs1, ws2, bs2, ws3, bs3,     # stateNet
    wa0, ba0,                                   # actionNet
    wq0s, wq0a, bq0, wq1, bq1, wq2, bq2,        # QNet (layer 0 split row-wise)
    o_ref,
):
    def dense(x, w_ref, b_ref, relu=True):
        w = w_ref[...]
        # bf16 operands, f32 accumulation on the MXU; f32 epilogue on the VPU.
        y = jnp.dot(x.astype(w.dtype), w, preferred_element_type=jnp.float32)
        y = y + b_ref[...]          # (1, Dout) bias broadcasts over batch rows
        if relu:
            y = jnp.maximum(y, 0.0)
        return y                    # float32

    # stateNet: Lin+ReLU x4
    h = state_ref[...]
    h = dense(h, ws0, bs0)
    h = dense(h, ws1, bs1)
    h = dense(h, ws2, bs2)
    h = dense(h, ws3, bs3)                      # (TB, 128)

    # actionNet: Lin+ReLU
    a = dense(action_ref[...], wa0, ba0)        # (TB, 128)

    # ReLU(concat([h, a], axis=1) @ Wq0 + bq0) with Wq0 split row-wise,
    # so the concatenation is never materialized.
    w_s = wq0s[...]
    w_a = wq0a[...]
    y = jnp.dot(h.astype(w_s.dtype), w_s, preferred_element_type=jnp.float32)
    y = y + jnp.dot(a.astype(w_a.dtype), w_a, preferred_element_type=jnp.float32)
    y = jnp.maximum(y + bq0[...], 0.0)          # (TB, 512)

    # QNet layer 1 (+ReLU) and layer 2 (no activation)
    y = dense(y, wq1, bq1)                      # (TB, 512)
    q = dense(y, wq2, bq2, relu=False)          # (TB, 1)
    o_ref[...] = q.astype(o_ref.dtype)


# ----------------------------------------------------------------------------
# Wrapper: grid over batch tiles, weights pinned VMEM-resident.
# ----------------------------------------------------------------------------
def _round_up(x, m):
    return ((x + m - 1) // m) * m


def masoftq_critic_forward(params, state, action, *, block_b=256):
    B, S = state.shape
    A = action.shape[1]

    # Batch tile: multiple of 8 sublanes, capped at block_b (VMEM-safe on v7x).
    tb = min(block_b, _round_up(B, 8))
    bp = _round_up(B, tb)
    if bp != B:
        state = jnp.pad(state, ((0, bp - B), (0, 0)))
        action = jnp.pad(action, ((0, bp - B), (0, 0)))

    (ws0, bs0), (ws1, bs1), (ws2, bs2), (ws3, bs3) = params["state"]
    (wa0, ba0) = params["action"][0]
    (wq0, bq0), (wq1, bq1), (wq2, bq2) = params["q"]
    # Split QNet layer-0 weight: rows 0:128 multiply state features,
    # rows 128:256 multiply action features (matches concat order).
    wq0s, wq0a = wq0[:128, :], wq0[128:, :]

    flat_params = [ws0, bs0, ws1, bs1, ws2, bs2, ws3, bs3,
                   wa0, ba0,
                   wq0s, wq0a, bq0, wq1, bq1, wq2, bq2]

    def resident_spec(arr):
        shp = arr.shape
        # Constant block index across the batch grid axis -> DMA'd once,
        # kept VMEM-resident for every batch tile.
        return pl.BlockSpec(shp, lambda i, _s=shp: tuple(0 for _ in _s))

    tile_map = lambda i: (i, 0)
    grid = (bp // tb,)

    layer_dims = [(S, 1024), (1024, 512), (512, 256), (256, 128),
                  (A, 128), (256, 512), (512, 512), (512, 1)]
    flops = 2 * bp * sum(din * dout for din, dout in layer_dims)
    param_bytes = sum(int(p.size) * p.dtype.itemsize for p in flat_params)
    bytes_accessed = param_bytes + int(state.size) * 4 + int(action.size) * 4 + bp * 4

    out = pl.pallas_call(
        _fused_critic_kernel,
        out_shape=jax.ShapeDtypeStruct((bp, 1), jnp.float32),
        grid=grid,
        in_specs=[pl.BlockSpec((tb, S), tile_map),
                  pl.BlockSpec((tb, A), tile_map)]
                 + [resident_spec(p) for p in flat_params],
        out_specs=pl.BlockSpec((tb, 1), tile_map),
        compiler_params=pltpu.CompilerParams(
            dimension_semantics=("parallel",)),
        cost_estimate=pl.CostEstimate(
            flops=flops, transcendentals=0, bytes_accessed=bytes_accessed),
    )(state, action, *flat_params)
    return out[:B]


# ----------------------------------------------------------------------------
# Parameter construction (deterministic, synthetic). Weights bf16, biases f32.
# ----------------------------------------------------------------------------
def init_params(key, state_dim, action_dim, *, weight_dtype=jnp.bfloat16):
    """Weights stored as (in, out) in bf16; biases as (1, out) in f32."""
    dims = {
        "state": [(state_dim, 1024), (1024, 512), (512, 256), (256, 128)],
        "action": [(action_dim, 128)],
        "q": [(256, 512), (512, 512), (512, 1)],
    }
    params = {}
    for name, layer_dims in dims.items():
        layers = []
        for (din, dout) in layer_dims:
            key, kw, kb = jax.random.split(key, 3)
            scale = 1.0 / jnp.sqrt(jnp.float32(din))
            w = jax.random.uniform(kw, (din, dout), jnp.float32, -scale, scale)
            b = jax.random.uniform(kb, (1, dout), jnp.float32, -scale, scale)
            layers.append((w.astype(weight_dtype), b))
        params[name] = layers
    return params


# ----------------------------------------------------------------------------
# Pure-JAX reference with identical mixed precision (bf16 matmul, f32 accum).
# ----------------------------------------------------------------------------
def reference_forward(params, state, action):
    def dense(x, w, b, relu=True):
        y = jnp.dot(x.astype(w.dtype), w, preferred_element_type=jnp.float32) + b
        return jnp.maximum(y, 0.0) if relu else y

    h = state
    for (w, b) in params["state"]:
        h = dense(h, w, b)
    wa, ba = params["action"][0]
    a = dense(action, wa, ba)
    x = jnp.concatenate([h, a], axis=1)
    wq0, bq0 = params["q"][0]
    x = dense(x, wq0, bq0)
    wq1, bq1 = params["q"][1]
    x = dense(x, wq1, bq1)
    wq2, bq2 = params["q"][2]
    return dense(x, wq2, bq2, relu=False)


# ----------------------------------------------------------------------------
if __name__ == "__main__":
    # Synthetic MARL config: per-agent obs dim 16, 3 agents, 4 actions/agent.
    input_shape = 16
    n_agents = 3
    n_actions = 4
    batch = 8

    state_dim = input_shape * n_agents    # 48
    action_dim = n_actions * n_agents     # 12

    key = jax.random.PRNGKey(0)
    kp, ks, ka = jax.random.split(key, 3)
    params = init_params(kp, state_dim, action_dim)

    state = jax.random.normal(ks, (batch, state_dim), jnp.float32)
    action = jax.random.normal(ka, (batch, action_dim), jnp.float32)

    qval = jax.block_until_ready(masoftq_critic_forward(params, state, action))

    ref = reference_forward(params, state, action)
    assert qval.shape == (batch, 1), qval.shape
    assert jnp.allclose(qval, ref, atol=2e-2, rtol=2e-2), (
        "mismatch vs reference", float(jnp.max(jnp.abs(qval - ref))))

    print("KERNEL_OK")
</pallas_src>

<mosaic_0001>
module attributes {stable_mosaic.version = 11 : i64} {
  func.func @_fused_critic_kernel(%arg0: i32, %arg1: memref<8x48xf32, #tpu.memory_space<vmem>>, %arg2: memref<8x12xf32, #tpu.memory_space<vmem>>, %arg3: memref<48x1024xbf16, #tpu.memory_space<vmem>>, %arg4: memref<1x1024xf32, #tpu.memory_space<vmem>>, %arg5: memref<1024x512xbf16, #tpu.memory_space<vmem>>, %arg6: memref<1x512xf32, #tpu.memory_space<vmem>>, %arg7: memref<512x256xbf16, #tpu.memory_space<vmem>>, %arg8: memref<1x256xf32, #tpu.memory_space<vmem>>, %arg9: memref<256x128xbf16, #tpu.memory_space<vmem>>, %arg10: memref<1x128xf32, #tpu.memory_space<vmem>>, %arg11: memref<12x128xbf16, #tpu.memory_space<vmem>>, %arg12: memref<1x128xf32, #tpu.memory_space<vmem>>, %arg13: memref<128x512xbf16, #tpu.memory_space<vmem>>, %arg14: memref<128x512xbf16, #tpu.memory_space<vmem>>, %arg15: memref<1x512xf32, #tpu.memory_space<vmem>>, %arg16: memref<512x512xbf16, #tpu.memory_space<vmem>>, %arg17: memref<1x512xf32, #tpu.memory_space<vmem>>, %arg18: memref<512x1xbf16, #tpu.memory_space<vmem>>, %arg19: memref<1x1xf32, #tpu.memory_space<vmem>>, %arg20: memref<8x1xf32, #tpu.memory_space<vmem>>) attributes {dimension_semantics = [#tpu.dimension_semantics<parallel>], iteration_bounds = array<i64: 1>, scalar_prefetch = 0 : i64, scratch_operands = 0 : i64, tpu.core_type = #tpu.core_type<tc>, window_params = [{transform_indices = @transform_0, window_bounds = array<i64: 8, 48>}, {transform_indices = @transform_1, window_bounds = array<i64: 8, 12>}, {pipeline_mode = #tpu.pipeline_mode<synchronous>, transform_indices = @transform_2, window_bounds = array<i64: 48, 1024>}, {pipeline_mode = #tpu.pipeline_mode<synchronous>, transform_indices = @transform_3, window_bounds = array<i64: 1, 1024>}, {pipeline_mode = #tpu.pipeline_mode<synchronous>, transform_indices = @transform_4, window_bounds = array<i64: 1024, 512>}, {pipeline_mode = #tpu.pipeline_mode<synchronous>, transform_indices = @transform_5, window_bounds = array<i64: 1, 512>}, {pipeline_mode = #tpu.pipeline_mode<synchronous>, transform_indices = @transform_6, window_bounds = array<i64: 512, 256>}, {pipeline_mode = #tpu.pipeline_mode<synchronous>, transform_indices = @transform_7, window_bounds = array<i64: 1, 256>}, {pipeline_mode = #tpu.pipeline_mode<synchronous>, transform_indices = @transform_8, window_bounds = array<i64: 256, 128>}, {pipeline_mode = #tpu.pipeline_mode<synchronous>, transform_indices = @transform_9, window_bounds = array<i64: 1, 128>}, {pipeline_mode = #tpu.pipeline_mode<synchronous>, transform_indices = @transform_10, window_bounds = array<i64: 12, 128>}, {pipeline_mode = #tpu.pipeline_mode<synchronous>, transform_indices = @transform_11, window_bounds = array<i64: 1, 128>}, {pipeline_mode = #tpu.pipeline_mode<synchronous>, transform_indices = @transform_12, window_bounds = array<i64: 128, 512>}, {pipeline_mode = #tpu.pipeline_mode<synchronous>, transform_indices = @transform_13, window_bounds = array<i64: 128, 512>}, {pipeline_mode = #tpu.pipeline_mode<synchronous>, transform_indices = @transform_14, window_bounds = array<i64: 1, 512>}, {pipeline_mode = #tpu.pipeline_mode<synchronous>, transform_indices = @transform_15, window_bounds = array<i64: 512, 512>}, {pipeline_mode = #tpu.pipeline_mode<synchronous>, transform_indices = @transform_16, window_bounds = array<i64: 1, 512>}, {pipeline_mode = #tpu.pipeline_mode<synchronous>, transform_indices = @transform_17, window_bounds = array<i64: 512, 1>}, {pipeline_mode = #tpu.pipeline_mode<synchronous>, transform_indices = @transform_18, window_bounds = array<i64: 1, 1>}, {transform_indices = @transform_19, window_bounds = array<i64: 8, 1>}]} {
    %c0 = arith.constant 0 : index
    %c0_0 = arith.constant 0 : index
    %0 = vector.load %arg1[%c0, %c0_0] : memref<8x48xf32, #tpu.memory_space<vmem>>, vector<8x48xf32>
    %c0_1 = arith.constant 0 : index
    %c0_2 = arith.constant 0 : index
    %1 = vector.load %arg3[%c0_1, %c0_2] : memref<48x1024xbf16, #tpu.memory_space<vmem>>, vector<48x1024xbf16>
    %2 = arith.truncf %0 : vector<8x48xf32> to vector<8x48xbf16>
    %cst = arith.constant dense<0.000000e+00> : vector<8x1024xf32>
    %3 = tpu.matmul %2, %1, %cst {dimension_numbers = #tpu.dot_dimension_numbers<[1], [0], [0], [1], [0, 0, 1, 1], [], []>} : vector<8x48xbf16>, vector<48x1024xbf16>, vector<8x1024xf32> -> vector<8x1024xf32>
    %c0_3 = arith.constant 0 : index
    %c0_4 = arith.constant 0 : index
    %4 = vector.load %arg4[%c0_3, %c0_4] : memref<1x1024xf32, #tpu.memory_space<vmem>>, vector<1x1024xf32>
    %5 = vector.broadcast %4 : vector<1x1024xf32> to vector<8x1024xf32>
    %6 = arith.addf %3, %5 : vector<8x1024xf32>
    %cst_5 = arith.constant 0.000000e+00 : f32
    %7 = vector.broadcast %cst_5 : f32 to vector<8x1024xf32>
    %8 = arith.maximumf %6, %7 : vector<8x1024xf32>
    %c0_6 = arith.constant 0 : index
    %c0_7 = arith.constant 0 : index
    %9 = vector.load %arg5[%c0_6, %c0_7] : memref<1024x512xbf16, #tpu.memory_space<vmem>>, vector<1024x512xbf16>
    %10 = arith.truncf %8 : vector<8x1024xf32> to vector<8x1024xbf16>
    %cst_8 = arith.constant dense<0.000000e+00> : vector<8x512xf32>
    %11 = tpu.matmul %10, %9, %cst_8 {dimension_numbers = #tpu.dot_dimension_numbers<[1], [0], [0], [1], [0, 0, 1, 1], [], []>} : vector<8x1024xbf16>, vector<1024x512xbf16>, vector<8x512xf32> -> vector<8x512xf32>
    %c0_9 = arith.constant 0 : index
    %c0_10 = arith.constant 0 : index
    %12 = vector.load %arg6[%c0_9, %c0_10] : memref<1x512xf32, #tpu.memory_space<vmem>>, vector<1x512xf32>
    %13 = vector.broadcast %12 : vector<1x512xf32> to vector<8x512xf32>
    %14 = arith.addf %11, %13 : vector<8x512xf32>
    %cst_11 = arith.constant 0.000000e+00 : f32
    %15 = vector.broadcast %cst_11 : f32 to vector<8x512xf32>
    %16 = arith.maximumf %14, %15 : vector<8x512xf32>
    %c0_12 = arith.constant 0 : index
    %c0_13 = arith.constant 0 : index
    %17 = vector.load %arg7[%c0_12, %c0_13] : memref<512x256xbf16, #tpu.memory_space<vmem>>, vector<512x256xbf16>
    %18 = arith.truncf %16 : vector<8x512xf32> to vector<8x512xbf16>
    %cst_14 = arith.constant dense<0.000000e+00> : vector<8x256xf32>
    %19 = tpu.matmul %18, %17, %cst_14 {dimension_numbers = #tpu.dot_dimension_numbers<[1], [0], [0], [1], [0, 0, 1, 1], [], []>} : vector<8x512xbf16>, vector<512x256xbf16>, vector<8x256xf32> -> vector<8x256xf32>
    %c0_15 = arith.constant 0 : index
    %c0_16 = arith.constant 0 : index
    %20 = vector.load %arg8[%c0_15, %c0_16] : memref<1x256xf32, #tpu.memory_space<vmem>>, vector<1x256xf32>
    %21 = vector.broadcast %20 : vector<1x256xf32> to vector<8x256xf32>
    %22 = arith.addf %19, %21 : vector<8x256xf32>
    %cst_17 = arith.constant 0.000000e+00 : f32
    %23 = vector.broadcast %cst_17 : f32 to vector<8x256xf32>
    %24 = arith.maximumf %22, %23 : vector<8x256xf32>
    %c0_18 = arith.constant 0 : index
    %c0_19 = arith.constant 0 : index
    %25 = vector.load %arg9[%c0_18, %c0_19] : memref<256x128xbf16, #tpu.memory_space<vmem>>, vector<256x128xbf16>
    %26 = arith.truncf %24 : vector<8x256xf32> to vector<8x256xbf16>
    %cst_20 = arith.constant dense<0.000000e+00> : vector<8x128xf32>
    %27 = tpu.matmul %26, %25, %cst_20 {dimension_numbers = #tpu.dot_dimension_numbers<[1], [0], [0], [1], [0, 0, 1, 1], [], []>} : vector<8x256xbf16>, vector<256x128xbf16>, vector<8x128xf32> -> vector<8x128xf32>
    %c0_21 = arith.constant 0 : index
    %c0_22 = arith.constant 0 : index
    %28 = vector.load %arg10[%c0_21, %c0_22] : memref<1x128xf32, #tpu.memory_space<vmem>>, vector<1x128xf32>
    %29 = vector.broadcast %28 : vector<1x128xf32> to vector<8x128xf32>
    %30 = arith.addf %27, %29 : vector<8x128xf32>
    %cst_23 = arith.constant 0.000000e+00 : f32
    %31 = vector.broadcast %cst_23 : f32 to vector<8x128xf32>
    %32 = arith.maximumf %30, %31 : vector<8x128xf32>
    %c0_24 = arith.constant 0 : index
    %c0_25 = arith.constant 0 : index
    %33 = vector.load %arg2[%c0_24, %c0_25] : memref<8x12xf32, #tpu.memory_space<vmem>>, vector<8x12xf32>
    %c0_26 = arith.constant 0 : index
    %c0_27 = arith.constant 0 : index
    %34 = vector.load %arg11[%c0_26, %c0_27] : memref<12x128xbf16, #tpu.memory_space<vmem>>, vector<12x128xbf16>
    %35 = arith.truncf %33 : vector<8x12xf32> to vector<8x12xbf16>
    %cst_28 = arith.constant dense<0.000000e+00> : vector<8x128xf32>
    %36 = tpu.matmul %35, %34, %cst_28 {dimension_numbers = #tpu.dot_dimension_numbers<[1], [0], [0], [1], [0, 0, 1, 1], [], []>} : vector<8x12xbf16>, vector<12x128xbf16>, vector<8x128xf32> -> vector<8x128xf32>
    %c0_29 = arith.constant 0 : index
    %c0_30 = arith.constant 0 : index
    %37 = vector.load %arg12[%c0_29, %c0_30] : memref<1x128xf32, #tpu.memory_space<vmem>>, vector<1x128xf32>
    %38 = vector.broadcast %37 : vector<1x128xf32> to vector<8x128xf32>
    %39 = arith.addf %36, %38 : vector<8x128xf32>
    %cst_31 = arith.constant 0.000000e+00 : f32
    %40 = vector.broadcast %cst_31 : f32 to vector<8x128xf32>
    %41 = arith.maximumf %39, %40 : vector<8x128xf32>
    %c0_32 = arith.constant 0 : index
    %c0_33 = arith.constant 0 : index
    %42 = vector.load %arg13[%c0_32, %c0_33] : memref<128x512xbf16, #tpu.memory_space<vmem>>, vector<128x512xbf16>
    %c0_34 = arith.constant 0 : index
    %c0_35 = arith.constant 0 : index
    %43 = vector.load %arg14[%c0_34, %c0_35] : memref<128x512xbf16, #tpu.memory_space<vmem>>, vector<128x512xbf16>
    %44 = arith.truncf %32 : vector<8x128xf32> to vector<8x128xbf16>
    %cst_36 = arith.constant dense<0.000000e+00> : vector<8x512xf32>
    %45 = tpu.matmul %44, %42, %cst_36 {dimension_numbers = #tpu.dot_dimension_numbers<[1], [0], [0], [1], [0, 0, 1, 1], [], []>} : vector<8x128xbf16>, vector<128x512xbf16>, vector<8x512xf32> -> vector<8x512xf32>
    %46 = arith.truncf %41 : vector<8x128xf32> to vector<8x128xbf16>
    %cst_37 = arith.constant dense<0.000000e+00> : vector<8x512xf32>
    %47 = tpu.matmul %46, %43, %cst_37 {dimension_numbers = #tpu.dot_dimension_numbers<[1], [0], [0], [1], [0, 0, 1, 1], [], []>} : vector<8x128xbf16>, vector<128x512xbf16>, vector<8x512xf32> -> vector<8x512xf32>
    %48 = arith.addf %45, %47 : vector<8x512xf32>
    %c0_38 = arith.constant 0 : index
    %c0_39 = arith.constant 0 : index
    %49 = vector.load %arg15[%c0_38, %c0_39] : memref<1x512xf32, #tpu.memory_space<vmem>>, vector<1x512xf32>
    %50 = vector.broadcast %49 : vector<1x512xf32> to vector<8x512xf32>
    %51 = arith.addf %48, %50 : vector<8x512xf32>
    %cst_40 = arith.constant 0.000000e+00 : f32
    %52 = vector.broadcast %cst_40 : f32 to vector<8x512xf32>
    %53 = arith.maximumf %51, %52 : vector<8x512xf32>
    %c0_41 = arith.constant 0 : index
    %c0_42 = arith.constant 0 : index
    %54 = vector.load %arg16[%c0_41, %c0_42] : memref<512x512xbf16, #tpu.memory_space<vmem>>, vector<512x512xbf16>
    %55 = arith.truncf %53 : vector<8x512xf32> to vector<8x512xbf16>
    %cst_43 = arith.constant dense<0.000000e+00> : vector<8x512xf32>
    %56 = tpu.matmul %55, %54, %cst_43 {dimension_numbers = #tpu.dot_dimension_numbers<[1], [0], [0], [1], [0, 0, 1, 1], [], []>} : vector<8x512xbf16>, vector<512x512xbf16>, vector<8x512xf32> -> vector<8x512xf32>
    %c0_44 = arith.constant 0 : index
    %c0_45 = arith.constant 0 : index
    %57 = vector.load %arg17[%c0_44, %c0_45] : memref<1x512xf32, #tpu.memory_space<vmem>>, vector<1x512xf32>
    %58 = vector.broadcast %57 : vector<1x512xf32> to vector<8x512xf32>
    %59 = arith.addf %56, %58 : vector<8x512xf32>
    %cst_46 = arith.constant 0.000000e+00 : f32
    %60 = vector.broadcast %cst_46 : f32 to vector<8x512xf32>
    %61 = arith.maximumf %59, %60 : vector<8x512xf32>
    %c0_47 = arith.constant 0 : index
    %c0_48 = arith.constant 0 : index
    %62 = vector.load %arg18[%c0_47, %c0_48] : memref<512x1xbf16, #tpu.memory_space<vmem>>, vector<512x1xbf16>
    %63 = arith.truncf %61 : vector<8x512xf32> to vector<8x512xbf16>
    %cst_49 = arith.constant dense<0.000000e+00> : vector<8x1xf32>
    %64 = tpu.matmul %63, %62, %cst_49 {dimension_numbers = #tpu.dot_dimension_numbers<[1], [0], [0], [1], [0, 0, 1, 1], [], []>} : vector<8x512xbf16>, vector<512x1xbf16>, vector<8x1xf32> -> vector<8x1xf32>
    %c0_50 = arith.constant 0 : index
    %c0_51 = arith.constant 0 : index
    %65 = vector.load %arg19[%c0_50, %c0_51] : memref<1x1xf32, #tpu.memory_space<vmem>>, vector<1x1xf32>
    %66 = vector.broadcast %65 : vector<1x1xf32> to vector<8x1xf32>
    %67 = arith.addf %64, %66 : vector<8x1xf32>
    %c0_52 = arith.constant 0 : index
    %c0_53 = arith.constant 0 : index
    %68 = vector.load %arg20[%c0_52, %c0_53] : memref<8x1xf32, #tpu.memory_space<vmem>>, vector<8x1xf32>
    tpu.vector_store %arg20[%c0_52, %c0_53], %67 {strides = array<i32>} : memref<8x1xf32, #tpu.memory_space<vmem>>, vector<8x1xf32>,
    return
  }
  func.func @transform_0(%arg0: i32) -> (i32, i32) {
    %c0_i32 = arith.constant 0 : i32
    %c0_i32_0 = arith.constant 0 : i32
    return %arg0, %c0_i32 : i32, i32
  }
  func.func @transform_1(%arg0: i32) -> (i32, i32) {
    %c0_i32 = arith.constant 0 : i32
    %c0_i32_0 = arith.constant 0 : i32
    return %arg0, %c0_i32 : i32, i32
  }
  func.func @transform_2(%arg0: i32) -> (i32, i32) {
    %c0_i32 = arith.constant 0 : i32
    %c0_i32_0 = arith.constant 0 : i32
    %c0_i32_1 = arith.constant 0 : i32
    return %c0_i32, %c0_i32_0 : i32, i32
  }
  func.func @transform_3(%arg0: i32) -> (i32, i32) {
    %c0_i32 = arith.constant 0 : i32
    %c0_i32_0 = arith.constant 0 : i32
    %c0_i32_1 = arith.constant 0 : i32
    return %c0_i32, %c0_i32_0 : i32, i32
  }
  func.func @transform_4(%arg0: i32) -> (i32, i32) {
    %c0_i32 = arith.constant 0 : i32
    %c0_i32_0 = arith.constant 0 : i32
    %c0_i32_1 = arith.constant 0 : i32
    return %c0_i32, %c0_i32_0 : i32, i32
  }
  func.func @transform_5(%arg0: i32) -> (i32, i32) {
    %c0_i32 = arith.constant 0 : i32
    %c0_i32_0 = arith.constant 0 : i32
    %c0_i32_1 = arith.constant 0 : i32
    return %c0_i32, %c0_i32_0 : i32, i32
  }
  func.func @transform_6(%arg0: i32) -> (i32, i32) {
    %c0_i32 = arith.constant 0 : i32
    %c0_i32_0 = arith.constant 0 : i32
    %c0_i32_1 = arith.constant 0 : i32
    return %c0_i32, %c0_i32_0 : i32, i32
  }
  func.func @transform_7(%arg0: i32) -> (i32, i32) {
    %c0_i32 = arith.constant 0 : i32
    %c0_i32_0 = arith.constant 0 : i32
    %c0_i32_1 = arith.constant 0 : i32
    return %c0_i32, %c0_i32_0 : i32, i32
  }
  func.func @transform_8(%arg0: i32) -> (i32, i32) {
    %c0_i32 = arith.constant 0 : i32
    %c0_i32_0 = arith.constant 0 : i32
    %c0_i32_1 = arith.constant 0 : i32
    return %c0_i32, %c0_i32_0 : i32, i32
  }
  func.func @transform_9(%arg0: i32) -> (i32, i32) {
    %c0_i32 = arith.constant 0 : i32
    %c0_i32_0 = arith.constant 0 : i32
    %c0_i32_1 = arith.constant 0 : i32
    return %c0_i32, %c0_i32_0 : i32, i32
  }
  func.func @transform_10(%arg0: i32) -> (i32, i32) {
    %c0_i32 = arith.constant 0 : i32
    %c0_i32_0 = arith.constant 0 : i32
    %c0_i32_1 = arith.constant 0 : i32
    return %c0_i32, %c0_i32_0 : i32, i32
  }
  func.func @transform_11(%arg0: i32) -> (i32, i32) {
    %c0_i32 = arith.constant 0 : i32
    %c0_i32_0 = arith.constant 0 : i32
    %c0_i32_1 = arith.constant 0 : i32
    return %c0_i32, %c0_i32_0 : i32, i32
  }
  func.func @transform_12(%arg0: i32) -> (i32, i32) {
    %c0_i32 = arith.constant 0 : i32
    %c0_i32_0 = arith.constant 0 : i32
    %c0_i32_1 = arith.constant 0 : i32
    return %c0_i32, %c0_i32_0 : i32, i32
  }
  func.func @transform_13(%arg0: i32) -> (i32, i32) {
    %c0_i32 = arith.constant 0 : i32
    %c0_i32_0 = arith.constant 0 : i32
    %c0_i32_1 = arith.constant 0 : i32
    return %c0_i32, %c0_i32_0 : i32, i32
  }
  func.func @transform_14(%arg0: i32) -> (i32, i32) {
    %c0_i32 = arith.constant 0 : i32
    %c0_i32_0 = arith.constant 0 : i32
    %c0_i32_1 = arith.constant 0 : i32
    return %c0_i32, %c0_i32_0 : i32, i32
  }
  func.func @transform_15(%arg0: i32) -> (i32, i32) {
    %c0_i32 = arith.constant 0 : i32
    %c0_i32_0 = arith.constant 0 : i32
    %c0_i32_1 = arith.constant 0 : i32
    return %c0_i32, %c0_i32_0 : i32, i32
  }
  func.func @transform_16(%arg0: i32) -> (i32, i32) {
    %c0_i32 = arith.constant 0 : i32
    %c0_i32_0 = arith.constant 0 : i32
    %c0_i32_1 = arith.constant 0 : i32
    return %c0_i32, %c0_i32_0 : i32, i32
  }
  func.func @transform_17(%arg0: i32) -> (i32, i32) {
    %c0_i32 = arith.constant 0 : i32
    %c0_i32_0 = arith.constant 0 : i32
    %c0_i32_1 = arith.constant 0 : i32
    return %c0_i32, %c0_i32_0 : i32, i32
  }
  func.func @transform_18(%arg0: i32) -> (i32, i32) {
    %c0_i32 = arith.constant 0 : i32
    %c0_i32_0 = arith.constant 0 : i32
    %c0_i32_1 = arith.constant 0 : i32
    return %c0_i32, %c0_i32_0 : i32, i32
  }
  func.func @transform_19(%arg0: i32) -> (i32, i32) {
    %c0_i32 = arith.constant 0 : i32
    %c0_i32_0 = arith.constant 0 : i32
    return %arg0, %c0_i32 : i32, i32
  }
}

</mosaic_0001>

<llo_original>
// kernel: tpu_custom_call.1
$region0: #{tpu_custom_call.1}
  #allocation0 [shape = 'u32[]', space=smem, size = 0x4, offset = 0x4, fixed_abs, tag = 'smem constant byte address 0x4 - core index']
  #allocation1 [shape = 'u32[144,128]{1,0:T(1,128)}', space=vmem, size = 0x12000, scoped, tag = 'internal scratch']
  #allocation2 [shape = 'f32[1,1]{1,0:T(1,128)S(1)}', space=vmem, size = 0x200, scoped, tag = 'scoped memory for tpu_custom_call.1']
  %s0 = inlined_call_operand.vmem [shape: f32[8,48], index: 0, kind: input, shape index: {}]
  %s1 = inlined_call_operand.vmem [shape: f32[8,12], index: 1, kind: input, shape index: {}]
  %s2 = inlined_call_operand.hbm [shape: bf16[48,1024], index: 2, kind: input, shape index: {}]
  %s3 = inlined_call_operand.vmem [shape: f32[1,1024], index: 3, kind: input, shape index: {}]
  %s4 = inlined_call_operand.hbm [shape: bf16[1024,512], index: 4, kind: input, shape index: {}]
  %s5 = inlined_call_operand.vmem [shape: f32[1,512], index: 5, kind: input, shape index: {}]
  %s6 = inlined_call_operand.hbm [shape: bf16[512,256], index: 6, kind: input, shape index: {}]
  %s7 = inlined_call_operand.vmem [shape: f32[1,256], index: 7, kind: input, shape index: {}]
  %s8 = inlined_call_operand.hbm [shape: bf16[256,128], index: 8, kind: input, shape index: {}]
  %s9 = inlined_call_operand.vmem [shape: f32[1,128], index: 9, kind: input, shape index: {}]
  %s10 = inlined_call_operand.vmem [shape: bf16[12,128], index: 10, kind: input, shape index: {}]
  %s11 = inlined_call_operand.vmem [shape: f32[1,128], index: 11, kind: input, shape index: {}]
  %s12 = inlined_call_operand.vmem [shape: bf16[128,512], index: 12, kind: input, shape index: {}]
  %s13 = inlined_call_operand.hbm [shape: bf16[128,512], index: 13, kind: input, shape index: {}]
  %s14 = inlined_call_operand.vmem [shape: f32[1,512], index: 14, kind: input, shape index: {}]
  %s15 = inlined_call_operand.hbm [shape: bf16[512,512], index: 15, kind: input, shape index: {}]
  %s16 = inlined_call_operand.vmem [shape: f32[1,512], index: 16, kind: input, shape index: {}]
  %s17 = inlined_call_operand.vmem [shape: bf16[512,1], index: 17, kind: input, shape index: {}]
  %s18 = inlined_call_operand.<no memory space> [shape: f32[1,1], index: 18, kind: input, shape index: {}]
  %s19 = inlined_call_operand.vmem [shape: f32[8,1], index: 19, kind: output, shape index: {}]
  %s20 = sld [smem:[#allocation0]]
  $region110: #{tpu_custom_call.1} parent=0
    _
  %s22 = ssub.s32 1, %s20
  %s23 = scalar_select 0, %s22, %s20
  %v24 = vstv %s18
  %25 = vst [vmem:[#allocation2] sm:$0x1] %v24
  $region1: #{tpu_custom_call.1} parent=0
    #allocation3 [shape = 'u8[98304]{0}', space=vmem, size = 0x18000, scoped, tag = 'input window, operand 2, single buffered']
    #allocation4 [shape = 's32[1]{0}', space=sflag, size = 0x4, scoped, tag = 'scoped memory for tpu_custom_call.1']
    #allocation5 [shape = 'u8[1048576]{0}', space=vmem, size = 0x100000, scoped, tag = 'input window, operand 4, single buffered']
    #allocation6 [shape = 's32[1]{0}', space=sflag, size = 0x4, scoped, tag = 'scoped memory for tpu_custom_call.1']
    #allocation7 [shape = 'u8[262144]{0}', space=vmem, size = 0x40000, scoped, tag = 'input window, operand 6, single buffered']
    #allocation8 [shape = 'u8[65536]{0}', space=vmem, size = 0x10000, scoped, tag = 'input window, operand 8, single buffered']
    #allocation9 [shape = 's32[1]{0}', space=sflag, size = 0x4, scoped, tag = 'scoped memory for tpu_custom_call.1']
    #allocation10 [shape = 'u8[131072]{0}', space=vmem, size = 0x20000, scoped, tag = 'input window, operand 13, single buffered']
    #allocation11 [shape = 'u8[524288]{0}', space=vmem, size = 0x80000, scoped, tag = 'input window, operand 15, single buffered']
    #allocation12 [shape = 's32[1]{0}', space=sflag, size = 0x4, scoped, tag = 'scoped memory for tpu_custom_call.1']
    %26 = vsyncpa [#allocation4], 0
    %27 = vsyncpa [#allocation6], 0
    %28 = vsyncpa [#allocation9], 0
    %29 = vsyncpa [#allocation12], 0
    // Predicated region
    $region2: #{tpu_custom_call.1} parent=1 // pred_check
      _
    $region3: #{tpu_custom_call.1} parent=1 // pred_check_branch
      %31 = sbr.rel (0) target = $region5
    $region4: #{tpu_custom_call.1} parent=1 // pred_region
      _
    $region5: #{tpu_custom_call.1} parent=1 // pred_fallthru
      _
    // Predicated region
    $region6: #{tpu_custom_call.1} parent=1 // pred_check
      _
    $region7: #{tpu_custom_call.1} parent=1 // pred_check_branch
      %33 = sbr.rel (0) target = $region9
    $region8: #{tpu_custom_call.1} parent=1 // pred_region
      _
    $region9: #{tpu_custom_call.1} parent=1 // pred_fallthru
      _
    // Predicated region
    $region10: #{tpu_custom_call.1} parent=1 // pred_check
      _
    $region11: #{tpu_custom_call.1} parent=1 // pred_check_branch
      %35 = sbr.rel (0) target = $region13
    $region12: #{tpu_custom_call.1} parent=1 // pred_region
      %s37 = ssub.s32 3072, 3072
      %38 = vsyncadd [#allocation4], %s37
      %s39 = sshll.u32 [#allocation3], 4
      %s40 = int_to_ptr.vmem [resolvable:$true] %s39
      %45 = dma.hbm_to_vmem [thread:$0]  %s2, 3072, %s40, [#allocation4], 512, 512, 32
    $region13: #{tpu_custom_call.1} parent=1 // pred_fallthru
      _
    // Predicated region
    $region14: #{tpu_custom_call.1} parent=1 // pred_check
      _
    $region15: #{tpu_custom_call.1} parent=1 // pred_check_branch
      %47 = sbr.rel (0) target = $region17
    $region16: #{tpu_custom_call.1} parent=1 // pred_region
      _
    $region17: #{tpu_custom_call.1} parent=1 // pred_fallthru
      _
    // Predicated region
    $region18: #{tpu_custom_call.1} parent=1 // pred_check
      _
    $region19: #{tpu_custom_call.1} parent=1 // pred_check_branch
      %49 = sbr.rel (0) target = $region21
    $region20: #{tpu_custom_call.1} parent=1 // pred_region
      %s51 = ssub.s32 32768, 32768
      %52 = vsyncadd [#allocation6], %s51
      %s53 = sshll.u32 [#allocation5], 4
      %s54 = int_to_ptr.vmem [resolvable:$true] %s53
      %59 = dma.hbm_to_vmem [thread:$0]  %s4, 32768, %s54, [#allocation6], 256, 256, 16
    $region21: #{tpu_custom_call.1} parent=1 // pred_fallthru
      _
    // Predicated region
    $region22: #{tpu_custom_call.1} parent=1 // pred_check
      _
    $region23: #{tpu_custom_call.1} parent=1 // pred_check_branch
      %61 = sbr.rel (0) target = $region25
    $region24: #{tpu_custom_call.1} parent=1 // pred_region
      _
    $region25: #{tpu_custom_call.1} parent=1 // pred_fallthru
      _
    // Predicated region
    $region26: #{tpu_custom_call.1} parent=1 // pred_check
      _
    $region27: #{tpu_custom_call.1} parent=1 // pred_check_branch
      %63 = sbr.rel (0) target = $region29
    $region28: #{tpu_custom_call.1} parent=1 // pred_region
      %s65 = ssub.s32 8192, 8192
      %66 = vsyncadd [#allocation6], %s65
      %s67 = sshll.u32 [#allocation7], 4
      %s68 = int_to_ptr.vmem [resolvable:$true] %s67
      %73 = dma.hbm_to_vmem [thread:$0]  %s6, 8192, %s68, [#allocation6], 128, 128, 8
    $region29: #{tpu_custom_call.1} parent=1 // pred_fallthru
      _
    // Predicated region
    $region30: #{tpu_custom_call.1} parent=1 // pred_check
      _
    $region31: #{tpu_custom_call.1} parent=1 // pred_check_branch
      %75 = sbr.rel (0) target = $region33
    $region32: #{tpu_custom_call.1} parent=1 // pred_region
      _
    $region33: #{tpu_custom_call.1} parent=1 // pred_fallthru
      _
    // Predicated region
    $region34: #{tpu_custom_call.1} parent=1 // pred_check
      _
    $region35: #{tpu_custom_call.1} parent=1 // pred_check_branch
      %77 = sbr.rel (0) target = $region37
    $region36: #{tpu_custom_call.1} parent=1 // pred_region
      %s79 = ssub.s32 2048, 2048
      %80 = vsyncadd [#allocation9], %s79
      %s81 = sshll.u32 [#allocation8], 4
      %s82 = int_to_ptr.vmem [resolvable:$true] %s81
      %87 = dma.hbm_to_vmem [thread:$0]  %s8, 2048, %s82, [#allocation9], 64, 64, 4
    $region37: #{tpu_custom_call.1} parent=1 // pred_fallthru
      _
    // Predicated region
    $region38: #{tpu_custom_call.1} parent=1 // pred_check
      _
    $region39: #{tpu_custom_call.1} parent=1 // pred_check_branch
      %89 = sbr.rel (0) target = $region41
    $region40: #{tpu_custom_call.1} parent=1 // pred_region
      _
    $region41: #{tpu_custom_call.1} parent=1 // pred_fallthru
      _
    // Predicated region
    $region42: #{tpu_custom_call.1} parent=1 // pred_check
      _
    $region43: #{tpu_custom_call.1} parent=1 // pred_check_branch
      %91 = sbr.rel (0) target = $region45
    $region44: #{tpu_custom_call.1} parent=1 // pred_region
      _
    $region45: #{tpu_custom_call.1} parent=1 // pred_fallthru
      _
    // Predicated region
    $region46: #{tpu_custom_call.1} parent=1 // pred_check
      _
    $region47: #{tpu_custom_call.1} parent=1 // pred_check_branch
      %93 = sbr.rel (0) target = $region49
    $region48: #{tpu_custom_call.1} parent=1 // pred_region
      _
    $region49: #{tpu_custom_call.1} parent=1 // pred_fallthru
      _
    // Predicated region
    $region50: #{tpu_custom_call.1} parent=1 // pred_check
      _
    $region51: #{tpu_custom_call.1} parent=1 // pred_check_branch
      %95 = sbr.rel (0) target = $region53
    $region52: #{tpu_custom_call.1} parent=1 // pred_region
      _
    $region53: #{tpu_custom_call.1} parent=1 // pred_fallthru
      _
    // Predicated region
    $region54: #{tpu_custom_call.1} parent=1 // pred_check
      _
    $region55: #{tpu_custom_call.1} parent=1 // pred_check_branch
      %97 = sbr.rel (0) target = $region57
    $region56: #{tpu_custom_call.1} parent=1 // pred_region
      %s99 = ssub.s32 4096, 4096
      %100 = vsyncadd [#allocation9], %s99
      %s101 = sshll.u32 [#allocation10], 4
      %s102 = int_to_ptr.vmem [resolvable:$true] %s101
      %107 = dma.hbm_to_vmem [thread:$0]  %s13, 4096, %s102, [#allocation9], 256, 256, 16
    $region57: #{tpu_custom_call.1} parent=1 // pred_fallthru
      _
    // Predicated region
    $region58: #{tpu_custom_call.1} parent=1 // pred_check
      _
    $region59: #{tpu_custom_call.1} parent=1 // pred_check_branch
      %109 = sbr.rel (0) target = $region61
    $region60: #{tpu_custom_call.1} parent=1 // pred_region
      _
    $region61: #{tpu_custom_call.1} parent=1 // pred_fallthru
      _
    // Predicated region
    $region62: #{tpu_custom_call.1} parent=1 // pred_check
      _
    $region63: #{tpu_custom_call.1} parent=1 // pred_check_branch
      %111 = sbr.rel (0) target = $region65
    $region64: #{tpu_custom_call.1} parent=1 // pred_region
      %s113 = ssub.s32 16384, 16384
      %114 = vsyncadd [#allocation12], %s113
      %s115 = sshll.u32 [#allocation11], 4
      %s116 = int_to_ptr.vmem [resolvable:$true] %s115
      %121 = dma.hbm_to_vmem [thread:$0]  %s15, 16384, %s116, [#allocation12], 256, 256, 16
    $region65: #{tpu_custom_call.1} parent=1 // pred_fallthru
      _
    // Predicated region
    $region66: #{tpu_custom_call.1} parent=1 // pred_check
      _
    $region67: #{tpu_custom_call.1} parent=1 // pred_check_branch
      %123 = sbr.rel (0) target = $region69
    $region68: #{tpu_custom_call.1} parent=1 // pred_region
      _
    $region69: #{tpu_custom_call.1} parent=1 // pred_fallthru
      _
    // Predicated region
    $region70: #{tpu_custom_call.1} parent=1 // pred_check
      _
    $region71: #{tpu_custom_call.1} parent=1 // pred_check_branch
      %125 = sbr.rel (0) target = $region73
    $region72: #{tpu_custom_call.1} parent=1 // pred_region
      _
    $region73: #{tpu_custom_call.1} parent=1 // pred_fallthru
      _
    // Predicated region
    $region74: #{tpu_custom_call.1} parent=1 // pred_check
      _
    $region75: #{tpu_custom_call.1} parent=1 // pred_check_branch
      %127 = sbr.rel (0) target = $region77
    $region76: #{tpu_custom_call.1} parent=1 // pred_region
      _
    $region77: #{tpu_custom_call.1} parent=1 // pred_fallthru
      _
    // Predicated region
    $region78: #{tpu_custom_call.1} parent=1 // pred_check
      _
    $region79: #{tpu_custom_call.1} parent=1 // pred_check_branch
      %129 = sbr.rel (0) target = $region81
    $region80: #{tpu_custom_call.1} parent=1 // pred_region
      %130 = dma.done [#allocation4], 3072
    $region81: #{tpu_custom_call.1} parent=1 // pred_fallthru
      _
    // Predicated region
    $region82: #{tpu_custom_call.1} parent=1 // pred_check
      _
    $region83: #{tpu_custom_call.1} parent=1 // pred_check_branch
      %132 = sbr.rel (0) target = $region85
    $region84: #{tpu_custom_call.1} parent=1 // pred_region
      %133 = dma.done [#allocation6], 32768
    $region85: #{tpu_custom_call.1} parent=1 // pred_fallthru
      _
    // Predicated region
    $region86: #{tpu_custom_call.1} parent=1 // pred_check
      _
    $region87: #{tpu_custom_call.1} parent=1 // pred_check_branch
      %135 = sbr.rel (0) target = $region89
    $region88: #{tpu_custom_call.1} parent=1 // pred_region
      %136 = dma.done [#allocation6], 8192
    $region89: #{tpu_custom_call.1} parent=1 // pred_fallthru
      _
    // Predicated region
    $region90: #{tpu_custom_call.1} parent=1 // pred_check
      _
    $region91: #{tpu_custom_call.1} parent=1 // pred_check_branch
      %138 = sbr.rel (0) target = $region93
    $region92: #{tpu_custom_call.1} parent=1 // pred_region
      %139 = dma.done [#allocation9], 2048
    $region93: #{tpu_custom_call.1} parent=1 // pred_fallthru
      _
    // Predicated region
    $region94: #{tpu_custom_call.1} parent=1 // pred_check
      _
    $region95: #{tpu_custom_call.1} parent=1 // pred_check_branch
      %141 = sbr.rel (0) target = $region97
    $region96: #{tpu_custom_call.1} parent=1 // pred_region
      %142 = dma.done [#allocation9], 4096
    $region97: #{tpu_custom_call.1} parent=1 // pred_fallthru
      _
    // Predicated region
    $region98: #{tpu_custom_call.1} parent=1 // pred_check
      _
    $region99: #{tpu_custom_call.1} parent=1 // pred_check_branch
      %144 = sbr.rel (0) target = $region101
    $region100: #{tpu_custom_call.1} parent=1 // pred_region
      %145 = dma.done [#allocation12], 16384
    $region101: #{tpu_custom_call.1} parent=1 // pred_fallthru
      _
    %v147 = vld [vmem:[%s0] sm:$0xff]
    %v148 = vld [vmem:[#allocation3] sm:$0xff]
    %v149 = vld [vmem:[#allocation3 + $0x8] sm:$0xff]
    %v150 = vld [vmem:[#allocation3 + $0x10] sm:$0xff]
    %v151 = vld [vmem:[#allocation3 + $0x18] sm:$0xff]
    %v152 = vld [vmem:[#allocation3 + $0x20] sm:$0xff]
    %v153 = vld [vmem:[#allocation3 + $0x28] sm:$0xff]
    %v154 = vld [vmem:[#allocation3 + $0x30] sm:$0xff]
    %v155 = vld [vmem:[#allocation3 + $0x38] sm:$0xff]
    %v156 = vld [vmem:[#allocation3 + $0x40] sm:$0xff]
    %v157 = vld [vmem:[#allocation3 + $0x48] sm:$0xff]
    %v158 = vld [vmem:[#allocation3 + $0x50] sm:$0xff]
    %v159 = vld [vmem:[#allocation3 + $0x58] sm:$0xff]
    %v160 = vld [vmem:[#allocation3 + $0x60] sm:$0xff]
    %v161 = vld [vmem:[#allocation3 + $0x68] sm:$0xff]
    %v162 = vld [vmem:[#allocation3 + $0x70] sm:$0xff]
    %v163 = vld [vmem:[#allocation3 + $0x78] sm:$0xff]
    %v164 = vld [vmem:[#allocation3 + $0x80] sm:$0xff]
    %v165 = vld [vmem:[#allocation3 + $0x88] sm:$0xff]
    %v166 = vld [vmem:[#allocation3 + $0x90] sm:$0xff]
    %v167 = vld [vmem:[#allocation3 + $0x98] sm:$0xff]
    %v168 = vld [vmem:[#allocation3 + $0xa0] sm:$0xff]
    %v169 = vld [vmem:[#allocation3 + $0xa8] sm:$0xff]
    %v170 = vld [vmem:[#allocation3 + $0xb0] sm:$0xff]
    %v171 = vld [vmem:[#allocation3 + $0xb8] sm:$0xff]
    %v172 = vpack.c.bf16 %v147, %v147
    %v173 = vld [vmem:[%s3] sm:$0xff]
    %v175 = vlaneseq
    %v176 = vshrl.u32 %v175, 7
    %v177 = vsub.s32 0, %v176
    %v178 = vrot.slane %v173, %v177
    %v179 = vlaneseq
    %v180 = vshrl.u32 %v179, 7
    %v181 = vsub.s32 1, %v180
    %v182 = vrot.slane %v173, %v181
    %v183 = vlaneseq
    %v184 = vshrl.u32 %v183, 7
    %v185 = vsub.s32 2, %v184
    %v186 = vrot.slane %v173, %v185
    %v187 = vlaneseq
    %v188 = vshrl.u32 %v187, 7
    %v189 = vsub.s32 3, %v188
    %v190 = vrot.slane %v173, %v189
    %v191 = vlaneseq
    %v192 = vshrl.u32 %v191, 7
    %v193 = vsub.s32 4, %v192
    %v194 = vrot.slane %v173, %v193
    %v195 = vlaneseq
    %v196 = vshrl.u32 %v195, 7
    %v197 = vsub.s32 5, %v196
    %v198 = vrot.slane %v173, %v197
    %v199 = vlaneseq
    %v200 = vshrl.u32 %v199, 7
    %v201 = vsub.s32 6, %v200
    %v202 = vrot.slane %v173, %v201
    %v203 = vlaneseq
    %v204 = vshrl.u32 %v203, 7
    %v205 = vsub.s32 7, %v204
    %v206 = vrot.slane %v173, %v205
    %v239 = vunpack.c.l.b16 %v148
    %v240 = vunpack.c.h.b16 %v148
    %v241 = vunpack.c.l.b16 %v149
    %v242 = vunpack.c.h.b16 %v149
    %v243 = vunpack.c.l.b16 %v150
    %v244 = vunpack.c.h.b16 %v150
    %v245 = vunpack.c.l.b16 %v151
    %v246 = vunpack.c.h.b16 %v151
    %v247 = vunpack.c.l.b16 %v152
    %v248 = vunpack.c.h.b16 %v152
    %v249 = vunpack.c.l.b16 %v153
    %v250 = vunpack.c.h.b16 %v153
    %v251 = vunpack.c.l.b16 %v154
    %v252 = vunpack.c.h.b16 %v154
    %v253 = vunpack.c.l.b16 %v155
    %v254 = vunpack.c.h.b16 %v155
    %v255 = vunpack.c.l.b16 %v156
    %v256 = vunpack.c.h.b16 %v156
    %v257 = vunpack.c.l.b16 %v157
    %v258 = vunpack.c.h.b16 %v157
    %v259 = vunpack.c.l.b16 %v158
    %v260 = vunpack.c.h.b16 %v158
    %v261 = vunpack.c.l.b16 %v159
    %v262 = vunpack.c.h.b16 %v159
    %v263 = vunpack.c.l.b16 %v160
    %v264 = vunpack.c.h.b16 %v160
    %v265 = vunpack.c.l.b16 %v161
    %v266 = vunpack.c.h.b16 %v161
    %v267 = vunpack.c.l.b16 %v162
    %v268 = vunpack.c.h.b16 %v162
    %v269 = vunpack.c.l.b16 %v163
    %v270 = vunpack.c.h.b16 %v163
    %v271 = vunpack.c.l.b16 %v164
    %v272 = vunpack.c.h.b16 %v164
    %v273 = vunpack.c.l.b16 %v165
    %v274 = vunpack.c.h.b16 %v165
    %v275 = vunpack.c.l.b16 %v166
    %v276 = vunpack.c.h.b16 %v166
    %v277 = vunpack.c.l.b16 %v167
    %v278 = vunpack.c.h.b16 %v167
    %v279 = vunpack.c.l.b16 %v168
    %v280 = vunpack.c.h.b16 %v168
    %v281 = vunpack.c.l.b16 %v169
    %v282 = vunpack.c.h.b16 %v169
    %v283 = vunpack.c.l.b16 %v170
    %v284 = vunpack.c.h.b16 %v170
    %v285 = vunpack.c.l.b16 %v171
    %v286 = vunpack.c.h.b16 %v171
    %v287 = vpack.c.b16 %v247, %v239
    %v288 = vpack.c.b16 %v248, %v240
    %v289 = vpack.c.b16 %v249, %v241
    %v290 = vpack.c.b16 %v250, %v242
    %v291 = vpack.c.b16 %v251, %v243
    %v292 = vpack.c.b16 %v252, %v244
    %v293 = vpack.c.b16 %v253, %v245
    %v294 = vpack.c.b16 %v254, %v246
    %v295 = vpack.c.b16 %v263, %v255
    %v296 = vpack.c.b16 %v264, %v256
    %v297 = vpack.c.b16 %v265, %v257
    %v298 = vpack.c.b16 %v266, %v258
    %v299 = vpack.c.b16 %v267, %v259
    %v300 = vpack.c.b16 %v268, %v260
    %v301 = vpack.c.b16 %v269, %v261
    %v302 = vpack.c.b16 %v270, %v262
    %v303 = vpack.c.b16 %v279, %v271
    %v304 = vpack.c.b16 %v280, %v272
    %v305 = vpack.c.b16 %v281, %v273
    %v306 = vpack.c.b16 %v282, %v274
    %v307 = vpack.c.b16 %v283, %v275
    %v308 = vpack.c.b16 %v284, %v276
    %v309 = vpack.c.b16 %v285, %v277
    %v310 = vpack.c.b16 %v286, %v278
    %vm335 = vcmask 392192
    %v337 = vsel %vm335, %v172, 0
    %339 = vmatprep.subr.bf16.mxu0 %v288
    %340 = vmatpush1.bf16.msra.mxu0 %v287
    %341 = vmatprep.subr.bf16.mxu0 %v296
    %342 = vmatpush1.bf16.msra.mxu0 %v295
    %343 = vmatprep.subr.bf16.mxu0 %v304
    %344 = vmatpush1.bf16.msra.mxu0 %v303
    %345 = vmatprep.subr.bf16.mxu0 0
    %346 = vmatpush1.bf16.msra.mxu0 0
    %347 = vmatprep.subr.bf16.mxu0 0
    %348 = vmatpush1.bf16.msra.mxu0 0
    %349 = vmatprep.subr.bf16.mxu0 0
    %350 = vmatpush1.bf16.msra.mxu0 0
    %351 = vmatprep.subr.bf16.mxu0 0
    %352 = vmatpush1.bf16.msra.mxu0 0
    %353 = vmatprep.subr.bf16.mxu0 0
    %354 = vmatpush1.bf16.msra.mxu0 0
    %355 = vmatprep.subr.bf16.mxu0 0
    %356 = vmatpush1.bf16.msra.mxu0 0
    %357 = vmatprep.subr.bf16.mxu0 0
    %358 = vmatpush1.bf16.msra.mxu0 0
    %359 = vmatprep.subr.bf16.mxu0 0
    %360 = vmatpush1.bf16.msra.mxu0 0
    %361 = vmatprep.subr.bf16.mxu0 0
    %362 = vmatpush1.bf16.msra.mxu0 0
    %363 = vmatprep.subr.bf16.mxu0 0
    %364 = vmatpush1.bf16.msra.mxu0 0
    %365 = vmatprep.subr.bf16.mxu0 0
    %366 = vmatpush1.bf16.msra.mxu0 0
    %367 = vmatprep.subr.bf16.mxu0 0
    %368 = vmatpush1.bf16.msra.mxu0 0
    %369 = vmatprep.subr.bf16.mxu0 0
    %370 = vmatpush1.bf16.msra.mxu0 0
    %371 = vmatprep.mubr.bf16.mxu0 0
    %372 = vmatmul.mubr.bf16.gmra.mrb[0].mxu0 %v337
    %v373 = vpop.f32.mrb[0].mxu0
    %v374 = vadd.f32 %v178, %v373
    %v375 = vpop.f32.mrb[0].mxu0
    %v376 = vadd.f32 %v182, %v375
    %v377 = vpop.f32.mrb[0].mxu0
    %v378 = vpop.f32.mrb[0].mxu0
    %379 = vdwg.mxu0
    %380 = vmatprep.subr.bf16.mxu0 %v290
    %381 = vmatpush1.bf16.msra.mxu0 %v289
    %382 = vmatprep.subr.bf16.mxu0 %v298
    %383 = vmatpush1.bf16.msra.mxu0 %v297
    %384 = vmatprep.subr.bf16.mxu0 %v306
    %385 = vmatpush1.bf16.msra.mxu0 %v305
    %386 = vmatprep.subr.bf16.mxu0 0
    %387 = vmatpush1.bf16.msra.mxu0 0
    %388 = vmatprep.subr.bf16.mxu0 0
    %389 = vmatpush1.bf16.msra.mxu0 0
    %390 = vmatprep.subr.bf16.mxu0 0
    %391 = vmatpush1.bf16.msra.mxu0 0
    %392 = vmatprep.subr.bf16.mxu0 0
    %393 = vmatpush1.bf16.msra.mxu0 0
    %394 = vmatprep.subr.bf16.mxu0 0
    %395 = vmatpush1.bf16.msra.mxu0 0
    %396 = vmatprep.subr.bf16.mxu0 0
    %397 = vmatpush1.bf16.msra.mxu0 0
    %398 = vmatprep.subr.bf16.mxu0 0
    %399 = vmatpush1.bf16.msra.mxu0 0
    %400 = vmatprep.subr.bf16.mxu0 0
    %401 = vmatpush1.bf16.msra.mxu0 0
    %402 = vmatprep.subr.bf16.mxu0 0
    %403 = vmatpush1.bf16.msra.mxu0 0
    %404 = vmatprep.subr.bf16.mxu0 0
    %405 = vmatpush1.bf16.msra.mxu0 0
    %406 = vmatprep.subr.bf16.mxu0 0
    %407 = vmatpush1.bf16.msra.mxu0 0
    %408 = vmatprep.subr.bf16.mxu0 0
    %409 = vmatpush1.bf16.msra.mxu0 0
    %410 = vmatprep.subr.bf16.mxu0 0
    %411 = vmatpush1.bf16.msra.mxu0 0
    %412 = vmatprep.mubr.bf16.mxu0 0
    %413 = vmatmul.mubr.bf16.gmra.mrb[0].mxu0 %v337
    %v414 = vpop.f32.mrb[0].mxu0
    %v415 = vadd.f32 %v186, %v414
    %v416 = vpop.f32.mrb[0].mxu0
    %v417 = vadd.f32 %v190, %v416
    %v418 = vpop.f32.mrb[0].mxu0
    %v419 = vpop.f32.mrb[0].mxu0
    %420 = vdwg.mxu0
    %421 = vmatprep.subr.bf16.mxu0 %v292
    %422 = vmatpush1.bf16.msra.mxu0 %v291
    %423 = vmatprep.subr.bf16.mxu0 %v300
    %424 = vmatpush1.bf16.msra.mxu0 %v299
    %425 = vmatprep.subr.bf16.mxu0 %v308
    %426 = vmatpush1.bf16.msra.mxu0 %v307
    %427 = vmatprep.subr.bf16.mxu0 0
    %428 = vmatpush1.bf16.msra.mxu0 0
    %429 = vmatprep.subr.bf16.mxu0 0
    %430 = vmatpush1.bf16.msra.mxu0 0
    %431 = vmatprep.subr.bf16.mxu0 0
    %432 = vmatpush1.bf16.msra.mxu0 0
    %433 = vmatprep.subr.bf16.mxu0 0
    %434 = vmatpush1.bf16.msra.mxu0 0
    %435 = vmatprep.subr.bf16.mxu0 0
    %436 = vmatpush1.bf16.msra.mxu0 0
    %437 = vmatprep.subr.bf16.mxu0 0
    %438 = vmatpush1.bf16.msra.mxu0 0
    %439 = vmatprep.subr.bf16.mxu0 0
    %440 = vmatpush1.bf16.msra.mxu0 0
    %441 = vmatprep.subr.bf16.mxu0 0
    %442 = vmatpush1.bf16.msra.mxu0 0
    %443 = vmatprep.subr.bf16.mxu0 0
    %444 = vmatpush1.bf16.msra.mxu0 0
    %445 = vmatprep.subr.bf16.mxu0 0
    %446 = vmatpush1.bf16.msra.mxu0 0
    %447 = vmatprep.subr.bf16.mxu0 0
    %448 = vmatpush1.bf16.msra.mxu0 0
    %449 = vmatprep.subr.bf16.mxu0 0
    %450 = vmatpush1.bf16.msra.mxu0 0
    %451 = vmatprep.subr.bf16.mxu0 0
    %452 = vmatpush1.bf16.msra.mxu0 0
    %453 = vmatprep.mubr.bf16.mxu0 0
    %454 = vmatmul.mubr.bf16.gmra.mrb[0].mxu0 %v337
    %v455 = vpop.f32.mrb[0].mxu0
    %v456 = vadd.f32 %v194, %v455
    %v457 = vpop.f32.mrb[0].mxu0
    %v458 = vadd.f32 %v198, %v457
    %v459 = vpop.f32.mrb[0].mxu0
    %v460 = vpop.f32.mrb[0].mxu0
    %461 = vdwg.mxu0
    %462 = vmatprep.subr.bf16.mxu0 %v294
    %463 = vmatpush1.bf16.msra.mxu0 %v293
    %464 = vmatprep.subr.bf16.mxu0 %v302
    %465 = vmatpush1.bf16.msra.mxu0 %v301
    %466 = vmatprep.subr.bf16.mxu0 %v310
    %467 = vmatpush1.bf16.msra.mxu0 %v309
    %468 = vmatprep.subr.bf16.mxu0 0
    %469 = vmatpush1.bf16.msra.mxu0 0
    %470 = vmatprep.subr.bf16.mxu0 0
    %471 = vmatpush1.bf16.msra.mxu0 0
    %472 = vmatprep.subr.bf16.mxu0 0
    %473 = vmatpush1.bf16.msra.mxu0 0
    %474 = vmatprep.subr.bf16.mxu0 0
    %475 = vmatpush1.bf16.msra.mxu0 0
    %476 = vmatprep.subr.bf16.mxu0 0
    %477 = vmatpush1.bf16.msra.mxu0 0
    %478 = vmatprep.subr.bf16.mxu0 0
    %479 = vmatpush1.bf16.msra.mxu0 0
    %480 = vmatprep.subr.bf16.mxu0 0
    %481 = vmatpush1.bf16.msra.mxu0 0
    %482 = vmatprep.subr.bf16.mxu0 0
    %483 = vmatpush1.bf16.msra.mxu0 0
    %484 = vmatprep.subr.bf16.mxu0 0
    %485 = vmatpush1.bf16.msra.mxu0 0
    %486 = vmatprep.subr.bf16.mxu0 0
    %487 = vmatpush1.bf16.msra.mxu0 0
    %488 = vmatprep.subr.bf16.mxu0 0
    %489 = vmatpush1.bf16.msra.mxu0 0
    %490 = vmatprep.subr.bf16.mxu0 0
    %491 = vmatpush1.bf16.msra.mxu0 0
    %492 = vmatprep.subr.bf16.mxu0 0
    %493 = vmatpush1.bf16.msra.mxu0 0
    %494 = vmatprep.mubr.bf16.mxu0 0
    %495 = vmatmul.mubr.bf16.gmra.mrb[0].mxu0 %v337
    %v496 = vpop.f32.mrb[0].mxu0
    %v497 = vadd.f32 %v202, %v496
    %v498 = vpop.f32.mrb[0].mxu0
    %v499 = vadd.f32 %v206, %v498
    %v500 = vpop.f32.mrb[0].mxu0
    %v501 = vpop.f32.mrb[0].mxu0
    %502 = vdwg.mxu0
    %v503 = vmax.f32 %v374, 0.0
    %v504 = vmax.f32 %v376, 0.0
    %v505 = vmax.f32 %v415, 0.0
    %v506 = vmax.f32 %v417, 0.0
    %v507 = vmax.f32 %v456, 0.0
    %v508 = vmax.f32 %v458, 0.0
    %v509 = vmax.f32 %v497, 0.0
    %v510 = vmax.f32 %v499, 0.0
    %v511 = vld [vmem:[#allocation5] sm:$0xff]
    %v512 = vld [vmem:[#allocation5 + $0x8] sm:$0xff]
    %v513 = vld [vmem:[#allocation5 + $0x10] sm:$0xff]
    %v514 = vld [vmem:[#allocation5 + $0x18] sm:$0xff]
    %v515 = vld [vmem:[#allocation5 + $0x20] sm:$0xff]
    %v516 = vld [vmem:[#allocation5 + $0x28] sm:$0xff]
    %v517 = vld [vmem:[#allocation5 + $0x30] sm:$0xff]
    %v518 = vld [vmem:[#allocation5 + $0x38] sm:$0xff]
    %v519 = vld [vmem:[#allocation5 + $0x40] sm:$0xff]
    %v520 = vld [vmem:[#allocation5 + $0x48] sm:$0xff]
    %v521 = vld [vmem:[#allocation5 + $0x50] sm:$0xff]
    %v522 = vld [vmem:[#allocation5 + $0x58] sm:$0xff]
    %v523 = vld [vmem:[#allocation5 + $0x60] sm:$0xff]
    %v524 = vld [vmem:[#allocation5 + $0x68] sm:$0xff]
    %v525 = vld [vmem:[#allocation5 + $0x70] sm:$0xff]
    %v526 = vld [vmem:[#allocation5 + $0x78] sm:$0xff]
    %v527 = vld [vmem:[#allocation5 + $0x80] sm:$0xff]
    %v528 = vld [vmem:[#allocation5 + $0x88] sm:$0xff]
    %v529 = vld [vmem:[#allocation5 + $0x90] sm:$0xff]
    %v530 = vld [vmem:[#allocation5 + $0x98] sm:$0xff]
    %v531 = vld [vmem:[#allocation5 + $0xa0] sm:$0xff]
    %v532 = vld [vmem:[#allocation5 + $0xa8] sm:$0xff]
    %v533 = vld [vmem:[#allocation5 + $0xb0] sm:$0xff]
    %v534 = vld [vmem:[#allocation5 + $0xb8] sm:$0xff]
    %v535 = vld [vmem:[#allocation5 + $0xc0] sm:$0xff]
    %v536 = vld [vmem:[#allocation5 + $0xc8] sm:$0xff]
    %v537 = vld [vmem:[#allocation5 + $0xd0] sm:$0xff]
    %v538 = vld [vmem:[#allocation5 + $0xd8] sm:$0xff]
    %v539 = vld [vmem:[#allocation5 + $0xe0] sm:$0xff]
    %v540 = vld [vmem:[#allocation5 + $0xe8] sm:$0xff]
    %v541 = vld [vmem:[#allocation5 + $0xf0] sm:$0xff]
    %v542 = vld [vmem:[#allocation5 + $0xf8] sm:$0xff]
    %v543 = vld [vmem:[#allocation5 + $0x100] sm:$0xff]
    %v544 = vld [vmem:[#allocation5 + $0x108] sm:$0xff]
    %v545 = vld [vmem:[#allocation5 + $0x110] sm:$0xff]
    %v546 = vld [vmem:[#allocation5 + $0x118] sm:$0xff]
    %v547 = vld [vmem:[#allocation5 + $0x120] sm:$0xff]
    %v548 = vld [vmem:[#allocation5 + $0x128] sm:$0xff]
    %v549 = vld [vmem:[#allocation5 + $0x130] sm:$0xff]
    %v550 = vld [vmem:[#allocation5 + $0x138] sm:$0xff]
    %v551 = vld [vmem:[#allocation5 + $0x140] sm:$0xff]
    %v552 = vld [vmem:[#allocation5 + $0x148] sm:$0xff]
    %v553 = vld [vmem:[#allocation5 + $0x150] sm:$0xff]
    %v554 = vld [vmem:[#allocation5 + $0x158] sm:$0xff]
    %v555 = vld [vmem:[#allocation5 + $0x160] sm:$0xff]
    %v556 = vld [vmem:[#allocation5 + $0x168] sm:$0xff]
    %v557 = vld [vmem:[#allocation5 + $0x170] sm:$0xff]
    %v558 = vld [vmem:[#allocation5 + $0x178] sm:$0xff]
    %v559 = vld [vmem:[#allocation5 + $0x180] sm:$0xff]
    %v560 = vld [vmem:[#allocation5 + $0x188] sm:$0xff]
    %v561 = vld [vmem:[#allocation5 + $0x190] sm:$0xff]
    %v562 = vld [vmem:[#allocation5 + $0x198] sm:$0xff]
    %v563 = vld [vmem:[#allocation5 + $0x1a0] sm:$0xff]
    %v564 = vld [vmem:[#allocation5 + $0x1a8] sm:$0xff]
    %v565 = vld [vmem:[#allocation5 + $0x1b0] sm:$0xff]
    %v566 = vld [vmem:[#allocation5 + $0x1b8] sm:$0xff]
    %v567 = vld [vmem:[#allocation5 + $0x1c0] sm:$0xff]
    %v568 = vld [vmem:[#allocation5 + $0x1c8] sm:$0xff]
    %v569 = vld [vmem:[#allocation5 + $0x1d0] sm:$0xff]
    %v570 = vld [vmem:[#allocation5 + $0x1d8] sm:$0xff]
    %v571 = vld [vmem:[#allocation5 + $0x1e0] sm:$0xff]
    %v572 = vld [vmem:[#allocation5 + $0x1e8] sm:$0xff]
    %v573 = vld [vmem:[#allocation5 + $0x1f0] sm:$0xff]
    %v574 = vld [vmem:[#allocation5 + $0x1f8] sm:$0xff]
    %v575 = vld [vmem:[#allocation5 + $0x200] sm:$0xff]
    %v576 = vld [vmem:[#allocation5 + $0x208] sm:$0xff]
    %v577 = vld [vmem:[#allocation5 + $0x210] sm:$0xff]
    %v578 = vld [vmem:[#allocation5 + $0x218] sm:$0xff]
    %v579 = vld [vmem:[#allocation5 + $0x220] sm:$0xff]
    %v580 = vld [vmem:[#allocation5 + $0x228] sm:$0xff]
    %v581 = vld [vmem:[#allocation5 + $0x230] sm:$0xff]
    %v582 = vld [vmem:[#allocation5 + $0x238] sm:$0xff]
    %v583 = vld [vmem:[#allocation5 + $0x240] sm:$0xff]
    %v584 = vld [vmem:[#allocation5 + $0x248] sm:$0xff]
    %v585 = vld [vmem:[#allocation5 + $0x250] sm:$0xff]
    %v586 = vld [vmem:[#allocation5 + $0x258] sm:$0xff]
    %v587 = vld [vmem:[#allocation5 + $0x260] sm:$0xff]
    %v588 = vld [vmem:[#allocation5 + $0x268] sm:$0xff]
    %v589 = vld [vmem:[#allocation5 + $0x270] sm:$0xff]
    %v590 = vld [vmem:[#allocation5 + $0x278] sm:$0xff]
    %v591 = vld [vmem:[#allocation5 + $0x280] sm:$0xff]
    %v592 = vld [vmem:[#allocation5 + $0x288] sm:$0xff]
    %v593 = vld [vmem:[#allocation5 + $0x290] sm:$0xff]
    %v594 = vld [vmem:[#allocation5 + $0x298] sm:$0xff]
    %v595 = vld [vmem:[#allocation5 + $0x2a0] sm:$0xff]
    %v596 = vld [vmem:[#allocation5 + $0x2a8] sm:$0xff]
    %v597 = vld [vmem:[#allocation5 + $0x2b0] sm:$0xff]
    %v598 = vld [vmem:[#allocation5 + $0x2b8] sm:$0xff]
    %v599 = vld [vmem:[#allocation5 + $0x2c0] sm:$0xff]
    %v600 = vld [vmem:[#allocation5 + $0x2c8] sm:$0xff]
    %v601 = vld [vmem:[#allocation5 + $0x2d0] sm:$0xff]
    %v602 = vld [vmem:[#allocation5 + $0x2d8] sm:$0xff]
    %v603 = vld [vmem:[#allocation5 + $0x2e0] sm:$0xff]
    %v604 = vld [vmem:[#allocation5 + $0x2e8] sm:$0xff]
    %v605 = vld [vmem:[#allocation5 + $0x2f0] sm:$0xff]
    %v606 = vld [vmem:[#allocation5 + $0x2f8] sm:$0xff]
    %v607 = vld [vmem:[#allocation5 + $0x300] sm:$0xff]
    %v608 = vld [vmem:[#allocation5 + $0x308] sm:$0xff]
    %v609 = vld [vmem:[#allocation5 + $0x310] sm:$0xff]
    %v610 = vld [vmem:[#allocation5 + $0x318] sm:$0xff]
    %v611 = vld [vmem:[#allocation5 + $0x320] sm:$0xff]
    %v612 = vld [vmem:[#allocation5 + $0x328] sm:$0xff]
    %v613 = vld [vmem:[#allocation5 + $0x330] sm:$0xff]
    %v614 = vld [vmem:[#allocation5 + $0x338] sm:$0xff]
    %v615 = vld [vmem:[#allocation5 + $0x340] sm:$0xff]
    %v616 = vld [vmem:[#allocation5 + $0x348] sm:$0xff]
    %v617 = vld [vmem:[#allocation5 + $0x350] sm:$0xff]
    %v618 = vld [vmem:[#allocation5 + $0x358] sm:$0xff]
    %v619 = vld [vmem:[#allocation5 + $0x360] sm:$0xff]
    %v620 = vld [vmem:[#allocation5 + $0x368] sm:$0xff]
    %v621 = vld [vmem:[#allocation5 + $0x370] sm:$0xff]
    %v622 = vld [vmem:[#allocation5 + $0x378] sm:$0xff]
    %v623 = vld [vmem:[#allocation5 + $0x380] sm:$0xff]
    %v624 = vld [vmem:[#allocation5 + $0x388] sm:$0xff]
    %v625 = vld [vmem:[#allocation5 + $0x390] sm:$0xff]
    %v626 = vld [vmem:[#allocation5 + $0x398] sm:$0xff]
    %v627 = vld [vmem:[#allocation5 + $0x3a0] sm:$0xff]
    %v628 = vld [vmem:[#allocation5 + $0x3a8] sm:$0xff]
    %v629 = vld [vmem:[#allocation5 + $0x3b0] sm:$0xff]
    %v630 = vld [vmem:[#allocation5 + $0x3b8] sm:$0xff]
    %v631 = vld [vmem:[#allocation5 + $0x3c0] sm:$0xff]
    %v632 = vld [vmem:[#allocation5 + $0x3c8] sm:$0xff]
    %v633 = vld [vmem:[#allocation5 + $0x3d0] sm:$0xff]
    %v634 = vld [vmem:[#allocation5 + $0x3d8] sm:$0xff]
    %v635 = vld [vmem:[#allocation5 + $0x3e0] sm:$0xff]
    %v636 = vld [vmem:[#allocation5 + $0x3e8] sm:$0xff]
    %v637 = vld [vmem:[#allocation5 + $0x3f0] sm:$0xff]
    %v638 = vld [vmem:[#allocation5 + $0x3f8] sm:$0xff]
    %v639 = vld [vmem:[#allocation5 + $0x400] sm:$0xff]
    %v640 = vld [vmem:[#allocation5 + $0x408] sm:$0xff]
    %v641 = vld [vmem:[#allocation5 + $0x410] sm:$0xff]
    %v642 = vld [vmem:[#allocation5 + $0x418] sm:$0xff]
    %v643 = vld [vmem:[#allocation5 + $0x420] sm:$0xff]
    %v644 = vld [vmem:[#allocation5 + $0x428] sm:$0xff]
    %v645 = vld [vmem:[#allocation5 + $0x430] sm:$0xff]
    %v646 = vld [vmem:[#allocation5 + $0x438] sm:$0xff]
    %v647 = vld [vmem:[#allocation5 + $0x440] sm:$0xff]
    %v648 = vld [vmem:[#allocation5 + $0x448] sm:$0xff]
    %v649 = vld [vmem:[#allocation5 + $0x450] sm:$0xff]
    %v650 = vld [vmem:[#allocation5 + $0x458] sm:$0xff]
    %v651 = vld [vmem:[#allocation5 + $0x460] sm:$0xff]
    %v652 = vld [vmem:[#allocation5 + $0x468] sm:$0xff]
    %v653 = vld [vmem:[#allocation5 + $0x470] sm:$0xff]
    %v654 = vld [vmem:[#allocation5 + $0x478] sm:$0xff]
    %v655 = vld [vmem:[#allocation5 + $0x480] sm:$0xff]
    %v656 = vld [vmem:[#allocation5 + $0x488] sm:$0xff]
    %v657 = vld [vmem:[#allocation5 + $0x490] sm:$0xff]
    %v658 = vld [vmem:[#allocation5 + $0x498] sm:$0xff]
    %v659 = vld [vmem:[#allocation5 + $0x4a0] sm:$0xff]
    %v660 = vld [vmem:[#allocation5 + $0x4a8] sm:$0xff]
    %v661 = vld [vmem:[#allocation5 + $0x4b0] sm:$0xff]
    %v662 = vld [vmem:[#allocation5 + $0x4b8] sm:$0xff]
    %v663 = vld [vmem:[#allocation5 + $0x4c0] sm:$0xff]
    %v664 = vld [vmem:[#allocation5 + $0x4c8] sm:$0xff]
    %v665 = vld [vmem:[#allocation5 + $0x4d0] sm:$0xff]
    %v666 = vld [vmem:[#allocation5 + $0x4d8] sm:$0xff]
    %v667 = vld [vmem:[#allocation5 + $0x4e0] sm:$0xff]
    %v668 = vld [vmem:[#allocation5 + $0x4e8] sm:$0xff]
    %v669 = vld [vmem:[#allocation5 + $0x4f0] sm:$0xff]
    %v670 = vld [vmem:[#allocation5 + $0x4f8] sm:$0xff]
    %v671 = vld [vmem:[#allocation5 + $0x500] sm:$0xff]
    %v672 = vld [vmem:[#allocation5 + $0x508] sm:$0xff]
    %v673 = vld [vmem:[#allocation5 + $0x510] sm:$0xff]
    %v674 = vld [vmem:[#allocation5 + $0x518] sm:$0xff]
    %v675 = vld [vmem:[#allocation5 + $0x520] sm:$0xff]
    %v676 = vld [vmem:[#allocation5 + $0x528] sm:$0xff]
    %v677 = vld [vmem:[#allocation5 + $0x530] sm:$0xff]
    %v678 = vld [vmem:[#allocation5 + $0x538] sm:$0xff]
    %v679 = vld [vmem:[#allocation5 + $0x540] sm:$0xff]
    %v680 = vld [vmem:[#allocation5 + $0x548] sm:$0xff]
    %v681 = vld [vmem:[#allocation5 + $0x550] sm:$0xff]
    %v682 = vld [vmem:[#allocation5 + $0x558] sm:$0xff]
    %v683 = vld [vmem:[#allocation5 + $0x560] sm:$0xff]
    %v684 = vld [vmem:[#allocation5 + $0x568] sm:$0xff]
    %v685 = vld [vmem:[#allocation5 + $0x570] sm:$0xff]
    %v686 = vld [vmem:[#allocation5 + $0x578] sm:$0xff]
    %v687 = vld [vmem:[#allocation5 + $0x580] sm:$0xff]
    %v688 = vld [vmem:[#allocation5 + $0x588] sm:$0xff]
    %v689 = vld [vmem:[#allocation5 + $0x590] sm:$0xff]
    %v690 = vld [vmem:[#allocation5 + $0x598] sm:$0xff]
    %v691 = vld [vmem:[#allocation5 + $0x5a0] sm:$0xff]
    %v692 = vld [vmem:[#allocation5 + $0x5a8] sm:$0xff]
    %v693 = vld [vmem:[#allocation5 + $0x5b0] sm:$0xff]
    %v694 = vld [vmem:[#allocation5 + $0x5b8] sm:$0xff]
    %v695 = vld [vmem:[#allocation5 + $0x5c0] sm:$0xff]
    %v696 = vld [vmem:[#allocation5 + $0x5c8] sm:$0xff]
    %v697 = vld [vmem:[#allocation5 + $0x5d0] sm:$0xff]
    %v698 = vld [vmem:[#allocation5 + $0x5d8] sm:$0xff]
    %v699 = vld [vmem:[#allocation5 + $0x5e0] sm:$0xff]
    %v700 = vld [vmem:[#allocation5 + $0x5e8] sm:$0xff]
    %v701 = vld [vmem:[#allocation5 + $0x5f0] sm:$0xff]
    %v702 = vld [vmem:[#allocation5 + $0x5f8] sm:$0xff]
    %v703 = vld [vmem:[#allocation5 + $0x600] sm:$0xff]
    %v704 = vld [vmem:[#allocation5 + $0x608] sm:$0xff]
    %v705 = vld [vmem:[#allocation5 + $0x610] sm:$0xff]
    %v706 = vld [vmem:[#allocation5 + $0x618] sm:$0xff]
    %v707 = vld [vmem:[#allocation5 + $0x620] sm:$0xff]
    %v708 = vld [vmem:[#allocation5 + $0x628] sm:$0xff]
    %v709 = vld [vmem:[#allocation5 + $0x630] sm:$0xff]
    %v710 = vld [vmem:[#allocation5 + $0x638] sm:$0xff]
    %v711 = vld [vmem:[#allocation5 + $0x640] sm:$0xff]
    %v712 = vld [vmem:[#allocation5 + $0x648] sm:$0xff]
    %v713 = vld [vmem:[#allocation5 + $0x650] sm:$0xff]
    %v714 = vld [vmem:[#allocation5 + $0x658] sm:$0xff]
    %v715 = vld [vmem:[#allocation5 + $0x660] sm:$0xff]
    %v716 = vld [vmem:[#allocation5 + $0x668] sm:$0xff]
    %v717 = vld [vmem:[#allocation5 + $0x670] sm:$0xff]
    %v718 = vld [vmem:[#allocation5 + $0x678] sm:$0xff]
    %v719 = vld [vmem:[#allocation5 + $0x680] sm:$0xff]
    %v720 = vld [vmem:[#allocation5 + $0x688] sm:$0xff]
    %v721 = vld [vmem:[#allocation5 + $0x690] sm:$0xff]
    %v722 = vld [vmem:[#allocation5 + $0x698] sm:$0xff]
    %v723 = vld [vmem:[#allocation5 + $0x6a0] sm:$0xff]
    %v724 = vld [vmem:[#allocation5 + $0x6a8] sm:$0xff]
    %v725 = vld [vmem:[#allocation5 + $0x6b0] sm:$0xff]
    %v726 = vld [vmem:[#allocation5 + $0x6b8] sm:$0xff]
    %v727 = vld [vmem:[#allocation5 + $0x6c0] sm:$0xff]
    %v728 = vld [vmem:[#allocation5 + $0x6c8] sm:$0xff]
    %v729 = vld [vmem:[#allocation5 + $0x6d0] sm:$0xff]
    %v730 = vld [vmem:[#allocation5 + $0x6d8] sm:$0xff]
    %v731 = vld [vmem:[#allocation5 + $0x6e0] sm:$0xff]
    %v732 = vld [vmem:[#allocation5 + $0x6e8] sm:$0xff]
    %v733 = vld [vmem:[#allocation5 + $0x6f0] sm:$0xff]
    %v734 = vld [vmem:[#allocation5 + $0x6f8] sm:$0xff]
    %v735 = vld [vmem:[#allocation5 + $0x700] sm:$0xff]
    %v736 = vld [vmem:[#allocation5 + $0x708] sm:$0xff]
    %v737 = vld [vmem:[#allocation5 + $0x710] sm:$0xff]
    %v738 = vld [vmem:[#allocation5 + $0x718] sm:$0xff]
    %v739 = vld [vmem:[#allocation5 + $0x720] sm:$0xff]
    %v740 = vld [vmem:[#allocation5 + $0x728] sm:$0xff]
    %v741 = vld [vmem:[#allocation5 + $0x730] sm:$0xff]
    %v742 = vld [vmem:[#allocation5 + $0x738] sm:$0xff]
    %v743 = vld [vmem:[#allocation5 + $0x740] sm:$0xff]
    %v744 = vld [vmem:[#allocation5 + $0x748] sm:$0xff]
    %v745 = vld [vmem:[#allocation5 + $0x750] sm:$0xff]
    %v746 = vld [vmem:[#allocation5 + $0x758] sm:$0xff]
    %v747 = vld [vmem:[#allocation5 + $0x760] sm:$0xff]
    %v748 = vld [vmem:[#allocation5 + $0x768] sm:$0xff]
    %v749 = vld [vmem:[#allocation5 + $0x770] sm:$0xff]
    %v750 = vld [vmem:[#allocation5 + $0x778] sm:$0xff]
    %v751 = vld [vmem:[#allocation5 + $0x780] sm:$0xff]
    %v752 = vld [vmem:[#allocation5 + $0x788] sm:$0xff]
    %v753 = vld [vmem:[#allocation5 + $0x790] sm:$0xff]
    %v754 = vld [vmem:[#allocation5 + $0x798] sm:$0xff]
    %v755 = vld [vmem:[#allocation5 + $0x7a0] sm:$0xff]
    %v756 = vld [vmem:[#allocation5 + $0x7a8] sm:$0xff]
    %v757 = vld [vmem:[#allocation5 + $0x7b0] sm:$0xff]
    %v758 = vld [vmem:[#allocation5 + $0x7b8] sm:$0xff]
    %v759 = vld [vmem:[#allocation5 + $0x7c0] sm:$0xff]
    %v760 = vld [vmem:[#allocation5 + $0x7c8] sm:$0xff]
    %v761 = vld [vmem:[#allocation5 + $0x7d0] sm:$0xff]
    %v762 = vld [vmem:[#allocation5 + $0x7d8] sm:$0xff]
    %v763 = vld [vmem:[#allocation5 + $0x7e0] sm:$0xff]
    %v764 = vld [vmem:[#allocation5 + $0x7e8] sm:$0xff]
    %v765 = vld [vmem:[#allocation5 + $0x7f0] sm:$0xff]
    %v766 = vld [vmem:[#allocation5 + $0x7f8] sm:$0xff]
    %v767 = vpack.c.bf16 %v503, %v503
    %v768 = vpack.c.bf16 %v504, %v504
    %v769 = vpack.c.bf16 %v505, %v505
    %v770 = vpack.c.bf16 %v506, %v506
    %v771 = vpack.c.bf16 %v507, %v507
    %v772 = vpack.c.bf16 %v508, %v508
    %v773 = vpack.c.bf16 %v509, %v509
    %v774 = vpack.c.bf16 %v510, %v510
    %v775 = vld [vmem:[%s5] sm:$0xf]
    %v777 = vlaneseq
    %v778 = vshrl.u32 %v777, 7
    %v779 = vsub.s32 0, %v778
    %v780 = vrot.slane %v775, %v779
    %v781 = vlaneseq
    %v782 = vshrl.u32 %v781, 7
    %v783 = vsub.s32 1, %v782
    %v784 = vrot.slane %v775, %v783
    %v785 = vlaneseq
    %v786 = vshrl.u32 %v785, 7
    %v787 = vsub.s32 2, %v786
    %v788 = vrot.slane %v775, %v787
    %v789 = vlaneseq
    %v790 = vshrl.u32 %v789, 7
    %v791 = vsub.s32 3, %v790
    %v792 = vrot.slane %v775, %v791
    %v1053 = vunpack.c.l.b16 %v511
    %v1054 = vunpack.c.h.b16 %v511
    %v1055 = vunpack.c.l.b16 %v512
    %v1056 = vunpack.c.h.b16 %v512
    %v1057 = vunpack.c.l.b16 %v513
    %v1058 = vunpack.c.h.b16 %v513
    %v1059 = vunpack.c.l.b16 %v514
    %v1060 = vunpack.c.h.b16 %v514
    %v1061 = vunpack.c.l.b16 %v515
    %v1062 = vunpack.c.h.b16 %v515
    %v1063 = vunpack.c.l.b16 %v516
    %v1064 = vunpack.c.h.b16 %v516
    %v1065 = vunpack.c.l.b16 %v517
    %v1066 = vunpack.c.h.b16 %v517
    %v1067 = vunpack.c.l.b16 %v518
    %v1068 = vunpack.c.h.b16 %v518
    %v1069 = vunpack.c.l.b16 %v519
    %v1070 = vunpack.c.h.b16 %v519
    %v1071 = vunpack.c.l.b16 %v520
    %v1072 = vunpack.c.h.b16 %v520
    %v1073 = vunpack.c.l.b16 %v521
    %v1074 = vunpack.c.h.b16 %v521
    %v1075 = vunpack.c.l.b16 %v522
    %v1076 = vunpack.c.h.b16 %v522
    %v1077 = vunpack.c.l.b16 %v523
    %v1078 = vunpack.c.h.b16 %v523
    %v1079 = vunpack.c.l.b16 %v524
    %v1080 = vunpack.c.h.b16 %v524
    %v1081 = vunpack.c.l.b16 %v525
    %v1082 = vunpack.c.h.b16 %v525
    %v1083 = vunpack.c.l.b16 %v526
    %v1084 = vunpack.c.h.b16 %v526
    %v1085 = vunpack.c.l.b16 %v527
    %v1086 = vunpack.c.h.b16 %v527
    %v1087 = vunpack.c.l.b16 %v528
    %v1088 = vunpack.c.h.b16 %v528
    %v1089 = vunpack.c.l.b16 %v529
    %v1090 = vunpack.c.h.b16 %v529
    %v1091 = vunpack.c.l.b16 %v530
    %v1092 = vunpack.c.h.b16 %v530
    %v1093 = vunpack.c.l.b16 %v531
    %v1094 = vunpack.c.h.b16 %v531
    %v1095 = vunpack.c.l.b16 %v532
    %v1096 = vunpack.c.h.b16 %v532
    %v1097 = vunpack.c.l.b16 %v533
    %v1098 = vunpack.c.h.b16 %v533
    %v1099 = vunpack.c.l.b16 %v534
    %v1100 = vunpack.c.h.b16 %v534
    %v1101 = vunpack.c.l.b16 %v535
    %v1102 = vunpack.c.h.b16 %v535
    %v1103 = vunpack.c.l.b16 %v536
    %v1104 = vunpack.c.h.b16 %v536
    %v1105 = vunpack.c.l.b16 %v537
    %v1106 = vunpack.c.h.b16 %v537
    %v1107 = vunpack.c.l.b16 %v538
    %v1108 = vunpack.c.h.b16 %v538
    %v1109 = vunpack.c.l.b16 %v539
    %v1110 = vunpack.c.h.b16 %v539
    %v1111 = vunpack.c.l.b16 %v540
    %v1112 = vunpack.c.h.b16 %v540
    %v1113 = vunpack.c.l.b16 %v541
    %v1114 = vunpack.c.h.b16 %v541
    %v1115 = vunpack.c.l.b16 %v542
    %v1116 = vunpack.c.h.b16 %v542
    %v1117 = vunpack.c.l.b16 %v543
    %v1118 = vunpack.c.h.b16 %v543
    %v1119 = vunpack.c.l.b16 %v544
    %v1120 = vunpack.c.h.b16 %v544
    %v1121 = vunpack.c.l.b16 %v545
    %v1122 = vunpack.c.h.b16 %v545
    %v1123 = vunpack.c.l.b16 %v546
    %v1124 = vunpack.c.h.b16 %v546
    %v1125 = vunpack.c.l.b16 %v547
    %v1126 = vunpack.c.h.b16 %v547
    %v1127 = vunpack.c.l.b16 %v548
    %v1128 = vunpack.c.h.b16 %v548
    %v1129 = vunpack.c.l.b16 %v549
    %v1130 = vunpack.c.h.b16 %v549
    %v1131 = vunpack.c.l.b16 %v550
    %v1132 = vunpack.c.h.b16 %v550
    %v1133 = vunpack.c.l.b16 %v551
    %v1134 = vunpack.c.h.b16 %v551
    %v1135 = vunpack.c.l.b16 %v552
    %v1136 = vunpack.c.h.b16 %v552
    %v1137 = vunpack.c.l.b16 %v553
    %v1138 = vunpack.c.h.b16 %v553
    %v1139 = vunpack.c.l.b16 %v554
    %v1140 = vunpack.c.h.b16 %v554
    %v1141 = vunpack.c.l.b16 %v555
    %v1142 = vunpack.c.h.b16 %v555
    %v1143 = vunpack.c.l.b16 %v556
    %v1144 = vunpack.c.h.b16 %v556
    %v1145 = vunpack.c.l.b16 %v557
    %v1146 = vunpack.c.h.b16 %v557
    %v1147 = vunpack.c.l.b16 %v558
    %v1148 = vunpack.c.h.b16 %v558
    %v1149 = vunpack.c.l.b16 %v559
    %v1150 = vunpack.c.h.b16 %v559
    %v1151 = vunpack.c.l.b16 %v560
    %v1152 = vunpack.c.h.b16 %v560
    %v1153 = vunpack.c.l.b16 %v561
    %v1154 = vunpack.c.h.b16 %v561
    %v1155 = vunpack.c.l.b16 %v562
    %v1156 = vunpack.c.h.b16 %v562
    %v1157 = vunpack.c.l.b16 %v563
    %v1158 = vunpack.c.h.b16 %v563
    %v1159 = vunpack.c.l.b16 %v564
    %v1160 = vunpack.c.h.b16 %v564
    %v1161 = vunpack.c.l.b16 %v565
    %v1162 = vunpack.c.h.b16 %v565
    %v1163 = vunpack.c.l.b16 %v566
    %v1164 = vunpack.c.h.b16 %v566
    %v1165 = vunpack.c.l.b16 %v567
    %v1166 = vunpack.c.h.b16 %v567
    %v1167 = vunpack.c.l.b16 %v568
    %v1168 = vunpack.c.h.b16 %v568
    %v1169 = vunpack.c.l.b16 %v569
    %v1170 = vunpack.c.h.b16 %v569
    %v1171 = vunpack.c.l.b16 %v570
    %v1172 = vunpack.c.h.b16 %v570
    %v1173 = vunpack.c.l.b16 %v571
    %v1174 = vunpack.c.h.b16 %v571
    %v1175 = vunpack.c.l.b16 %v572
    %v1176 = vunpack.c.h.b16 %v572
    %v1177 = vunpack.c.l.b16 %v573
    %v1178 = vunpack.c.h.b16 %v573
    %v1179 = vunpack.c.l.b16 %v574
    %v1180 = vunpack.c.h.b16 %v574
    %v1181 = vunpack.c.l.b16 %v575
    %v1182 = vunpack.c.h.b16 %v575
    %v1183 = vunpack.c.l.b16 %v576
    %v1184 = vunpack.c.h.b16 %v576
    %v1185 = vunpack.c.l.b16 %v577
    %v1186 = vunpack.c.h.b16 %v577
    %v1187 = vunpack.c.l.b16 %v578
    %v1188 = vunpack.c.h.b16 %v578
    %v1189 = vunpack.c.l.b16 %v579
    %v1190 = vunpack.c.h.b16 %v579
    %v1191 = vunpack.c.l.b16 %v580
    %v1192 = vunpack.c.h.b16 %v580
    %v1193 = vunpack.c.l.b16 %v581
    %v1194 = vunpack.c.h.b16 %v581
    %v1195 = vunpack.c.l.b16 %v582
    %v1196 = vunpack.c.h.b16 %v582
    %v1197 = vunpack.c.l.b16 %v583
    %v1198 = vunpack.c.h.b16 %v583
    %v1199 = vunpack.c.l.b16 %v584
    %v1200 = vunpack.c.h.b16 %v584
    %v1201 = vunpack.c.l.b16 %v585
    %v1202 = vunpack.c.h.b16 %v585
    %v1203 = vunpack.c.l.b16 %v586
    %v1204 = vunpack.c.h.b16 %v586
    %v1205 = vunpack.c.l.b16 %v587
    %v1206 = vunpack.c.h.b16 %v587
    %v1207 = vunpack.c.l.b16 %v588
    %v1208 = vunpack.c.h.b16 %v588
    %v1209 = vunpack.c.l.b16 %v589
    %v1210 = vunpack.c.h.b16 %v589
    %v1211 = vunpack.c.l.b16 %v590
    %v1212 = vunpack.c.h.b16 %v590
    %v1213 = vunpack.c.l.b16 %v591
    %v1214 = vunpack.c.h.b16 %v591
    %v1215 = vunpack.c.l.b16 %v592
    %v1216 = vunpack.c.h.b16 %v592
    %v1217 = vunpack.c.l.b16 %v593
    %v1218 = vunpack.c.h.b16 %v593
    %v1219 = vunpack.c.l.b16 %v594
    %v1220 = vunpack.c.h.b16 %v594
    %v1221 = vunpack.c.l.b16 %v595
    %v1222 = vunpack.c.h.b16 %v595
    %v1223 = vunpack.c.l.b16 %v596
    %v1224 = vunpack.c.h.b16 %v596
    %v1225 = vunpack.c.l.b16 %v597
    %v1226 = vunpack.c.h.b16 %v597
    %v1227 = vunpack.c.l.b16 %v598
    %v1228 = vunpack.c.h.b16 %v598
    %v1229 = vunpack.c.l.b16 %v599
    %v1230 = vunpack.c.h.b16 %v599
    %v1231 = vunpack.c.l.b16 %v600
    %v1232 = vunpack.c.h.b16 %v600
    %v1233 = vunpack.c.l.b16 %v601
    %v1234 = vunpack.c.h.b16 %v601
    %v1235 = vunpack.c.l.b16 %v602
    %v1236 = vunpack.c.h.b16 %v602
    %v1237 = vunpack.c.l.b16 %v603
    %v1238 = vunpack.c.h.b16 %v603
    %v1239 = vunpack.c.l.b16 %v604
    %v1240 = vunpack.c.h.b16 %v604
    %v1241 = vunpack.c.l.b16 %v605
    %v1242 = vunpack.c.h.b16 %v605
    %v1243 = vunpack.c.l.b16 %v606
    %v1244 = vunpack.c.h.b16 %v606
    %v1245 = vunpack.c.l.b16 %v607
    %v1246 = vunpack.c.h.b16 %v607
    %v1247 = vunpack.c.l.b16 %v608
    %v1248 = vunpack.c.h.b16 %v608
    %v1249 = vunpack.c.l.b16 %v609
    %v1250 = vunpack.c.h.b16 %v609
    %v1251 = vunpack.c.l.b16 %v610
    %v1252 = vunpack.c.h.b16 %v610
    %v1253 = vunpack.c.l.b16 %v611
    %v1254 = vunpack.c.h.b16 %v611
    %v1255 = vunpack.c.l.b16 %v612
    %v1256 = vunpack.c.h.b16 %v612
    %v1257 = vunpack.c.l.b16 %v613
    %v1258 = vunpack.c.h.b16 %v613
    %v1259 = vunpack.c.l.b16 %v614
    %v1260 = vunpack.c.h.b16 %v614
    %v1261 = vunpack.c.l.b16 %v615
    %v1262 = vunpack.c.h.b16 %v615
    %v1263 = vunpack.c.l.b16 %v616
    %v1264 = vunpack.c.h.b16 %v616
    %v1265 = vunpack.c.l.b16 %v617
    %v1266 = vunpack.c.h.b16 %v617
    %v1267 = vunpack.c.l.b16 %v618
    %v1268 = vunpack.c.h.b16 %v618
    %v1269 = vunpack.c.l.b16 %v619
    %v1270 = vunpack.c.h.b16 %v619
    %v1271 = vunpack.c.l.b16 %v620
    %v1272 = vunpack.c.h.b16 %v620
    %v1273 = vunpack.c.l.b16 %v621
    %v1274 = vunpack.c.h.b16 %v621
    %v1275 = vunpack.c.l.b16 %v622
    %v1276 = vunpack.c.h.b16 %v622
    %v1277 = vunpack.c.l.b16 %v623
    %v1278 = vunpack.c.h.b16 %v623
    %v1279 = vunpack.c.l.b16 %v624
    %v1280 = vunpack.c.h.b16 %v624
    %v1281 = vunpack.c.l.b16 %v625
    %v1282 = vunpack.c.h.b16 %v625
    %v1283 = vunpack.c.l.b16 %v626
    %v1284 = vunpack.c.h.b16 %v626
    %v1285 = vunpack.c.l.b16 %v627
    %v1286 = vunpack.c.h.b16 %v627
    %v1287 = vunpack.c.l.b16 %v628
    %v1288 = vunpack.c.h.b16 %v628
    %v1289 = vunpack.c.l.b16 %v629
    %v1290 = vunpack.c.h.b16 %v629
    %v1291 = vunpack.c.l.b16 %v630
    %v1292 = vunpack.c.h.b16 %v630
    %v1293 = vunpack.c.l.b16 %v631
    %v1294 = vunpack.c.h.b16 %v631
    %v1295 = vunpack.c.l.b16 %v632
    %v1296 = vunpack.c.h.b16 %v632
    %v1297 = vunpack.c.l.b16 %v633
    %v1298 = vunpack.c.h.b16 %v633
    %v1299 = vunpack.c.l.b16 %v634
    %v1300 = vunpack.c.h.b16 %v634
    %v1301 = vunpack.c.l.b16 %v635
    %v1302 = vunpack.c.h.b16 %v635
    %v1303 = vunpack.c.l.b16 %v636
    %v1304 = vunpack.c.h.b16 %v636
    %v1305 = vunpack.c.l.b16 %v637
    %v1306 = vunpack.c.h.b16 %v637
    %v1307 = vunpack.c.l.b16 %v638
    %v1308 = vunpack.c.h.b16 %v638
    %v1309 = vunpack.c.l.b16 %v639
    %v1310 = vunpack.c.h.b16 %v639
    %v1311 = vunpack.c.l.b16 %v640
    %v1312 = vunpack.c.h.b16 %v640
    %v1313 = vunpack.c.l.b16 %v641
    %v1314 = vunpack.c.h.b16 %v641
    %v1315 = vunpack.c.l.b16 %v642
    %v1316 = vunpack.c.h.b16 %v642
    %v1317 = vunpack.c.l.b16 %v643
    %v1318 = vunpack.c.h.b16 %v643
    %v1319 = vunpack.c.l.b16 %v644
    %v1320 = vunpack.c.h.b16 %v644
    %v1321 = vunpack.c.l.b16 %v645
    %v1322 = vunpack.c.h.b16 %v645
    %v1323 = vunpack.c.l.b16 %v646
    %v1324 = vunpack.c.h.b16 %v646
    %v1325 = vunpack.c.l.b16 %v647
    %v1326 = vunpack.c.h.b16 %v647
    %v1327 = vunpack.c.l.b16 %v648
    %v1328 = vunpack.c.h.b16 %v648
    %v1329 = vunpack.c.l.b16 %v649
    %v1330 = vunpack.c.h.b16 %v649
    %v1331 = vunpack.c.l.b16 %v650
    %v1332 = vunpack.c.h.b16 %v650
    %v1333 = vunpack.c.l.b16 %v651
    %v1334 = vunpack.c.h.b16 %v651
    %v1335 = vunpack.c.l.b16 %v652
    %v1336 = vunpack.c.h.b16 %v652
    %v1337 = vunpack.c.l.b16 %v653
    %v1338 = vunpack.c.h.b16 %v653
    %v1339 = vunpack.c.l.b16 %v654
    %v1340 = vunpack.c.h.b16 %v654
    %v1341 = vunpack.c.l.b16 %v655
    %v1342 = vunpack.c.h.b16 %v655
    %v1343 = vunpack.c.l.b16 %v656
    %v1344 = vunpack.c.h.b16 %v656
    %v1345 = vunpack.c.l.b16 %v657
    %v1346 = vunpack.c.h.b16 %v657
    %v1347 = vunpack.c.l.b16 %v658
    %v1348 = vunpack.c.h.b16 %v658
    %v1349 = vunpack.c.l.b16 %v659
    %v1350 = vunpack.c.h.b16 %v659
    %v1351 = vunpack.c.l.b16 %v660
    %v1352 = vunpack.c.h.b16 %v660
    %v1353 = vunpack.c.l.b16 %v661
    %v1354 = vunpack.c.h.b16 %v661
    %v1355 = vunpack.c.l.b16 %v662
    %v1356 = vunpack.c.h.b16 %v662
    %v1357 = vunpack.c.l.b16 %v663
    %v1358 = vunpack.c.h.b16 %v663
    %v1359 = vunpack.c.l.b16 %v664
    %v1360 = vunpack.c.h.b16 %v664
    %v1361 = vunpack.c.l.b16 %v665
    %v1362 = vunpack.c.h.b16 %v665
    %v1363 = vunpack.c.l.b16 %v666
    %v1364 = vunpack.c.h.b16 %v666
    %v1365 = vunpack.c.l.b16 %v667
    %v1366 = vunpack.c.h.b16 %v667
    %v1367 = vunpack.c.l.b16 %v668
    %v1368 = vunpack.c.h.b16 %v668
    %v1369 = vunpack.c.l.b16 %v669
    %v1370 = vunpack.c.h.b16 %v669
    %v1371 = vunpack.c.l.b16 %v670
    %v1372 = vunpack.c.h.b16 %v670
    %v1373 = vunpack.c.l.b16 %v671
    %v1374 = vunpack.c.h.b16 %v671
    %v1375 = vunpack.c.l.b16 %v672
    %v1376 = vunpack.c.h.b16 %v672
    %v1377 = vunpack.c.l.b16 %v673
    %v1378 = vunpack.c.h.b16 %v673
    %v1379 = vunpack.c.l.b16 %v674
    %v1380 = vunpack.c.h.b16 %v674
    %v1381 = vunpack.c.l.b16 %v675
    %v1382 = vunpack.c.h.b16 %v675
    %v1383 = vunpack.c.l.b16 %v676
    %v1384 = vunpack.c.h.b16 %v676
    %v1385 = vunpack.c.l.b16 %v677
    %v1386 = vunpack.c.h.b16 %v677
    %v1387 = vunpack.c.l.b16 %v678
    %v1388 = vunpack.c.h.b16 %v678
    %v1389 = vunpack.c.l.b16 %v679
    %v1390 = vunpack.c.h.b16 %v679
    %v1391 = vunpack.c.l.b16 %v680
    %v1392 = vunpack.c.h.b16 %v680
    %v1393 = vunpack.c.l.b16 %v681
    %v1394 = vunpack.c.h.b16 %v681
    %v1395 = vunpack.c.l.b16 %v682
    %v1396 = vunpack.c.h.b16 %v682
    %v1397 = vunpack.c.l.b16 %v683
    %v1398 = vunpack.c.h.b16 %v683
    %v1399 = vunpack.c.l.b16 %v684
    %v1400 = vunpack.c.h.b16 %v684
    %v1401 = vunpack.c.l.b16 %v685
    %v1402 = vunpack.c.h.b16 %v685
    %v1403 = vunpack.c.l.b16 %v686
    %v1404 = vunpack.c.h.b16 %v686
    %v1405 = vunpack.c.l.b16 %v687
    %v1406 = vunpack.c.h.b16 %v687
    %v1407 = vunpack.c.l.b16 %v688
    %v1408 = vunpack.c.h.b16 %v688
    %v1409 = vunpack.c.l.b16 %v689
    %v1410 = vunpack.c.h.b16 %v689
    %v1411 = vunpack.c.l.b16 %v690
    %v1412 = vunpack.c.h.b16 %v690
    %v1413 = vunpack.c.l.b16 %v691
    %v1414 = vunpack.c.h.b16 %v691
    %v1415 = vunpack.c.l.b16 %v692
    %v1416 = vunpack.c.h.b16 %v692
    %v1417 = vunpack.c.l.b16 %v693
    %v1418 = vunpack.c.h.b16 %v693
    %v1419 = vunpack.c.l.b16 %v694
    %v1420 = vunpack.c.h.b16 %v694
    %v1421 = vunpack.c.l.b16 %v695
    %v1422 = vunpack.c.h.b16 %v695
    %v1423 = vunpack.c.l.b16 %v696
    %v1424 = vunpack.c.h.b16 %v696
    %v1425 = vunpack.c.l.b16 %v697
    %v1426 = vunpack.c.h.b16 %v697
    %v1427 = vunpack.c.l.b16 %v698
    %v1428 = vunpack.c.h.b16 %v698
    %v1429 = vunpack.c.l.b16 %v699
    %v1430 = vunpack.c.h.b16 %v699
    %v1431 = vunpack.c.l.b16 %v700
    %v1432 = vunpack.c.h.b16 %v700
    %v1433 = vunpack.c.l.b16 %v701
    %v1434 = vunpack.c.h.b16 %v701
    %v1435 = vunpack.c.l.b16 %v702
    %v1436 = vunpack.c.h.b16 %v702
    %v1437 = vunpack.c.l.b16 %v703
    %v1438 = vunpack.c.h.b16 %v703
    %v1439 = vunpack.c.l.b16 %v704
    %v1440 = vunpack.c.h.b16 %v704
    %v1441 = vunpack.c.l.b16 %v705
    %v1442 = vunpack.c.h.b16 %v705
    %v1443 = vunpack.c.l.b16 %v706
    %v1444 = vunpack.c.h.b16 %v706
    %v1445 = vunpack.c.l.b16 %v707
    %v1446 = vunpack.c.h.b16 %v707
    %v1447 = vunpack.c.l.b16 %v708
    %v1448 = vunpack.c.h.b16 %v708
    %v1449 = vunpack.c.l.b16 %v709
    %v1450 = vunpack.c.h.b16 %v709
    %v1451 = vunpack.c.l.b16 %v710
    %v1452 = vunpack.c.h.b16 %v710
    %v1453 = vunpack.c.l.b16 %v711
    %v1454 = vunpack.c.h.b16 %v711
    %v1455 = vunpack.c.l.b16 %v712
    %v1456 = vunpack.c.h.b16 %v712
    %v1457 = vunpack.c.l.b16 %v713
    %v1458 = vunpack.c.h.b16 %v713
    %v1459 = vunpack.c.l.b16 %v714
    %v1460 = vunpack.c.h.b16 %v714
    %v1461 = vunpack.c.l.b16 %v715
    %v1462 = vunpack.c.h.b16 %v715
    %v1463 = vunpack.c.l.b16 %v716
    %v1464 = vunpack.c.h.b16 %v716
    %v1465 = vunpack.c.l.b16 %v717
    %v1466 = vunpack.c.h.b16 %v717
    %v1467 = vunpack.c.l.b16 %v718
    %v1468 = vunpack.c.h.b16 %v718
    %v1469 = vunpack.c.l.b16 %v719
    %v1470 = vunpack.c.h.b16 %v719
    %v1471 = vunpack.c.l.b16 %v720
    %v1472 = vunpack.c.h.b16 %v720
    %v1473 = vunpack.c.l.b16 %v721
    %v1474 = vunpack.c.h.b16 %v721
    %v1475 = vunpack.c.l.b16 %v722
    %v1476 = vunpack.c.h.b16 %v722
    %v1477 = vunpack.c.l.b16 %v723
    %v1478 = vunpack.c.h.b16 %v723
    %v1479 = vunpack.c.l.b16 %v724
    %v1480 = vunpack.c.h.b16 %v724
    %v1481 = vunpack.c.l.b16 %v725
    %v1482 = vunpack.c.h.b16 %v725
    %v1483 = vunpack.c.l.b16 %v726
    %v1484 = vunpack.c.h.b16 %v726
    %v1485 = vunpack.c.l.b16 %v727
    %v1486 = vunpack.c.h.b16 %v727
    %v1487 = vunpack.c.l.b16 %v728
    %v1488 = vunpack.c.h.b16 %v728
    %v1489 = vunpack.c.l.b16 %v729
    %v1490 = vunpack.c.h.b16 %v729
    %v1491 = vunpack.c.l.b16 %v730
    %v1492 = vunpack.c.h.b16 %v730
    %v1493 = vunpack.c.l.b16 %v731
    %v1494 = vunpack.c.h.b16 %v731
    %v1495 = vunpack.c.l.b16 %v732
    %v1496 = vunpack.c.h.b16 %v732
    %v1497 = vunpack.c.l.b16 %v733
    %v1498 = vunpack.c.h.b16 %v733
    %v1499 = vunpack.c.l.b16 %v734
    %v1500 = vunpack.c.h.b16 %v734
    %v1501 = vunpack.c.l.b16 %v735
    %v1502 = vunpack.c.h.b16 %v735
    %v1503 = vunpack.c.l.b16 %v736
    %v1504 = vunpack.c.h.b16 %v736
    %v1505 = vunpack.c.l.b16 %v737
    %v1506 = vunpack.c.h.b16 %v737
    %v1507 = vunpack.c.l.b16 %v738
    %v1508 = vunpack.c.h.b16 %v738
    %v1509 = vunpack.c.l.b16 %v739
    %v1510 = vunpack.c.h.b16 %v739
    %v1511 = vunpack.c.l.b16 %v740
    %v1512 = vunpack.c.h.b16 %v740
    %v1513 = vunpack.c.l.b16 %v741
    %v1514 = vunpack.c.h.b16 %v741
    %v1515 = vunpack.c.l.b16 %v742
    %v1516 = vunpack.c.h.b16 %v742
    %v1517 = vunpack.c.l.b16 %v743
    %v1518 = vunpack.c.h.b16 %v743
    %v1519 = vunpack.c.l.b16 %v744
    %v1520 = vunpack.c.h.b16 %v744
    %v1521 = vunpack.c.l.b16 %v745
    %v1522 = vunpack.c.h.b16 %v745
    %v1523 = vunpack.c.l.b16 %v746
    %v1524 = vunpack.c.h.b16 %v746
    %v1525 = vunpack.c.l.b16 %v747
    %v1526 = vunpack.c.h.b16 %v747
    %v1527 = vunpack.c.l.b16 %v748
    %v1528 = vunpack.c.h.b16 %v748
    %v1529 = vunpack.c.l.b16 %v749
    %v1530 = vunpack.c.h.b16 %v749
    %v1531 = vunpack.c.l.b16 %v750
    %v1532 = vunpack.c.h.b16 %v750
    %v1533 = vunpack.c.l.b16 %v751
    %v1534 = vunpack.c.h.b16 %v751
    %v1535 = vunpack.c.l.b16 %v752
    %v1536 = vunpack.c.h.b16 %v752
    %v1537 = vunpack.c.l.b16 %v753
    %v1538 = vunpack.c.h.b16 %v753
    %v1539 = vunpack.c.l.b16 %v754
    %v1540 = vunpack.c.h.b16 %v754
    %v1541 = vunpack.c.l.b16 %v755
    %v1542 = vunpack.c.h.b16 %v755
    %v1543 = vunpack.c.l.b16 %v756
    %v1544 = vunpack.c.h.b16 %v756
    %v1545 = vunpack.c.l.b16 %v757
    %v1546 = vunpack.c.h.b16 %v757
    %v1547 = vunpack.c.l.b16 %v758
    %v1548 = vunpack.c.h.b16 %v758
    %v1549 = vunpack.c.l.b16 %v759
    %v1550 = vunpack.c.h.b16 %v759
    %v1551 = vunpack.c.l.b16 %v760
    %v1552 = vunpack.c.h.b16 %v760
    %v1553 = vunpack.c.l.b16 %v761
    %v1554 = vunpack.c.h.b16 %v761
    %v1555 = vunpack.c.l.b16 %v762
    %v1556 = vunpack.c.h.b16 %v762
    %v1557 = vunpack.c.l.b16 %v763
    %v1558 = vunpack.c.h.b16 %v763
    %v1559 = vunpack.c.l.b16 %v764
    %v1560 = vunpack.c.h.b16 %v764
    %v1561 = vunpack.c.l.b16 %v765
    %v1562 = vunpack.c.h.b16 %v765
    %v1563 = vunpack.c.l.b16 %v766
    %v1564 = vunpack.c.h.b16 %v766
    %v1565 = vpack.c.b16 %v1057, %v1053
    %v1566 = vpack.c.b16 %v1058, %v1054
    %v1567 = vpack.c.b16 %v1059, %v1055
    %v1568 = vpack.c.b16 %v1060, %v1056
    %v1569 = vpack.c.b16 %v1065, %v1061
    %v1570 = vpack.c.b16 %v1066, %v1062
    %v1571 = vpack.c.b16 %v1067, %v1063
    %v1572 = vpack.c.b16 %v1068, %v1064
    %v1573 = vpack.c.b16 %v1073, %v1069
    %v1574 = vpack.c.b16 %v1074, %v1070
    %v1575 = vpack.c.b16 %v1075, %v1071
    %v1576 = vpack.c.b16 %v1076, %v1072
    %v1577 = vpack.c.b16 %v1081, %v1077
    %v1578 = vpack.c.b16 %v1082, %v1078
    %v1579 = vpack.c.b16 %v1083, %v1079
    %v1580 = vpack.c.b16 %v1084, %v1080
    %v1581 = vpack.c.b16 %v1089, %v1085
    %v1582 = vpack.c.b16 %v1090, %v1086
    %v1583 = vpack.c.b16 %v1091, %v1087
    %v1584 = vpack.c.b16 %v1092, %v1088
    %v1585 = vpack.c.b16 %v1097, %v1093
    %v1586 = vpack.c.b16 %v1098, %v1094
    %v1587 = vpack.c.b16 %v1099, %v1095
    %v1588 = vpack.c.b16 %v1100, %v1096
    %v1589 = vpack.c.b16 %v1105, %v1101
    %v1590 = vpack.c.b16 %v1106, %v1102
    %v1591 = vpack.c.b16 %v1107, %v1103
    %v1592 = vpack.c.b16 %v1108, %v1104
    %v1593 = vpack.c.b16 %v1113, %v1109
    %v1594 = vpack.c.b16 %v1114, %v1110
    %v1595 = vpack.c.b16 %v1115, %v1111
    %v1596 = vpack.c.b16 %v1116, %v1112
    %v1597 = vpack.c.b16 %v1121, %v1117
    %v1598 = vpack.c.b16 %v1122, %v1118
    %v1599 = vpack.c.b16 %v1123, %v1119
    %v1600 = vpack.c.b16 %v1124, %v1120
    %v1601 = vpack.c.b16 %v1129, %v1125
    %v1602 = vpack.c.b16 %v1130, %v1126
    %v1603 = vpack.c.b16 %v1131, %v1127
    %v1604 = vpack.c.b16 %v1132, %v1128
    %v1605 = vpack.c.b16 %v1137, %v1133
    %v1606 = vpack.c.b16 %v1138, %v1134
    %v1607 = vpack.c.b16 %v1139, %v1135
    %v1608 = vpack.c.b16 %v1140, %v1136
    %v1609 = vpack.c.b16 %v1145, %v1141
    %v1610 = vpack.c.b16 %v1146, %v1142
    %v1611 = vpack.c.b16 %v1147, %v1143
    %v1612 = vpack.c.b16 %v1148, %v1144
    %v1613 = vpack.c.b16 %v1153, %v1149
    %v1614 = vpack.c.b16 %v1154, %v1150
    %v1615 = vpack.c.b16 %v1155, %v1151
    %v1616 = vpack.c.b16 %v1156, %v1152
    %v1617 = vpack.c.b16 %v1161, %v1157
    %v1618 = vpack.c.b16 %v1162, %v1158
    %v1619 = vpack.c.b16 %v1163, %v1159
    %v1620 = vpack.c.b16 %v1164, %v1160
    %v1621 = vpack.c.b16 %v1169, %v1165
    %v1622 = vpack.c.b16 %v1170, %v1166
    %v1623 = vpack.c.b16 %v1171, %v1167
    %v1624 = vpack.c.b16 %v1172, %v1168
    %v1625 = vpack.c.b16 %v1177, %v1173
    %v1626 = vpack.c.b16 %v1178, %v1174
    %v1627 = vpack.c.b16 %v1179, %v1175
    %v1628 = vpack.c.b16 %v1180, %v1176
    %v1629 = vpack.c.b16 %v1185, %v1181
    %v1630 = vpack.c.b16 %v1186, %v1182
    %v1631 = vpack.c.b16 %v1187, %v1183
    %v1632 = vpack.c.b16 %v1188, %v1184
    %v1633 = vpack.c.b16 %v1193, %v1189
    %v1634 = vpack.c.b16 %v1194, %v1190
    %v1635 = vpack.c.b16 %v1195, %v1191
    %v1636 = vpack.c.b16 %v1196, %v1192
    %v1637 = vpack.c.b16 %v1201, %v1197
    %v1638 = vpack.c.b16 %v1202, %v1198
    %v1639 = vpack.c.b16 %v1203, %v1199
    %v1640 = vpack.c.b16 %v1204, %v1200
    %v1641 = vpack.c.b16 %v1209, %v1205
    %v1642 = vpack.c.b16 %v1210, %v1206
    %v1643 = vpack.c.b16 %v1211, %v1207
    %v1644 = vpack.c.b16 %v1212, %v1208
    %v1645 = vpack.c.b16 %v1217, %v1213
    %v1646 = vpack.c.b16 %v1218, %v1214
    %v1647 = vpack.c.b16 %v1219, %v1215
    %v1648 = vpack.c.b16 %v1220, %v1216
    %v1649 = vpack.c.b16 %v1225, %v1221
    %v1650 = vpack.c.b16 %v1226, %v1222
    %v1651 = vpack.c.b16 %v1227, %v1223
    %v1652 = vpack.c.b16 %v1228, %v1224
    %v1653 = vpack.c.b16 %v1233, %v1229
    %v1654 = vpack.c.b16 %v1234, %v1230
    %v1655 = vpack.c.b16 %v1235, %v1231
    %v1656 = vpack.c.b16 %v1236, %v1232
    %v1657 = vpack.c.b16 %v1241, %v1237
    %v1658 = vpack.c.b16 %v1242, %v1238
    %v1659 = vpack.c.b16 %v1243, %v1239
    %v1660 = vpack.c.b16 %v1244, %v1240
    %v1661 = vpack.c.b16 %v1249, %v1245
    %v1662 = vpack.c.b16 %v1250, %v1246
    %v1663 = vpack.c.b16 %v1251, %v1247
    %v1664 = vpack.c.b16 %v1252, %v1248
    %v1665 = vpack.c.b16 %v1257, %v1253
    %v1666 = vpack.c.b16 %v1258, %v1254
    %v1667 = vpack.c.b16 %v1259, %v1255
    %v1668 = vpack.c.b16 %v1260, %v1256
    %v1669 = vpack.c.b16 %v1265, %v1261
    %v1670 = vpack.c.b16 %v1266, %v1262
    %v1671 = vpack.c.b16 %v1267, %v1263
    %v1672 = vpack.c.b16 %v1268, %v1264
    %v1673 = vpack.c.b16 %v1273, %v1269
    %v1674 = vpack.c.b16 %v1274, %v1270
    %v1675 = vpack.c.b16 %v1275, %v1271
    %v1676 = vpack.c.b16 %v1276, %v1272
    %v1677 = vpack.c.b16 %v1281, %v1277
    %v1678 = vpack.c.b16 %v1282, %v1278
    %v1679 = vpack.c.b16 %v1283, %v1279
    %v1680 = vpack.c.b16 %v1284, %v1280
    %v1681 = vpack.c.b16 %v1289, %v1285
    %v1682 = vpack.c.b16 %v1290, %v1286
    %v1683 = vpack.c.b16 %v1291, %v1287
    %v1684 = vpack.c.b16 %v1292, %v1288
    %v1685 = vpack.c.b16 %v1297, %v1293
    %v1686 = vpack.c.b16 %v1298, %v1294
    %v1687 = vpack.c.b16 %v1299, %v1295
    %v1688 = vpack.c.b16 %v1300, %v1296
    %v1689 = vpack.c.b16 %v1305, %v1301
    %v1690 = vpack.c.b16 %v1306, %v1302
    %v1691 = vpack.c.b16 %v1307, %v1303
    %v1692 = vpack.c.b16 %v1308, %v1304
    %v1693 = vpack.c.b16 %v1313, %v1309
    %v1694 = vpack.c.b16 %v1314, %v1310
    %v1695 = vpack.c.b16 %v1315, %v1311
    %v1696 = vpack.c.b16 %v1316, %v1312
    %v1697 = vpack.c.b16 %v1321, %v1317
    %v1698 = vpack.c.b16 %v1322, %v1318
    %v1699 = vpack.c.b16 %v1323, %v1319
    %v1700 = vpack.c.b16 %v1324, %v1320
    %v1701 = vpack.c.b16 %v1329, %v1325
    %v1702 = vpack.c.b16 %v1330, %v1326
    %v1703 = vpack.c.b16 %v1331, %v1327
    %v1704 = vpack.c.b16 %v1332, %v1328
    %v1705 = vpack.c.b16 %v1337, %v1333
    %v1706 = vpack.c.b16 %v1338, %v1334
    %v1707 = vpack.c.b16 %v1339, %v1335
    %v1708 = vpack.c.b16 %v1340, %v1336
    %v1709 = vpack.c.b16 %v1345, %v1341
    %v1710 = vpack.c.b16 %v1346, %v1342
    %v1711 = vpack.c.b16 %v1347, %v1343
    %v1712 = vpack.c.b16 %v1348, %v1344
    %v1713 = vpack.c.b16 %v1353, %v1349
    %v1714 = vpack.c.b16 %v1354, %v1350
    %v1715 = vpack.c.b16 %v1355, %v1351
    %v1716 = vpack.c.b16 %v1356, %v1352
    %v1717 = vpack.c.b16 %v1361, %v1357
    %v1718 = vpack.c.b16 %v1362, %v1358
    %v1719 = vpack.c.b16 %v1363, %v1359
    %v1720 = vpack.c.b16 %v1364, %v1360
    %v1721 = vpack.c.b16 %v1369, %v1365
    %v1722 = vpack.c.b16 %v1370, %v1366
    %v1723 = vpack.c.b16 %v1371, %v1367
    %v1724 = vpack.c.b16 %v1372, %v1368
    %v1725 = vpack.c.b16 %v1377, %v1373
    %v1726 = vpack.c.b16 %v1378, %v1374
    %v1727 = vpack.c.b16 %v1379, %v1375
    %v1728 = vpack.c.b16 %v1380, %v1376
    %v1729 = vpack.c.b16 %v1385, %v1381
    %v1730 = vpack.c.b16 %v1386, %v1382
    %v1731 = vpack.c.b16 %v1387, %v1383
    %v1732 = vpack.c.b16 %v1388, %v1384
    %v1733 = vpack.c.b16 %v1393, %v1389
    %v1734 = vpack.c.b16 %v1394, %v1390
    %v1735 = vpack.c.b16 %v1395, %v1391
    %v1736 = vpack.c.b16 %v1396, %v1392
    %v1737 = vpack.c.b16 %v1401, %v1397
    %v1738 = vpack.c.b16 %v1402, %v1398
    %v1739 = vpack.c.b16 %v1403, %v1399
    %v1740 = vpack.c.b16 %v1404, %v1400
    %v1741 = vpack.c.b16 %v1409, %v1405
    %v1742 = vpack.c.b16 %v1410, %v1406
    %v1743 = vpack.c.b16 %v1411, %v1407
    %v1744 = vpack.c.b16 %v1412, %v1408
    %v1745 = vpack.c.b16 %v1417, %v1413
    %v1746 = vpack.c.b16 %v1418, %v1414
    %v1747 = vpack.c.b16 %v1419, %v1415
    %v1748 = vpack.c.b16 %v1420, %v1416
    %v1749 = vpack.c.b16 %v1425, %v1421
    %v1750 = vpack.c.b16 %v1426, %v1422
    %v1751 = vpack.c.b16 %v1427, %v1423
    %v1752 = vpack.c.b16 %v1428, %v1424
    %v1753 = vpack.c.b16 %v1433, %v1429
    %v1754 = vpack.c.b16 %v1434, %v1430
    %v1755 = vpack.c.b16 %v1435, %v1431
    %v1756 = vpack.c.b16 %v1436, %v1432
    %v1757 = vpack.c.b16 %v1441, %v1437
    %v1758 = vpack.c.b16 %v1442, %v1438
    %v1759 = vpack.c.b16 %v1443, %v1439
    %v1760 = vpack.c.b16 %v1444, %v1440
    %v1761 = vpack.c.b16 %v1449, %v1445
    %v1762 = vpack.c.b16 %v1450, %v1446
    %v1763 = vpack.c.b16 %v1451, %v1447
    %v1764 = vpack.c.b16 %v1452, %v1448
    %v1765 = vpack.c.b16 %v1457, %v1453
    %v1766 = vpack.c.b16 %v1458, %v1454
    %v1767 = vpack.c.b16 %v1459, %v1455
    %v1768 = vpack.c.b16 %v1460, %v1456
    %v1769 = vpack.c.b16 %v1465, %v1461
    %v1770 = vpack.c.b16 %v1466, %v1462
    %v1771 = vpack.c.b16 %v1467, %v1463
    %v1772 = vpack.c.b16 %v1468, %v1464
    %v1773 = vpack.c.b16 %v1473, %v1469
    %v1774 = vpack.c.b16 %v1474, %v1470
    %v1775 = vpack.c.b16 %v1475, %v1471
    %v1776 = vpack.c.b16 %v1476, %v1472
    %v1777 = vpack.c.b16 %v1481, %v1477
    %v1778 = vpack.c.b16 %v1482, %v1478
    %v1779 = vpack.c.b16 %v1483, %v1479
    %v1780 = vpack.c.b16 %v1484, %v1480
    %v1781 = vpack.c.b16 %v1489, %v1485
    %v1782 = vpack.c.b16 %v1490, %v1486
    %v1783 = vpack.c.b16 %v1491, %v1487
    %v1784 = vpack.c.b16 %v1492, %v1488
    %v1785 = vpack.c.b16 %v1497, %v1493
    %v1786 = vpack.c.b16 %v1498, %v1494
    %v1787 = vpack.c.b16 %v1499, %v1495
    %v1788 = vpack.c.b16 %v1500, %v1496
    %v1789 = vpack.c.b16 %v1505, %v1501
    %v1790 = vpack.c.b16 %v1506, %v1502
    %v1791 = vpack.c.b16 %v1507, %v1503
    %v1792 = vpack.c.b16 %v1508, %v1504
    %v1793 = vpack.c.b16 %v1513, %v1509
    %v1794 = vpack.c.b16 %v1514, %v1510
    %v1795 = vpack.c.b16 %v1515, %v1511
    %v1796 = vpack.c.b16 %v1516, %v1512
    %v1797 = vpack.c.b16 %v1521, %v1517
    %v1798 = vpack.c.b16 %v1522, %v1518
    %v1799 = vpack.c.b16 %v1523, %v1519
    %v1800 = vpack.c.b16 %v1524, %v1520
    %v1801 = vpack.c.b16 %v1529, %v1525
    %v1802 = vpack.c.b16 %v1530, %v1526
    %v1803 = vpack.c.b16 %v1531, %v1527
    %v1804 = vpack.c.b16 %v1532, %v1528
    %v1805 = vpack.c.b16 %v1537, %v1533
    %v1806 = vpack.c.b16 %v1538, %v1534
    %v1807 = vpack.c.b16 %v1539, %v1535
    %v1808 = vpack.c.b16 %v1540, %v1536
    %v1809 = vpack.c.b16 %v1545, %v1541
    %v1810 = vpack.c.b16 %v1546, %v1542
    %v1811 = vpack.c.b16 %v1547, %v1543
    %v1812 = vpack.c.b16 %v1548, %v1544
    %v1813 = vpack.c.b16 %v1553, %v1549
    %v1814 = vpack.c.b16 %v1554, %v1550
    %v1815 = vpack.c.b16 %v1555, %v1551
    %v1816 = vpack.c.b16 %v1556, %v1552
    %v1817 = vpack.c.b16 %v1561, %v1557
    %v1818 = vpack.c.b16 %v1562, %v1558
    %v1819 = vpack.c.b16 %v1563, %v1559
    %v1820 = vpack.c.b16 %v1564, %v1560
    %2077 = vmatprep.subr.bf16.mxu0 %v1566
    %2078 = vmatpush1.bf16.msra.mxu0 %v1565
    %2079 = vmatprep.subr.bf16.mxu0 %v1570
    %2080 = vmatpush1.bf16.msra.mxu0 %v1569
    %2081 = vmatprep.subr.bf16.mxu0 %v1574
    %2082 = vmatpush1.bf16.msra.mxu0 %v1573
    %2083 = vmatprep.subr.bf16.mxu0 %v1578
    %2084 = vmatpush1.bf16.msra.mxu0 %v1577
    %2085 = vmatprep.subr.bf16.mxu0 %v1582
    %2086 = vmatpush1.bf16.msra.mxu0 %v1581
    %2087 = vmatprep.subr.bf16.mxu0 %v1586
    %2088 = vmatpush1.bf16.msra.mxu0 %v1585
    %2089 = vmatprep.subr.bf16.mxu0 %v1590
    %2090 = vmatpush1.bf16.msra.mxu0 %v1589
    %2091 = vmatprep.subr.bf16.mxu0 %v1594
    %2092 = vmatpush1.bf16.msra.mxu0 %v1593
    %2093 = vmatprep.subr.bf16.mxu0 %v1598
    %2094 = vmatpush1.bf16.msra.mxu0 %v1597
    %2095 = vmatprep.subr.bf16.mxu0 %v1602
    %2096 = vmatpush1.bf16.msra.mxu0 %v1601
    %2097 = vmatprep.subr.bf16.mxu0 %v1606
    %2098 = vmatpush1.bf16.msra.mxu0 %v1605
    %2099 = vmatprep.subr.bf16.mxu0 %v1610
    %2100 = vmatpush1.bf16.msra.mxu0 %v1609
    %2101 = vmatprep.subr.bf16.mxu0 %v1614
    %2102 = vmatpush1.bf16.msra.mxu0 %v1613
    %2103 = vmatprep.subr.bf16.mxu0 %v1618
    %2104 = vmatpush1.bf16.msra.mxu0 %v1617
    %2105 = vmatprep.subr.bf16.mxu0 %v1622
    %2106 = vmatpush1.bf16.msra.mxu0 %v1621
    %2107 = vmatprep.subr.bf16.mxu0 %v1626
    %2108 = vmatpush1.bf16.msra.mxu0 %v1625
    %2109 = vmatprep.mubr.bf16.mxu0 %v768
    %2110 = vmatmul.mubr.bf16.gmra.mrb[0].mxu0 %v767
    %v2111 = vpop.f32.mrb[0].mxu0
    %v2112 = vadd.f32 %v780, %v2111
    %v2113 = vpop.f32.mrb[0].mxu0
    %v2114 = vadd.f32 %v784, %v2113
    %v2115 = vpop.f32.mrb[0].mxu0
    %v2116 = vpop.f32.mrb[0].mxu0
    %2117 = vdwg.mxu0
    %2118 = vmatprep.subr.bf16.mxu0 %v1630
    %2119 = vmatpush1.bf16.msra.mxu0 %v1629
    %2120 = vmatprep.subr.bf16.mxu0 %v1634
    %2121 = vmatpush1.bf16.msra.mxu0 %v1633
    %2122 = vmatprep.subr.bf16.mxu0 %v1638
    %2123 = vmatpush1.bf16.msra.mxu0 %v1637
    %2124 = vmatprep.subr.bf16.mxu0 %v1642
    %2125 = vmatpush1.bf16.msra.mxu0 %v1641
    %2126 = vmatprep.subr.bf16.mxu0 %v1646
    %2127 = vmatpush1.bf16.msra.mxu0 %v1645
    %2128 = vmatprep.subr.bf16.mxu0 %v1650
    %2129 = vmatpush1.bf16.msra.mxu0 %v1649
    %2130 = vmatprep.subr.bf16.mxu0 %v1654
    %2131 = vmatpush1.bf16.msra.mxu0 %v1653
    %2132 = vmatprep.subr.bf16.mxu0 %v1658
    %2133 = vmatpush1.bf16.msra.mxu0 %v1657
    %2134 = vmatprep.subr.bf16.mxu0 %v1662
    %2135 = vmatpush1.bf16.msra.mxu0 %v1661
    %2136 = vmatprep.subr.bf16.mxu0 %v1666
    %2137 = vmatpush1.bf16.msra.mxu0 %v1665
    %2138 = vmatprep.subr.bf16.mxu0 %v1670
    %2139 = vmatpush1.bf16.msra.mxu0 %v1669
    %2140 = vmatprep.subr.bf16.mxu0 %v1674
    %2141 = vmatpush1.bf16.msra.mxu0 %v1673
    %2142 = vmatprep.subr.bf16.mxu0 %v1678
    %2143 = vmatpush1.bf16.msra.mxu0 %v1677
    %2144 = vmatprep.subr.bf16.mxu0 %v1682
    %2145 = vmatpush1.bf16.msra.mxu0 %v1681
    %2146 = vmatprep.subr.bf16.mxu0 %v1686
    %2147 = vmatpush1.bf16.msra.mxu0 %v1685
    %2148 = vmatprep.subr.bf16.mxu0 %v1690
    %2149 = vmatpush1.bf16.msra.mxu0 %v1689
    %2150 = vmatprep.mubr.bf16.mxu0 %v770
    %2151 = vmatmul.mubr.bf16.gmra.mrb[0].mxu0 %v769
    %v2152 = vpop.f32.mrb[0].mxu0
    %v2153 = vadd.f32 %v2112, %v2152
    %v2154 = vpop.f32.mrb[0].mxu0
    %v2155 = vadd.f32 %v2114, %v2154
    %v2156 = vpop.f32.mrb[0].mxu0
    %v2157 = vpop.f32.mrb[0].mxu0
    %2158 = vdwg.mxu0
    %2159 = vmatprep.subr.bf16.mxu0 %v1694
    %2160 = vmatpush1.bf16.msra.mxu0 %v1693
    %2161 = vmatprep.subr.bf16.mxu0 %v1698
    %2162 = vmatpush1.bf16.msra.mxu0 %v1697
    %2163 = vmatprep.subr.bf16.mxu0 %v1702
    %2164 = vmatpush1.bf16.msra.mxu0 %v1701
    %2165 = vmatprep.subr.bf16.mxu0 %v1706
    %2166 = vmatpush1.bf16.msra.mxu0 %v1705
    %2167 = vmatprep.subr.bf16.mxu0 %v1710
    %2168 = vmatpush1.bf16.msra.mxu0 %v1709
    %2169 = vmatprep.subr.bf16.mxu0 %v1714
    %2170 = vmatpush1.bf16.msra.mxu0 %v1713
    %2171 = vmatprep.subr.bf16.mxu0 %v1718
    %2172 = vmatpush1.bf16.msra.mxu0 %v1717
    %2173 = vmatprep.subr.bf16.mxu0 %v1722
    %2174 = vmatpush1.bf16.msra.mxu0 %v1721
    %2175 = vmatprep.subr.bf16.mxu0 %v1726
    %2176 = vmatpush1.bf16.msra.mxu0 %v1725
    %2177 = vmatprep.subr.bf16.mxu0 %v1730
    %2178 = vmatpush1.bf16.msra.mxu0 %v1729
    %2179 = vmatprep.subr.bf16.mxu0 %v1734
    %2180 = vmatpush1.bf16.msra.mxu0 %v1733
    %2181 = vmatprep.subr.bf16.mxu0 %v1738
    %2182 = vmatpush1.bf16.msra.mxu0 %v1737
    %2183 = vmatprep.subr.bf16.mxu0 %v1742
    %2184 = vmatpush1.bf16.msra.mxu0 %v1741
    %2185 = vmatprep.subr.bf16.mxu0 %v1746
    %2186 = vmatpush1.bf16.msra.mxu0 %v1745
    %2187 = vmatprep.subr.bf16.mxu0 %v1750
    %2188 = vmatpush1.bf16.msra.mxu0 %v1749
    %2189 = vmatprep.subr.bf16.mxu0 %v1754
    %2190 = vmatpush1.bf16.msra.mxu0 %v1753
    %2191 = vmatprep.mubr.bf16.mxu0 %v772
    %2192 = vmatmul.mubr.bf16.gmra.mrb[0].mxu0 %v771
    %v2193 = vpop.f32.mrb[0].mxu0
    %v2194 = vadd.f32 %v2153, %v2193
    %v2195 = vpop.f32.mrb[0].mxu0
    %v2196 = vadd.f32 %v2155, %v2195
    %v2197 = vpop.f32.mrb[0].mxu0
    %v2198 = vpop.f32.mrb[0].mxu0
    %2199 = vdwg.mxu0
    %2200 = vmatprep.subr.bf16.mxu0 %v1758
    %2201 = vmatpush1.bf16.msra.mxu0 %v1757
    %2202 = vmatprep.subr.bf16.mxu0 %v1762
    %2203 = vmatpush1.bf16.msra.mxu0 %v1761
    %2204 = vmatprep.subr.bf16.mxu0 %v1766
    %2205 = vmatpush1.bf16.msra.mxu0 %v1765
    %2206 = vmatprep.subr.bf16.mxu0 %v1770
    %2207 = vmatpush1.bf16.msra.mxu0 %v1769
    %2208 = vmatprep.subr.bf16.mxu0 %v1774
    %2209 = vmatpush1.bf16.msra.mxu0 %v1773
    %2210 = vmatprep.subr.bf16.mxu0 %v1778
    %2211 = vmatpush1.bf16.msra.mxu0 %v1777
    %2212 = vmatprep.subr.bf16.mxu0 %v1782
    %2213 = vmatpush1.bf16.msra.mxu0 %v1781
    %2214 = vmatprep.subr.bf16.mxu0 %v1786
    %2215 = vmatpush1.bf16.msra.mxu0 %v1785
    %2216 = vmatprep.subr.bf16.mxu0 %v1790
    %2217 = vmatpush1.bf16.msra.mxu0 %v1789
    %2218 = vmatprep.subr.bf16.mxu0 %v1794
    %2219 = vmatpush1.bf16.msra.mxu0 %v1793
    %2220 = vmatprep.subr.bf16.mxu0 %v1798
    %2221 = vmatpush1.bf16.msra.mxu0 %v1797
    %2222 = vmatprep.subr.bf16.mxu0 %v1802
    %2223 = vmatpush1.bf16.msra.mxu0 %v1801
    %2224 = vmatprep.subr.bf16.mxu0 %v1806
    %2225 = vmatpush1.bf16.msra.mxu0 %v1805
    %2226 = vmatprep.subr.bf16.mxu0 %v1810
    %2227 = vmatpush1.bf16.msra.mxu0 %v1809
    %2228 = vmatprep.subr.bf16.mxu0 %v1814
    %2229 = vmatpush1.bf16.msra.mxu0 %v1813
    %2230 = vmatprep.subr.bf16.mxu0 %v1818
    %2231 = vmatpush1.bf16.msra.mxu0 %v1817
    %2232 = vmatprep.mubr.bf16.mxu0 %v774
    %2233 = vmatmul.mubr.bf16.gmra.mrb[0].mxu0 %v773
    %v2234 = vpop.f32.mrb[0].mxu0
    %v2235 = vadd.f32 %v2194, %v2234
    %v2236 = vpop.f32.mrb[0].mxu0
    %v2237 = vadd.f32 %v2196, %v2236
    %v2238 = vpop.f32.mrb[0].mxu0
    %v2239 = vpop.f32.mrb[0].mxu0
    %2240 = vdwg.mxu0
    %2241 = vmatprep.subr.bf16.mxu0 %v1568
    %2242 = vmatpush1.bf16.msra.mxu0 %v1567
    %2243 = vmatprep.subr.bf16.mxu0 %v1572
    %2244 = vmatpush1.bf16.msra.mxu0 %v1571
    %2245 = vmatprep.subr.bf16.mxu0 %v1576
    %2246 = vmatpush1.bf16.msra.mxu0 %v1575
    %2247 = vmatprep.subr.bf16.mxu0 %v1580
    %2248 = vmatpush1.bf16.msra.mxu0 %v1579
    %2249 = vmatprep.subr.bf16.mxu0 %v1584
    %2250 = vmatpush1.bf16.msra.mxu0 %v1583
    %2251 = vmatprep.subr.bf16.mxu0 %v1588
    %2252 = vmatpush1.bf16.msra.mxu0 %v1587
    %2253 = vmatprep.subr.bf16.mxu0 %v1592
    %2254 = vmatpush1.bf16.msra.mxu0 %v1591
    %2255 = vmatprep.subr.bf16.mxu0 %v1596
    %2256 = vmatpush1.bf16.msra.mxu0 %v1595
    %2257 = vmatprep.subr.bf16.mxu0 %v1600
    %2258 = vmatpush1.bf16.msra.mxu0 %v1599
    %2259 = vmatprep.subr.bf16.mxu0 %v1604
    %2260 = vmatpush1.bf16.msra.mxu0 %v1603
    %2261 = vmatprep.subr.bf16.mxu0 %v1608
    %2262 = vmatpush1.bf16.msra.mxu0 %v1607
    %2263 = vmatprep.subr.bf16.mxu0 %v1612
    %2264 = vmatpush1.bf16.msra.mxu0 %v1611
    %2265 = vmatprep.subr.bf16.mxu0 %v1616
    %2266 = vmatpush1.bf16.msra.mxu0 %v1615
    %2267 = vmatprep.subr.bf16.mxu0 %v1620
    %2268 = vmatpush1.bf16.msra.mxu0 %v1619
    %2269 = vmatprep.subr.bf16.mxu0 %v1624
    %2270 = vmatpush1.bf16.msra.mxu0 %v1623
    %2271 = vmatprep.subr.bf16.mxu0 %v1628
    %2272 = vmatpush1.bf16.msra.mxu0 %v1627
    %2273 = vmatprep.mubr.bf16.mxu0 %v768
    %2274 = vmatmul.mubr.bf16.gmra.mrb[0].mxu0 %v767
    %v2275 = vpop.f32.mrb[0].mxu0
    %v2276 = vadd.f32 %v788, %v2275
    %v2277 = vpop.f32.mrb[0].mxu0
    %v2278 = vadd.f32 %v792, %v2277
    %v2279 = vpop.f32.mrb[0].mxu0
    %v2280 = vpop.f32.mrb[0].mxu0
    %2281 = vdwg.mxu0
    %2282 = vmatprep.subr.bf16.mxu0 %v1632
    %2283 = vmatpush1.bf16.msra.mxu0 %v1631
    %2284 = vmatprep.subr.bf16.mxu0 %v1636
    %2285 = vmatpush1.bf16.msra.mxu0 %v1635
    %2286 = vmatprep.subr.bf16.mxu0 %v1640
    %2287 = vmatpush1.bf16.msra.mxu0 %v1639
    %2288 = vmatprep.subr.bf16.mxu0 %v1644
    %2289 = vmatpush1.bf16.msra.mxu0 %v1643
    %2290 = vmatprep.subr.bf16.mxu0 %v1648
    %2291 = vmatpush1.bf16.msra.mxu0 %v1647
    %2292 = vmatprep.subr.bf16.mxu0 %v1652
    %2293 = vmatpush1.bf16.msra.mxu0 %v1651
    %2294 = vmatprep.subr.bf16.mxu0 %v1656
    %2295 = vmatpush1.bf16.msra.mxu0 %v1655
    %2296 = vmatprep.subr.bf16.mxu0 %v1660
    %2297 = vmatpush1.bf16.msra.mxu0 %v1659
    %2298 = vmatprep.subr.bf16.mxu0 %v1664
    %2299 = vmatpush1.bf16.msra.mxu0 %v1663
    %2300 = vmatprep.subr.bf16.mxu0 %v1668
    %2301 = vmatpush1.bf16.msra.mxu0 %v1667
    %2302 = vmatprep.subr.bf16.mxu0 %v1672
    %2303 = vmatpush1.bf16.msra.mxu0 %v1671
    %2304 = vmatprep.subr.bf16.mxu0 %v1676
    %2305 = vmatpush1.bf16.msra.mxu0 %v1675
    %2306 = vmatprep.subr.bf16.mxu0 %v1680
    %2307 = vmatpush1.bf16.msra.mxu0 %v1679
    %2308 = vmatprep.subr.bf16.mxu0 %v1684
    %2309 = vmatpush1.bf16.msra.mxu0 %v1683
    %2310 = vmatprep.subr.bf16.mxu0 %v1688
    %2311 = vmatpush1.bf16.msra.mxu0 %v1687
    %2312 = vmatprep.subr.bf16.mxu0 %v1692
    %2313 = vmatpush1.bf16.msra.mxu0 %v1691
    %2314 = vmatprep.mubr.bf16.mxu0 %v770
    %2315 = vmatmul.mubr.bf16.gmra.mrb[0].mxu0 %v769
    %v2316 = vpop.f32.mrb[0].mxu0
    %v2317 = vadd.f32 %v2276, %v2316
    %v2318 = vpop.f32.mrb[0].mxu0
    %v2319 = vadd.f32 %v2278, %v2318
    %v2320 = vpop.f32.mrb[0].mxu0
    %v2321 = vpop.f32.mrb[0].mxu0
    %2322 = vdwg.mxu0
    %2323 = vmatprep.subr.bf16.mxu0 %v1696
    %2324 = vmatpush1.bf16.msra.mxu0 %v1695
    %2325 = vmatprep.subr.bf16.mxu0 %v1700
    %2326 = vmatpush1.bf16.msra.mxu0 %v1699
    %2327 = vmatprep.subr.bf16.mxu0 %v1704
    %2328 = vmatpush1.bf16.msra.mxu0 %v1703
    %2329 = vmatprep.subr.bf16.mxu0 %v1708
    %2330 = vmatpush1.bf16.msra.mxu0 %v1707
    %2331 = vmatprep.subr.bf16.mxu0 %v1712
    %2332 = vmatpush1.bf16.msra.mxu0 %v1711
    %2333 = vmatprep.subr.bf16.mxu0 %v1716
    %2334 = vmatpush1.bf16.msra.mxu0 %v1715
    %2335 = vmatprep.subr.bf16.mxu0 %v1720
    %2336 = vmatpush1.bf16.msra.mxu0 %v1719
    %2337 = vmatprep.subr.bf16.mxu0 %v1724
    %2338 = vmatpush1.bf16.msra.mxu0 %v1723
    %2339 = vmatprep.subr.bf16.mxu0 %v1728
    %2340 = vmatpush1.bf16.msra.mxu0 %v1727
    %2341 = vmatprep.subr.bf16.mxu0 %v1732
    %2342 = vmatpush1.bf16.msra.mxu0 %v1731
    %2343 = vmatprep.subr.bf16.mxu0 %v1736
    %2344 = vmatpush1.bf16.msra.mxu0 %v1735
    %2345 = vmatprep.subr.bf16.mxu0 %v1740
    %2346 = vmatpush1.bf16.msra.mxu0 %v1739
    %2347 = vmatprep.subr.bf16.mxu0 %v1744
    %2348 = vmatpush1.bf16.msra.mxu0 %v1743
    %2349 = vmatprep.subr.bf16.mxu0 %v1748
    %2350 = vmatpush1.bf16.msra.mxu0 %v1747
    %2351 = vmatprep.subr.bf16.mxu0 %v1752
    %2352 = vmatpush1.bf16.msra.mxu0 %v1751
    %2353 = vmatprep.subr.bf16.mxu0 %v1756
    %2354 = vmatpush1.bf16.msra.mxu0 %v1755
    %2355 = vmatprep.mubr.bf16.mxu0 %v772
    %2356 = vmatmul.mubr.bf16.gmra.mrb[0].mxu0 %v771
    %v2357 = vpop.f32.mrb[0].mxu0
    %v2358 = vadd.f32 %v2317, %v2357
    %v2359 = vpop.f32.mrb[0].mxu0
    %v2360 = vadd.f32 %v2319, %v2359
    %v2361 = vpop.f32.mrb[0].mxu0
    %v2362 = vpop.f32.mrb[0].mxu0
    %2363 = vdwg.mxu0
    %2364 = vmatprep.subr.bf16.mxu0 %v1760
    %2365 = vmatpush1.bf16.msra.mxu0 %v1759
    %2366 = vmatprep.subr.bf16.mxu0 %v1764
    %2367 = vmatpush1.bf16.msra.mxu0 %v1763
    %2368 = vmatprep.subr.bf16.mxu0 %v1768
    %2369 = vmatpush1.bf16.msra.mxu0 %v1767
    %2370 = vmatprep.subr.bf16.mxu0 %v1772
    %2371 = vmatpush1.bf16.msra.mxu0 %v1771
    %2372 = vmatprep.subr.bf16.mxu0 %v1776
    %2373 = vmatpush1.bf16.msra.mxu0 %v1775
    %2374 = vmatprep.subr.bf16.mxu0 %v1780
    %2375 = vmatpush1.bf16.msra.mxu0 %v1779
    %2376 = vmatprep.subr.bf16.mxu0 %v1784
    %2377 = vmatpush1.bf16.msra.mxu0 %v1783
    %2378 = vmatprep.subr.bf16.mxu0 %v1788
    %2379 = vmatpush1.bf16.msra.mxu0 %v1787
    %2380 = vmatprep.subr.bf16.mxu0 %v1792
    %2381 = vmatpush1.bf16.msra.mxu0 %v1791
    %2382 = vmatprep.subr.bf16.mxu0 %v1796
    %2383 = vmatpush1.bf16.msra.mxu0 %v1795
    %2384 = vmatprep.subr.bf16.mxu0 %v1800
    %2385 = vmatpush1.bf16.msra.mxu0 %v1799
    %2386 = vmatprep.subr.bf16.mxu0 %v1804
    %2387 = vmatpush1.bf16.msra.mxu0 %v1803
    %2388 = vmatprep.subr.bf16.mxu0 %v1808
    %2389 = vmatpush1.bf16.msra.mxu0 %v1807
    %2390 = vmatprep.subr.bf16.mxu0 %v1812
    %2391 = vmatpush1.bf16.msra.mxu0 %v1811
    %2392 = vmatprep.subr.bf16.mxu0 %v1816
    %2393 = vmatpush1.bf16.msra.mxu0 %v1815
    %2394 = vmatprep.subr.bf16.mxu0 %v1820
    %2395 = vmatpush1.bf16.msra.mxu0 %v1819
    %2396 = vmatprep.mubr.bf16.mxu0 %v774
    %2397 = vmatmul.mubr.bf16.gmra.mrb[0].mxu0 %v773
    %v2398 = vpop.f32.mrb[0].mxu0
    %v2399 = vadd.f32 %v2358, %v2398
    %v2400 = vpop.f32.mrb[0].mxu0
    %v2401 = vadd.f32 %v2360, %v2400
    %v2402 = vpop.f32.mrb[0].mxu0
    %v2403 = vpop.f32.mrb[0].mxu0
    %2404 = vdwg.mxu0
    %v2405 = vmax.f32 %v2235, 0.0
    %v2406 = vmax.f32 %v2237, 0.0
    %v2407 = vmax.f32 %v2399, 0.0
    %v2408 = vmax.f32 %v2401, 0.0
    %v2409 = vld [vmem:[#allocation7] sm:$0xff]
    %v2410 = vld [vmem:[#allocation7 + $0x8] sm:$0xff]
    %v2411 = vld [vmem:[#allocation7 + $0x10] sm:$0xff]
    %v2412 = vld [vmem:[#allocation7 + $0x18] sm:$0xff]
    %v2413 = vld [vmem:[#allocation7 + $0x20] sm:$0xff]
    %v2414 = vld [vmem:[#allocation7 + $0x28] sm:$0xff]
    %v2415 = vld [vmem:[#allocation7 + $0x30] sm:$0xff]
    %v2416 = vld [vmem:[#allocation7 + $0x38] sm:$0xff]
    %v2417 = vld [vmem:[#allocation7 + $0x40] sm:$0xff]
    %v2418 = vld [vmem:[#allocation7 + $0x48] sm:$0xff]
    %v2419 = vld [vmem:[#allocation7 + $0x50] sm:$0xff]
    %v2420 = vld [vmem:[#allocation7 + $0x58] sm:$0xff]
    %v2421 = vld [vmem:[#allocation7 + $0x60] sm:$0xff]
    %v2422 = vld [vmem:[#allocation7 + $0x68] sm:$0xff]
    %v2423 = vld [vmem:[#allocation7 + $0x70] sm:$0xff]
    %v2424 = vld [vmem:[#allocation7 + $0x78] sm:$0xff]
    %v2425 = vld [vmem:[#allocation7 + $0x80] sm:$0xff]
    %v2426 = vld [vmem:[#allocation7 + $0x88] sm:$0xff]
    %v2427 = vld [vmem:[#allocation7 + $0x90] sm:$0xff]
    %v2428 = vld [vmem:[#allocation7 + $0x98] sm:$0xff]
    %v2429 = vld [vmem:[#allocation7 + $0xa0] sm:$0xff]
    %v2430 = vld [vmem:[#allocation7 + $0xa8] sm:$0xff]
    %v2431 = vld [vmem:[#allocation7 + $0xb0] sm:$0xff]
    %v2432 = vld [vmem:[#allocation7 + $0xb8] sm:$0xff]
    %v2433 = vld [vmem:[#allocation7 + $0xc0] sm:$0xff]
    %v2434 = vld [vmem:[#allocation7 + $0xc8] sm:$0xff]
    %v2435 = vld [vmem:[#allocation7 + $0xd0] sm:$0xff]
    %v2436 = vld [vmem:[#allocation7 + $0xd8] sm:$0xff]
    %v2437 = vld [vmem:[#allocation7 + $0xe0] sm:$0xff]
    %v2438 = vld [vmem:[#allocation7 + $0xe8] sm:$0xff]
    %v2439 = vld [vmem:[#allocation7 + $0xf0] sm:$0xff]
    %v2440 = vld [vmem:[#allocation7 + $0xf8] sm:$0xff]
    %v2441 = vld [vmem:[#allocation7 + $0x100] sm:$0xff]
    %v2442 = vld [vmem:[#allocation7 + $0x108] sm:$0xff]
    %v2443 = vld [vmem:[#allocation7 + $0x110] sm:$0xff]
    %v2444 = vld [vmem:[#allocation7 + $0x118] sm:$0xff]
    %v2445 = vld [vmem:[#allocation7 + $0x120] sm:$0xff]
    %v2446 = vld [vmem:[#allocation7 + $0x128] sm:$0xff]
    %v2447 = vld [vmem:[#allocation7 + $0x130] sm:$0xff]
    %v2448 = vld [vmem:[#allocation7 + $0x138] sm:$0xff]
    %v2449 = vld [vmem:[#allocation7 + $0x140] sm:$0xff]
    %v2450 = vld [vmem:[#allocation7 + $0x148] sm:$0xff]
    %v2451 = vld [vmem:[#allocation7 + $0x150] sm:$0xff]
    %v2452 = vld [vmem:[#allocation7 + $0x158] sm:$0xff]
    %v2453 = vld [vmem:[#allocation7 + $0x160] sm:$0xff]
    %v2454 = vld [vmem:[#allocation7 + $0x168] sm:$0xff]
    %v2455 = vld [vmem:[#allocation7 + $0x170] sm:$0xff]
    %v2456 = vld [vmem:[#allocation7 + $0x178] sm:$0xff]
    %v2457 = vld [vmem:[#allocation7 + $0x180] sm:$0xff]
    %v2458 = vld [vmem:[#allocation7 + $0x188] sm:$0xff]
    %v2459 = vld [vmem:[#allocation7 + $0x190] sm:$0xff]
    %v2460 = vld [vmem:[#allocation7 + $0x198] sm:$0xff]
    %v2461 = vld [vmem:[#allocation7 + $0x1a0] sm:$0xff]
    %v2462 = vld [vmem:[#allocation7 + $0x1a8] sm:$0xff]
    %v2463 = vld [vmem:[#allocation7 + $0x1b0] sm:$0xff]
    %v2464 = vld [vmem:[#allocation7 + $0x1b8] sm:$0xff]
    %v2465 = vld [vmem:[#allocation7 + $0x1c0] sm:$0xff]
    %v2466 = vld [vmem:[#allocation7 + $0x1c8] sm:$0xff]
    %v2467 = vld [vmem:[#allocation7 + $0x1d0] sm:$0xff]
    %v2468 = vld [vmem:[#allocation7 + $0x1d8] sm:$0xff]
    %v2469 = vld [vmem:[#allocation7 + $0x1e0] sm:$0xff]
    %v2470 = vld [vmem:[#allocation7 + $0x1e8] sm:$0xff]
    %v2471 = vld [vmem:[#allocation7 + $0x1f0] sm:$0xff]
    %v2472 = vld [vmem:[#allocation7 + $0x1f8] sm:$0xff]
    %v2473 = vpack.c.bf16 %v2405, %v2405
    %v2474 = vpack.c.bf16 %v2406, %v2406
    %v2475 = vpack.c.bf16 %v2407, %v2407
    %v2476 = vpack.c.bf16 %v2408, %v2408
    %v2477 = vld [vmem:[%s7] sm:$0x3]
    %v2479 = vlaneseq
    %v2480 = vshrl.u32 %v2479, 7
    %v2481 = vsub.s32 0, %v2480
    %v2482 = vrot.slane %v2477, %v2481
    %v2483 = vlaneseq
    %v2484 = vshrl.u32 %v2483, 7
    %v2485 = vsub.s32 1, %v2484
    %v2486 = vrot.slane %v2477, %v2485
    %v2553 = vunpack.c.l.b16 %v2409
    %v2554 = vunpack.c.h.b16 %v2409
    %v2555 = vunpack.c.l.b16 %v2410
    %v2556 = vunpack.c.h.b16 %v2410
    %v2557 = vunpack.c.l.b16 %v2411
    %v2558 = vunpack.c.h.b16 %v2411
    %v2559 = vunpack.c.l.b16 %v2412
    %v2560 = vunpack.c.h.b16 %v2412
    %v2561 = vunpack.c.l.b16 %v2413
    %v2562 = vunpack.c.h.b16 %v2413
    %v2563 = vunpack.c.l.b16 %v2414
    %v2564 = vunpack.c.h.b16 %v2414
    %v2565 = vunpack.c.l.b16 %v2415
    %v2566 = vunpack.c.h.b16 %v2415
    %v2567 = vunpack.c.l.b16 %v2416
    %v2568 = vunpack.c.h.b16 %v2416
    %v2569 = vunpack.c.l.b16 %v2417
    %v2570 = vunpack.c.h.b16 %v2417
    %v2571 = vunpack.c.l.b16 %v2418
    %v2572 = vunpack.c.h.b16 %v2418
    %v2573 = vunpack.c.l.b16 %v2419
    %v2574 = vunpack.c.h.b16 %v2419
    %v2575 = vunpack.c.l.b16 %v2420
    %v2576 = vunpack.c.h.b16 %v2420
    %v2577 = vunpack.c.l.b16 %v2421
    %v2578 = vunpack.c.h.b16 %v2421
    %v2579 = vunpack.c.l.b16 %v2422
    %v2580 = vunpack.c.h.b16 %v2422
    %v2581 = vunpack.c.l.b16 %v2423
    %v2582 = vunpack.c.h.b16 %v2423
    %v2583 = vunpack.c.l.b16 %v2424
    %v2584 = vunpack.c.h.b16 %v2424
    %v2585 = vunpack.c.l.b16 %v2425
    %v2586 = vunpack.c.h.b16 %v2425
    %v2587 = vunpack.c.l.b16 %v2426
    %v2588 = vunpack.c.h.b16 %v2426
    %v2589 = vunpack.c.l.b16 %v2427
    %v2590 = vunpack.c.h.b16 %v2427
    %v2591 = vunpack.c.l.b16 %v2428
    %v2592 = vunpack.c.h.b16 %v2428
    %v2593 = vunpack.c.l.b16 %v2429
    %v2594 = vunpack.c.h.b16 %v2429
    %v2595 = vunpack.c.l.b16 %v2430
    %v2596 = vunpack.c.h.b16 %v2430
    %v2597 = vunpack.c.l.b16 %v2431
    %v2598 = vunpack.c.h.b16 %v2431
    %v2599 = vunpack.c.l.b16 %v2432
    %v2600 = vunpack.c.h.b16 %v2432
    %v2601 = vunpack.c.l.b16 %v2433
    %v2602 = vunpack.c.h.b16 %v2433
    %v2603 = vunpack.c.l.b16 %v2434
    %v2604 = vunpack.c.h.b16 %v2434
    %v2605 = vunpack.c.l.b16 %v2435
    %v2606 = vunpack.c.h.b16 %v2435
    %v2607 = vunpack.c.l.b16 %v2436
    %v2608 = vunpack.c.h.b16 %v2436
    %v2609 = vunpack.c.l.b16 %v2437
    %v2610 = vunpack.c.h.b16 %v2437
    %v2611 = vunpack.c.l.b16 %v2438
    %v2612 = vunpack.c.h.b16 %v2438
    %v2613 = vunpack.c.l.b16 %v2439
    %v2614 = vunpack.c.h.b16 %v2439
    %v2615 = vunpack.c.l.b16 %v2440
    %v2616 = vunpack.c.h.b16 %v2440
    %v2617 = vunpack.c.l.b16 %v2441
    %v2618 = vunpack.c.h.b16 %v2441
    %v2619 = vunpack.c.l.b16 %v2442
    %v2620 = vunpack.c.h.b16 %v2442
    %v2621 = vunpack.c.l.b16 %v2443
    %v2622 = vunpack.c.h.b16 %v2443
    %v2623 = vunpack.c.l.b16 %v2444
    %v2624 = vunpack.c.h.b16 %v2444
    %v2625 = vunpack.c.l.b16 %v2445
    %v2626 = vunpack.c.h.b16 %v2445
    %v2627 = vunpack.c.l.b16 %v2446
    %v2628 = vunpack.c.h.b16 %v2446
    %v2629 = vunpack.c.l.b16 %v2447
    %v2630 = vunpack.c.h.b16 %v2447
    %v2631 = vunpack.c.l.b16 %v2448
    %v2632 = vunpack.c.h.b16 %v2448
    %v2633 = vunpack.c.l.b16 %v2449
    %v2634 = vunpack.c.h.b16 %v2449
    %v2635 = vunpack.c.l.b16 %v2450
    %v2636 = vunpack.c.h.b16 %v2450
    %v2637 = vunpack.c.l.b16 %v2451
    %v2638 = vunpack.c.h.b16 %v2451
    %v2639 = vunpack.c.l.b16 %v2452
    %v2640 = vunpack.c.h.b16 %v2452
    %v2641 = vunpack.c.l.b16 %v2453
    %v2642 = vunpack.c.h.b16 %v2453
    %v2643 = vunpack.c.l.b16 %v2454
    %v2644 = vunpack.c.h.b16 %v2454
    %v2645 = vunpack.c.l.b16 %v2455
    %v2646 = vunpack.c.h.b16 %v2455
    %v2647 = vunpack.c.l.b16 %v2456
    %v2648 = vunpack.c.h.b16 %v2456
    %v2649 = vunpack.c.l.b16 %v2457
    %v2650 = vunpack.c.h.b16 %v2457
    %v2651 = vunpack.c.l.b16 %v2458
    %v2652 = vunpack.c.h.b16 %v2458
    %v2653 = vunpack.c.l.b16 %v2459
    %v2654 = vunpack.c.h.b16 %v2459
    %v2655 = vunpack.c.l.b16 %v2460
    %v2656 = vunpack.c.h.b16 %v2460
    %v2657 = vunpack.c.l.b16 %v2461
    %v2658 = vunpack.c.h.b16 %v2461
    %v2659 = vunpack.c.l.b16 %v2462
    %v2660 = vunpack.c.h.b16 %v2462
    %v2661 = vunpack.c.l.b16 %v2463
    %v2662 = vunpack.c.h.b16 %v2463
    %v2663 = vunpack.c.l.b16 %v2464
    %v2664 = vunpack.c.h.b16 %v2464
    %v2665 = vunpack.c.l.b16 %v2465
    %v2666 = vunpack.c.h.b16 %v2465
    %v2667 = vunpack.c.l.b16 %v2466
    %v2668 = vunpack.c.h.b16 %v2466
    %v2669 = vunpack.c.l.b16 %v2467
    %v2670 = vunpack.c.h.b16 %v2467
    %v2671 = vunpack.c.l.b16 %v2468
    %v2672 = vunpack.c.h.b16 %v2468
    %v2673 = vunpack.c.l.b16 %v2469
    %v2674 = vunpack.c.h.b16 %v2469
    %v2675 = vunpack.c.l.b16 %v2470
    %v2676 = vunpack.c.h.b16 %v2470
    %v2677 = vunpack.c.l.b16 %v2471
    %v2678 = vunpack.c.h.b16 %v2471
    %v2679 = vunpack.c.l.b16 %v2472
    %v2680 = vunpack.c.h.b16 %v2472
    %v2681 = vpack.c.b16 %v2555, %v2553
    %v2682 = vpack.c.b16 %v2556, %v2554
    %v2683 = vpack.c.b16 %v2559, %v2557
    %v2684 = vpack.c.b16 %v2560, %v2558
    %v2685 = vpack.c.b16 %v2563, %v2561
    %v2686 = vpack.c.b16 %v2564, %v2562
    %v2687 = vpack.c.b16 %v2567, %v2565
    %v2688 = vpack.c.b16 %v2568, %v2566
    %v2689 = vpack.c.b16 %v2571, %v2569
    %v2690 = vpack.c.b16 %v2572, %v2570
    %v2691 = vpack.c.b16 %v2575, %v2573
    %v2692 = vpack.c.b16 %v2576, %v2574
    %v2693 = vpack.c.b16 %v2579, %v2577
    %v2694 = vpack.c.b16 %v2580, %v2578
    %v2695 = vpack.c.b16 %v2583, %v2581
    %v2696 = vpack.c.b16 %v2584, %v2582
    %v2697 = vpack.c.b16 %v2587, %v2585
    %v2698 = vpack.c.b16 %v2588, %v2586
    %v2699 = vpack.c.b16 %v2591, %v2589
    %v2700 = vpack.c.b16 %v2592, %v2590
    %v2701 = vpack.c.b16 %v2595, %v2593
    %v2702 = vpack.c.b16 %v2596, %v2594
    %v2703 = vpack.c.b16 %v2599, %v2597
    %v2704 = vpack.c.b16 %v2600, %v2598
    %v2705 = vpack.c.b16 %v2603, %v2601
    %v2706 = vpack.c.b16 %v2604, %v2602
    %v2707 = vpack.c.b16 %v2607, %v2605
    %v2708 = vpack.c.b16 %v2608, %v2606
    %v2709 = vpack.c.b16 %v2611, %v2609
    %v2710 = vpack.c.b16 %v2612, %v2610
    %v2711 = vpack.c.b16 %v2615, %v2613
    %v2712 = vpack.c.b16 %v2616, %v2614
    %v2713 = vpack.c.b16 %v2619, %v2617
    %v2714 = vpack.c.b16 %v2620, %v2618
    %v2715 = vpack.c.b16 %v2623, %v2621
    %v2716 = vpack.c.b16 %v2624, %v2622
    %v2717 = vpack.c.b16 %v2627, %v2625
    %v2718 = vpack.c.b16 %v2628, %v2626
    %v2719 = vpack.c.b16 %v2631, %v2629
    %v2720 = vpack.c.b16 %v2632, %v2630
    %v2721 = vpack.c.b16 %v2635, %v2633
    %v2722 = vpack.c.b16 %v2636, %v2634
    %v2723 = vpack.c.b16 %v2639, %v2637
    %v2724 = vpack.c.b16 %v2640, %v2638
    %v2725 = vpack.c.b16 %v2643, %v2641
    %v2726 = vpack.c.b16 %v2644, %v2642
    %v2727 = vpack.c.b16 %v2647, %v2645
    %v2728 = vpack.c.b16 %v2648, %v2646
    %v2729 = vpack.c.b16 %v2651, %v2649
    %v2730 = vpack.c.b16 %v2652, %v2650
    %v2731 = vpack.c.b16 %v2655, %v2653
    %v2732 = vpack.c.b16 %v2656, %v2654
    %v2733 = vpack.c.b16 %v2659, %v2657
    %v2734 = vpack.c.b16 %v2660, %v2658
    %v2735 = vpack.c.b16 %v2663, %v2661
    %v2736 = vpack.c.b16 %v2664, %v2662
    %v2737 = vpack.c.b16 %v2667, %v2665
    %v2738 = vpack.c.b16 %v2668, %v2666
    %v2739 = vpack.c.b16 %v2671, %v2669
    %v2740 = vpack.c.b16 %v2672, %v2670
    %v2741 = vpack.c.b16 %v2675, %v2673
    %v2742 = vpack.c.b16 %v2676, %v2674
    %v2743 = vpack.c.b16 %v2679, %v2677
    %v2744 = vpack.c.b16 %v2680, %v2678
    %2809 = vmatprep.subr.bf16.mxu0 %v2682
    %2810 = vmatpush1.bf16.msra.mxu0 %v2681
    %2811 = vmatprep.subr.bf16.mxu0 %v2684
    %2812 = vmatpush1.bf16.msra.mxu0 %v2683
    %2813 = vmatprep.subr.bf16.mxu0 %v2686
    %2814 = vmatpush1.bf16.msra.mxu0 %v2685
    %2815 = vmatprep.subr.bf16.mxu0 %v2688
    %2816 = vmatpush1.bf16.msra.mxu0 %v2687
    %2817 = vmatprep.subr.bf16.mxu0 %v2690
    %2818 = vmatpush1.bf16.msra.mxu0 %v2689
    %2819 = vmatprep.subr.bf16.mxu0 %v2692
    %2820 = vmatpush1.bf16.msra.mxu0 %v2691
    %2821 = vmatprep.subr.bf16.mxu0 %v2694
    %2822 = vmatpush1.bf16.msra.mxu0 %v2693
    %2823 = vmatprep.subr.bf16.mxu0 %v2696
    %2824 = vmatpush1.bf16.msra.mxu0 %v2695
    %2825 = vmatprep.subr.bf16.mxu0 %v2698
    %2826 = vmatpush1.bf16.msra.mxu0 %v2697
    %2827 = vmatprep.subr.bf16.mxu0 %v2700
    %2828 = vmatpush1.bf16.msra.mxu0 %v2699
    %2829 = vmatprep.subr.bf16.mxu0 %v2702
    %2830 = vmatpush1.bf16.msra.mxu0 %v2701
    %2831 = vmatprep.subr.bf16.mxu0 %v2704
    %2832 = vmatpush1.bf16.msra.mxu0 %v2703
    %2833 = vmatprep.subr.bf16.mxu0 %v2706
    %2834 = vmatpush1.bf16.msra.mxu0 %v2705
    %2835 = vmatprep.subr.bf16.mxu0 %v2708
    %2836 = vmatpush1.bf16.msra.mxu0 %v2707
    %2837 = vmatprep.subr.bf16.mxu0 %v2710
    %2838 = vmatpush1.bf16.msra.mxu0 %v2709
    %2839 = vmatprep.subr.bf16.mxu0 %v2712
    %2840 = vmatpush1.bf16.msra.mxu0 %v2711
    %2841 = vmatprep.mubr.bf16.mxu0 %v2474
    %2842 = vmatmul.mubr.bf16.gmra.mrb[0].mxu0 %v2473
    %v2843 = vpop.f32.mrb[0].mxu0
    %v2844 = vadd.f32 %v2482, %v2843
    %v2845 = vpop.f32.mrb[0].mxu0
    %v2846 = vadd.f32 %v2486, %v2845
    %v2847 = vpop.f32.mrb[0].mxu0
    %v2848 = vpop.f32.mrb[0].mxu0
    %2849 = vdwg.mxu0
    %2850 = vmatprep.subr.bf16.mxu0 %v2714
    %2851 = vmatpush1.bf16.msra.mxu0 %v2713
    %2852 = vmatprep.subr.bf16.mxu0 %v2716
    %2853 = vmatpush1.bf16.msra.mxu0 %v2715
    %2854 = vmatprep.subr.bf16.mxu0 %v2718
    %2855 = vmatpush1.bf16.msra.mxu0 %v2717
    %2856 = vmatprep.subr.bf16.mxu0 %v2720
    %2857 = vmatpush1.bf16.msra.mxu0 %v2719
    %2858 = vmatprep.subr.bf16.mxu0 %v2722
    %2859 = vmatpush1.bf16.msra.mxu0 %v2721
    %2860 = vmatprep.subr.bf16.mxu0 %v2724
    %2861 = vmatpush1.bf16.msra.mxu0 %v2723
    %2862 = vmatprep.subr.bf16.mxu0 %v2726
    %2863 = vmatpush1.bf16.msra.mxu0 %v2725
    %2864 = vmatprep.subr.bf16.mxu0 %v2728
    %2865 = vmatpush1.bf16.msra.mxu0 %v2727
    %2866 = vmatprep.subr.bf16.mxu0 %v2730
    %2867 = vmatpush1.bf16.msra.mxu0 %v2729
    %2868 = vmatprep.subr.bf16.mxu0 %v2732
    %2869 = vmatpush1.bf16.msra.mxu0 %v2731
    %2870 = vmatprep.subr.bf16.mxu0 %v2734
    %2871 = vmatpush1.bf16.msra.mxu0 %v2733
    %2872 = vmatprep.subr.bf16.mxu0 %v2736
    %2873 = vmatpush1.bf16.msra.mxu0 %v2735
    %2874 = vmatprep.subr.bf16.mxu0 %v2738
    %2875 = vmatpush1.bf16.msra.mxu0 %v2737
    %2876 = vmatprep.subr.bf16.mxu0 %v2740
    %2877 = vmatpush1.bf16.msra.mxu0 %v2739
    %2878 = vmatprep.subr.bf16.mxu0 %v2742
    %2879 = vmatpush1.bf16.msra.mxu0 %v2741
    %2880 = vmatprep.subr.bf16.mxu0 %v2744
    %2881 = vmatpush1.bf16.msra.mxu0 %v2743
    %2882 = vmatprep.mubr.bf16.mxu0 %v2476
    %2883 = vmatmul.mubr.bf16.gmra.mrb[0].mxu0 %v2475
    %v2884 = vpop.f32.mrb[0].mxu0
    %v2885 = vadd.f32 %v2844, %v2884
    %v2886 = vpop.f32.mrb[0].mxu0
    %v2887 = vadd.f32 %v2846, %v2886
    %v2888 = vpop.f32.mrb[0].mxu0
    %v2889 = vpop.f32.mrb[0].mxu0
    %2890 = vdwg.mxu0
    %v2891 = vmax.f32 %v2885, 0.0
    %v2892 = vmax.f32 %v2887, 0.0
    %v2893 = vld [vmem:[#allocation8] sm:$0xf]
    %v2894 = vld [vmem:[#allocation8 + $0x4] sm:$0xf]
    %v2895 = vld [vmem:[#allocation8 + $0x8] sm:$0xf]
    %v2896 = vld [vmem:[#allocation8 + $0xc] sm:$0xf]
    %v2897 = vld [vmem:[#allocation8 + $0x10] sm:$0xf]
    %v2898 = vld [vmem:[#allocation8 + $0x14] sm:$0xf]
    %v2899 = vld [vmem:[#allocation8 + $0x18] sm:$0xf]
    %v2900 = vld [vmem:[#allocation8 + $0x1c] sm:$0xf]
    %v2901 = vld [vmem:[#allocation8 + $0x20] sm:$0xf]
    %v2902 = vld [vmem:[#allocation8 + $0x24] sm:$0xf]
    %v2903 = vld [vmem:[#allocation8 + $0x28] sm:$0xf]
    %v2904 = vld [vmem:[#allocation8 + $0x2c] sm:$0xf]
    %v2905 = vld [vmem:[#allocation8 + $0x30] sm:$0xf]
    %v2906 = vld [vmem:[#allocation8 + $0x34] sm:$0xf]
    %v2907 = vld [vmem:[#allocation8 + $0x38] sm:$0xf]
    %v2908 = vld [vmem:[#allocation8 + $0x3c] sm:$0xf]
    %v2909 = vld [vmem:[#allocation8 + $0x40] sm:$0xf]
    %v2910 = vld [vmem:[#allocation8 + $0x44] sm:$0xf]
    %v2911 = vld [vmem:[#allocation8 + $0x48] sm:$0xf]
    %v2912 = vld [vmem:[#allocation8 + $0x4c] sm:$0xf]
    %v2913 = vld [vmem:[#allocation8 + $0x50] sm:$0xf]
    %v2914 = vld [vmem:[#allocation8 + $0x54] sm:$0xf]
    %v2915 = vld [vmem:[#allocation8 + $0x58] sm:$0xf]
    %v2916 = vld [vmem:[#allocation8 + $0x5c] sm:$0xf]
    %v2917 = vld [vmem:[#allocation8 + $0x60] sm:$0xf]
    %v2918 = vld [vmem:[#allocation8 + $0x64] sm:$0xf]
    %v2919 = vld [vmem:[#allocation8 + $0x68] sm:$0xf]
    %v2920 = vld [vmem:[#allocation8 + $0x6c] sm:$0xf]
    %v2921 = vld [vmem:[#allocation8 + $0x70] sm:$0xf]
    %v2922 = vld [vmem:[#allocation8 + $0x74] sm:$0xf]
    %v2923 = vld [vmem:[#allocation8 + $0x78] sm:$0xf]
    %v2924 = vld [vmem:[#allocation8 + $0x7c] sm:$0xf]
    %v2925 = vpack.c.bf16 %v2891, %v2891
    %v2926 = vpack.c.bf16 %v2892, %v2892
    %v2927 = vld [vmem:[%s9] sm:$0x1]
    %v2929 = vlaneseq
    %v2930 = vshrl.u32 %v2929, 7
    %v2931 = vsub.s32 0, %v2930
    %v2932 = vrot.slane %v2927, %v2931
    %v2966 = vunpack.c.l.b16 %v2893
    %v2967 = vunpack.c.l.b16 %v2894
    %v2968 = vunpack.c.l.b16 %v2895
    %v2969 = vunpack.c.l.b16 %v2896
    %v2970 = vunpack.c.l.b16 %v2897
    %v2971 = vunpack.c.l.b16 %v2898
    %v2972 = vunpack.c.l.b16 %v2899
    %v2973 = vunpack.c.l.b16 %v2900
    %v2974 = vunpack.c.l.b16 %v2901
    %v2975 = vunpack.c.l.b16 %v2902
    %v2976 = vunpack.c.l.b16 %v2903
    %v2977 = vunpack.c.l.b16 %v2904
    %v2978 = vunpack.c.l.b16 %v2905
    %v2979 = vunpack.c.l.b16 %v2906
    %v2980 = vunpack.c.l.b16 %v2907
    %v2981 = vunpack.c.l.b16 %v2908
    %v2982 = vunpack.c.l.b16 %v2909
    %v2983 = vunpack.c.l.b16 %v2910
    %v2984 = vunpack.c.l.b16 %v2911
    %v2985 = vunpack.c.l.b16 %v2912
    %v2986 = vunpack.c.l.b16 %v2913
    %v2987 = vunpack.c.l.b16 %v2914
    %v2988 = vunpack.c.l.b16 %v2915
    %v2989 = vunpack.c.l.b16 %v2916
    %v2990 = vunpack.c.l.b16 %v2917
    %v2991 = vunpack.c.l.b16 %v2918
    %v2992 = vunpack.c.l.b16 %v2919
    %v2993 = vunpack.c.l.b16 %v2920
    %v2994 = vunpack.c.l.b16 %v2921
    %v2995 = vunpack.c.l.b16 %v2922
    %v2996 = vunpack.c.l.b16 %v2923
    %v2997 = vunpack.c.l.b16 %v2924
    %v2998 = vpack.c.b16 %v2967, %v2966
    %v2999 = vpack.c.b16 %v2969, %v2968
    %v3000 = vpack.c.b16 %v2971, %v2970
    %v3001 = vpack.c.b16 %v2973, %v2972
    %v3002 = vpack.c.b16 %v2975, %v2974
    %v3003 = vpack.c.b16 %v2977, %v2976
    %v3004 = vpack.c.b16 %v2979, %v2978
    %v3005 = vpack.c.b16 %v2981, %v2980
    %v3006 = vpack.c.b16 %v2983, %v2982
    %v3007 = vpack.c.b16 %v2985, %v2984
    %v3008 = vpack.c.b16 %v2987, %v2986
    %v3009 = vpack.c.b16 %v2989, %v2988
    %v3010 = vpack.c.b16 %v2991, %v2990
    %v3011 = vpack.c.b16 %v2993, %v2992
    %v3012 = vpack.c.b16 %v2995, %v2994
    %v3013 = vpack.c.b16 %v2997, %v2996
    %3030 = vmatprep.subr.bf16.mxu0 0
    %3031 = vmatpush1.bf16.msra.mxu0 %v2998
    %3032 = vmatprep.subr.bf16.mxu0 0
    %3033 = vmatpush1.bf16.msra.mxu0 %v2999
    %3034 = vmatprep.subr.bf16.mxu0 0
    %3035 = vmatpush1.bf16.msra.mxu0 %v3000
    %3036 = vmatprep.subr.bf16.mxu0 0
    %3037 = vmatpush1.bf16.msra.mxu0 %v3001
    %3038 = vmatprep.subr.bf16.mxu0 0
    %3039 = vmatpush1.bf16.msra.mxu0 %v3002
    %3040 = vmatprep.subr.bf16.mxu0 0
    %3041 = vmatpush1.bf16.msra.mxu0 %v3003
    %3042 = vmatprep.subr.bf16.mxu0 0
    %3043 = vmatpush1.bf16.msra.mxu0 %v3004
    %3044 = vmatprep.subr.bf16.mxu0 0
    %3045 = vmatpush1.bf16.msra.mxu0 %v3005
    %3046 = vmatprep.subr.bf16.mxu0 0
    %3047 = vmatpush1.bf16.msra.mxu0 %v3006
    %3048 = vmatprep.subr.bf16.mxu0 0
    %3049 = vmatpush1.bf16.msra.mxu0 %v3007
    %3050 = vmatprep.subr.bf16.mxu0 0
    %3051 = vmatpush1.bf16.msra.mxu0 %v3008
    %3052 = vmatprep.subr.bf16.mxu0 0
    %3053 = vmatpush1.bf16.msra.mxu0 %v3009
    %3054 = vmatprep.subr.bf16.mxu0 0
    %3055 = vmatpush1.bf16.msra.mxu0 %v3010
    %3056 = vmatprep.subr.bf16.mxu0 0
    %3057 = vmatpush1.bf16.msra.mxu0 %v3011
    %3058 = vmatprep.subr.bf16.mxu0 0
    %3059 = vmatpush1.bf16.msra.mxu0 %v3012
    %3060 = vmatprep.subr.bf16.mxu0 0
    %3061 = vmatpush1.bf16.msra.mxu0 %v3013
    %3062 = vmatprep.mubr.bf16.mxu0 %v2926
    %3063 = vmatmul.mubr.bf16.gmra.mrb[0].mxu0 %v2925
    %v3064 = vpop.f32.mrb[0].mxu0
    %v3065 = vadd.f32 %v2932, %v3064
    %v3066 = vpop.f32.mrb[0].mxu0
    %v3067 = vpop.f32.mrb[0].mxu0
    %v3068 = vpop.f32.mrb[0].mxu0
    %3069 = vdwg.mxu0
    %v3070 = vmax.f32 %v3065, 0.0
    %v3071 = vld [vmem:[%s1] sm:$0xff]
    %v3072 = vld [vmem:[%s10] sm:$0xf]
    %v3073 = vld [vmem:[%s10 + $0x4] sm:$0x3]
    %v3074 = vpack.c.bf16 %v3071, %v3071
    %v3075 = vld [vmem:[%s11] sm:$0x1]
    %v3077 = vlaneseq
    %v3078 = vshrl.u32 %v3077, 7
    %v3079 = vsub.s32 0, %v3078
    %v3080 = vrot.slane %v3075, %v3079
    %v3084 = vunpack.c.l.b16 %v3072
    %v3085 = vunpack.c.l.b16 %v3073
    %v3086 = vpack.c.b16 %v3085, %v3084
    %vm3087 = vcmask 97280
    %v3089 = vsel %vm3087, %v3074, 0
    %vm3091 = vcmask 1045504
    %v3093 = vsel %vm3091, %v3086, 0
    %3095 = vmatprep.subr.bf16.mxu0 0
    %3096 = vmatpush1.bf16.msra.mxu0 %v3093
    %3097 = vmatprep.subr.bf16.mxu0 0
    %3098 = vmatpush1.bf16.msra.mxu0 0
    %3099 = vmatprep.subr.bf16.mxu0 0
    %3100 = vmatpush1.bf16.msra.mxu0 0
    %3101 = vmatprep.subr.bf16.mxu0 0
    %3102 = vmatpush1.bf16.msra.mxu0 0
    %3103 = vmatprep.subr.bf16.mxu0 0
    %3104 = vmatpush1.bf16.msra.mxu0 0
    %3105 = vmatprep.subr.bf16.mxu0 0
    %3106 = vmatpush1.bf16.msra.mxu0 0
    %3107 = vmatprep.subr.bf16.mxu0 0
    %3108 = vmatpush1.bf16.msra.mxu0 0
    %3109 = vmatprep.subr.bf16.mxu0 0
    %3110 = vmatpush1.bf16.msra.mxu0 0
    %3111 = vmatprep.subr.bf16.mxu0 0
    %3112 = vmatpush1.bf16.msra.mxu0 0
    %3113 = vmatprep.subr.bf16.mxu0 0
    %3114 = vmatpush1.bf16.msra.mxu0 0
    %3115 = vmatprep.subr.bf16.mxu0 0
    %3116 = vmatpush1.bf16.msra.mxu0 0
    %3117 = vmatprep.subr.bf16.mxu0 0
    %3118 = vmatpush1.bf16.msra.mxu0 0
    %3119 = vmatprep.subr.bf16.mxu0 0
    %3120 = vmatpush1.bf16.msra.mxu0 0
    %3121 = vmatprep.subr.bf16.mxu0 0
    %3122 = vmatpush1.bf16.msra.mxu0 0
    %3123 = vmatprep.subr.bf16.mxu0 0
    %3124 = vmatpush1.bf16.msra.mxu0 0
    %3125 = vmatprep.subr.bf16.mxu0 0
    %3126 = vmatpush1.bf16.msra.mxu0 0
    %3127 = vmatprep.mubr.bf16.mxu0 0
    %3128 = vmatmul.mubr.bf16.gmra.mrb[0].mxu0 %v3089
    %v3129 = vpop.f32.mrb[0].mxu0
    %v3130 = vadd.f32 %v3080, %v3129
    %v3131 = vpop.f32.mrb[0].mxu0
    %v3132 = vpop.f32.mrb[0].mxu0
    %v3133 = vpop.f32.mrb[0].mxu0
    %3134 = vdwg.mxu0
    %v3135 = vmax.f32 %v3130, 0.0
    %v3136 = vld [vmem:[%s12] sm:$0xff]
    %v3137 = vld [vmem:[%s12 + $0x8] sm:$0xff]
    %v3138 = vld [vmem:[%s12 + $0x10] sm:$0xff]
    %v3139 = vld [vmem:[%s12 + $0x18] sm:$0xff]
    %v3140 = vld [vmem:[%s12 + $0x20] sm:$0xff]
    %v3141 = vld [vmem:[%s12 + $0x28] sm:$0xff]
    %v3142 = vld [vmem:[%s12 + $0x30] sm:$0xff]
    %v3143 = vld [vmem:[%s12 + $0x38] sm:$0xff]
    %v3144 = vld [vmem:[%s12 + $0x40] sm:$0xff]
    %v3145 = vld [vmem:[%s12 + $0x48] sm:$0xff]
    %v3146 = vld [vmem:[%s12 + $0x50] sm:$0xff]
    %v3147 = vld [vmem:[%s12 + $0x58] sm:$0xff]
    %v3148 = vld [vmem:[%s12 + $0x60] sm:$0xff]
    %v3149 = vld [vmem:[%s12 + $0x68] sm:$0xff]
    %v3150 = vld [vmem:[%s12 + $0x70] sm:$0xff]
    %v3151 = vld [vmem:[%s12 + $0x78] sm:$0xff]
    %v3152 = vld [vmem:[%s12 + $0x80] sm:$0xff]
    %v3153 = vld [vmem:[%s12 + $0x88] sm:$0xff]
    %v3154 = vld [vmem:[%s12 + $0x90] sm:$0xff]
    %v3155 = vld [vmem:[%s12 + $0x98] sm:$0xff]
    %v3156 = vld [vmem:[%s12 + $0xa0] sm:$0xff]
    %v3157 = vld [vmem:[%s12 + $0xa8] sm:$0xff]
    %v3158 = vld [vmem:[%s12 + $0xb0] sm:$0xff]
    %v3159 = vld [vmem:[%s12 + $0xb8] sm:$0xff]
    %v3160 = vld [vmem:[%s12 + $0xc0] sm:$0xff]
    %v3161 = vld [vmem:[%s12 + $0xc8] sm:$0xff]
    %v3162 = vld [vmem:[%s12 + $0xd0] sm:$0xff]
    %v3163 = vld [vmem:[%s12 + $0xd8] sm:$0xff]
    %v3164 = vld [vmem:[%s12 + $0xe0] sm:$0xff]
    %v3165 = vld [vmem:[%s12 + $0xe8] sm:$0xff]
    %v3166 = vld [vmem:[%s12 + $0xf0] sm:$0xff]
    %v3167 = vld [vmem:[%s12 + $0xf8] sm:$0xff]
    %v3168 = vld [vmem:[#allocation10] sm:$0xff]
    %v3169 = vld [vmem:[#allocation10 + $0x8] sm:$0xff]
    %v3170 = vld [vmem:[#allocation10 + $0x10] sm:$0xff]
    %v3171 = vld [vmem:[#allocation10 + $0x18] sm:$0xff]
    %v3172 = vld [vmem:[#allocation10 + $0x20] sm:$0xff]
    %v3173 = vld [vmem:[#allocation10 + $0x28] sm:$0xff]
    %v3174 = vld [vmem:[#allocation10 + $0x30] sm:$0xff]
    %v3175 = vld [vmem:[#allocation10 + $0x38] sm:$0xff]
    %v3176 = vld [vmem:[#allocation10 + $0x40] sm:$0xff]
    %v3177 = vld [vmem:[#allocation10 + $0x48] sm:$0xff]
    %v3178 = vld [vmem:[#allocation10 + $0x50] sm:$0xff]
    %v3179 = vld [vmem:[#allocation10 + $0x58] sm:$0xff]
    %v3180 = vld [vmem:[#allocation10 + $0x60] sm:$0xff]
    %v3181 = vld [vmem:[#allocation10 + $0x68] sm:$0xff]
    %v3182 = vld [vmem:[#allocation10 + $0x70] sm:$0xff]
    %v3183 = vld [vmem:[#allocation10 + $0x78] sm:$0xff]
    %v3184 = vld [vmem:[#allocation10 + $0x80] sm:$0xff]
    %v3185 = vld [vmem:[#allocation10 + $0x88] sm:$0xff]
    %v3186 = vld [vmem:[#allocation10 + $0x90] sm:$0xff]
    %v3187 = vld [vmem:[#allocation10 + $0x98] sm:$0xff]
    %v3188 = vld [vmem:[#allocation10 + $0xa0] sm:$0xff]
    %v3189 = vld [vmem:[#allocation10 + $0xa8] sm:$0xff]
    %v3190 = vld [vmem:[#allocation10 + $0xb0] sm:$0xff]
    %v3191 = vld [vmem:[#allocation10 + $0xb8] sm:$0xff]
    %v3192 = vld [vmem:[#allocation10 + $0xc0] sm:$0xff]
    %v3193 = vld [vmem:[#allocation10 + $0xc8] sm:$0xff]
    %v3194 = vld [vmem:[#allocation10 + $0xd0] sm:$0xff]
    %v3195 = vld [vmem:[#allocation10 + $0xd8] sm:$0xff]
    %v3196 = vld [vmem:[#allocation10 + $0xe0] sm:$0xff]
    %v3197 = vld [vmem:[#allocation10 + $0xe8] sm:$0xff]
    %v3198 = vld [vmem:[#allocation10 + $0xf0] sm:$0xff]
    %v3199 = vld [vmem:[#allocation10 + $0xf8] sm:$0xff]
    %v3200 = vpack.c.bf16 %v3070, %v3070
    %v3201 = vpack.c.bf16 %v3135, %v3135
    %v3234 = vunpack.c.l.b16 %v3168
    %v3235 = vunpack.c.h.b16 %v3168
    %v3236 = vunpack.c.l.b16 %v3169
    %v3237 = vunpack.c.h.b16 %v3169
    %v3238 = vunpack.c.l.b16 %v3170
    %v3239 = vunpack.c.h.b16 %v3170
    %v3240 = vunpack.c.l.b16 %v3171
    %v3241 = vunpack.c.h.b16 %v3171
    %v3242 = vunpack.c.l.b16 %v3172
    %v3243 = vunpack.c.h.b16 %v3172
    %v3244 = vunpack.c.l.b16 %v3173
    %v3245 = vunpack.c.h.b16 %v3173
    %v3246 = vunpack.c.l.b16 %v3174
    %v3247 = vunpack.c.h.b16 %v3174
    %v3248 = vunpack.c.l.b16 %v3175
    %v3249 = vunpack.c.h.b16 %v3175
    %v3250 = vunpack.c.l.b16 %v3176
    %v3251 = vunpack.c.h.b16 %v3176
    %v3252 = vunpack.c.l.b16 %v3177
    %v3253 = vunpack.c.h.b16 %v3177
    %v3254 = vunpack.c.l.b16 %v3178
    %v3255 = vunpack.c.h.b16 %v3178
    %v3256 = vunpack.c.l.b16 %v3179
    %v3257 = vunpack.c.h.b16 %v3179
    %v3258 = vunpack.c.l.b16 %v3180
    %v3259 = vunpack.c.h.b16 %v3180
    %v3260 = vunpack.c.l.b16 %v3181
    %v3261 = vunpack.c.h.b16 %v3181
    %v3262 = vunpack.c.l.b16 %v3182
    %v3263 = vunpack.c.h.b16 %v3182
    %v3264 = vunpack.c.l.b16 %v3183
    %v3265 = vunpack.c.h.b16 %v3183
    %v3266 = vunpack.c.l.b16 %v3184
    %v3267 = vunpack.c.h.b16 %v3184
    %v3268 = vunpack.c.l.b16 %v3185
    %v3269 = vunpack.c.h.b16 %v3185
    %v3270 = vunpack.c.l.b16 %v3186
    %v3271 = vunpack.c.h.b16 %v3186
    %v3272 = vunpack.c.l.b16 %v3187
    %v3273 = vunpack.c.h.b16 %v3187
    %v3274 = vunpack.c.l.b16 %v3188
    %v3275 = vunpack.c.h.b16 %v3188
    %v3276 = vunpack.c.l.b16 %v3189
    %v3277 = vunpack.c.h.b16 %v3189
    %v3278 = vunpack.c.l.b16 %v3190
    %v3279 = vunpack.c.h.b16 %v3190
    %v3280 = vunpack.c.l.b16 %v3191
    %v3281 = vunpack.c.h.b16 %v3191
    %v3282 = vunpack.c.l.b16 %v3192
    %v3283 = vunpack.c.h.b16 %v3192
    %v3284 = vunpack.c.l.b16 %v3193
    %v3285 = vunpack.c.h.b16 %v3193
    %v3286 = vunpack.c.l.b16 %v3194
    %v3287 = vunpack.c.h.b16 %v3194
    %v3288 = vunpack.c.l.b16 %v3195
    %v3289 = vunpack.c.h.b16 %v3195
    %v3290 = vunpack.c.l.b16 %v3196
    %v3291 = vunpack.c.h.b16 %v3196
    %v3292 = vunpack.c.l.b16 %v3197
    %v3293 = vunpack.c.h.b16 %v3197
    %v3294 = vunpack.c.l.b16 %v3198
    %v3295 = vunpack.c.h.b16 %v3198
    %v3296 = vunpack.c.l.b16 %v3199
    %v3297 = vunpack.c.h.b16 %v3199
    %v3298 = vpack.c.b16 %v3238, %v3234
    %v3299 = vpack.c.b16 %v3239, %v3235
    %v3300 = vpack.c.b16 %v3240, %v3236
    %v3301 = vpack.c.b16 %v3241, %v3237
    %v3302 = vpack.c.b16 %v3246, %v3242
    %v3303 = vpack.c.b16 %v3247, %v3243
    %v3304 = vpack.c.b16 %v3248, %v3244
    %v3305 = vpack.c.b16 %v3249, %v3245
    %v3306 = vpack.c.b16 %v3254, %v3250
    %v3307 = vpack.c.b16 %v3255, %v3251
    %v3308 = vpack.c.b16 %v3256, %v3252
    %v3309 = vpack.c.b16 %v3257, %v3253
    %v3310 = vpack.c.b16 %v3262, %v3258
    %v3311 = vpack.c.b16 %v3263, %v3259
    %v3312 = vpack.c.b16 %v3264, %v3260
    %v3313 = vpack.c.b16 %v3265, %v3261
    %v3314 = vpack.c.b16 %v3270, %v3266
    %v3315 = vpack.c.b16 %v3271, %v3267
    %v3316 = vpack.c.b16 %v3272, %v3268
    %v3317 = vpack.c.b16 %v3273, %v3269
    %v3318 = vpack.c.b16 %v3278, %v3274
    %v3319 = vpack.c.b16 %v3279, %v3275
    %v3320 = vpack.c.b16 %v3280, %v3276
    %v3321 = vpack.c.b16 %v3281, %v3277
    %v3322 = vpack.c.b16 %v3286, %v3282
    %v3323 = vpack.c.b16 %v3287, %v3283
    %v3324 = vpack.c.b16 %v3288, %v3284
    %v3325 = vpack.c.b16 %v3289, %v3285
    %v3326 = vpack.c.b16 %v3294, %v3290
    %v3327 = vpack.c.b16 %v3295, %v3291
    %v3328 = vpack.c.b16 %v3296, %v3292
    %v3329 = vpack.c.b16 %v3297, %v3293
    %3362 = vmatprep.subr.bf16.mxu0 %v3299
    %3363 = vmatpush1.bf16.msra.mxu0 %v3298
    %3364 = vmatprep.subr.bf16.mxu0 %v3303
    %3365 = vmatpush1.bf16.msra.mxu0 %v3302
    %3366 = vmatprep.subr.bf16.mxu0 %v3307
    %3367 = vmatpush1.bf16.msra.mxu0 %v3306
    %3368 = vmatprep.subr.bf16.mxu0 %v3311
    %3369 = vmatpush1.bf16.msra.mxu0 %v3310
    %3370 = vmatprep.subr.bf16.mxu0 %v3315
    %3371 = vmatpush1.bf16.msra.mxu0 %v3314
    %3372 = vmatprep.subr.bf16.mxu0 %v3319
    %3373 = vmatpush1.bf16.msra.mxu0 %v3318
    %3374 = vmatprep.subr.bf16.mxu0 %v3323
    %3375 = vmatpush1.bf16.msra.mxu0 %v3322
    %3376 = vmatprep.subr.bf16.mxu0 %v3327
    %3377 = vmatpush1.bf16.msra.mxu0 %v3326
    %3378 = vmatprep.subr.bf16.mxu0 0
    %3379 = vmatpush1.bf16.msra.mxu0 0
    %3380 = vmatprep.subr.bf16.mxu0 0
    %3381 = vmatpush1.bf16.msra.mxu0 0
    %3382 = vmatprep.subr.bf16.mxu0 0
    %3383 = vmatpush1.bf16.msra.mxu0 0
    %3384 = vmatprep.subr.bf16.mxu0 0
    %3385 = vmatpush1.bf16.msra.mxu0 0
    %3386 = vmatprep.subr.bf16.mxu0 0
    %3387 = vmatpush1.bf16.msra.mxu0 0
    %3388 = vmatprep.subr.bf16.mxu0 0
    %3389 = vmatpush1.bf16.msra.mxu0 0
    %3390 = vmatprep.subr.bf16.mxu0 0
    %3391 = vmatpush1.bf16.msra.mxu0 0
    %3392 = vmatprep.subr.bf16.mxu0 0
    %3393 = vmatpush1.bf16.msra.mxu0 0
    %3394 = vmatprep.mubr.bf16.mxu0 0
    %3395 = vmatmul.mubr.bf16.gmra.mrb[0].mxu0 %v3201
    %v3396 = vpop.f32.mrb[0].mxu0
    %v3397 = vadd.f32 0.0, %v3396
    %v3398 = vpop.f32.mrb[0].mxu0
    %v3399 = vadd.f32 0.0, %v3398
    %v3400 = vpop.f32.mrb[0].mxu0
    %v3401 = vpop.f32.mrb[0].mxu0
    %3402 = vdwg.mxu0
    %3403 = vmatprep.subr.bf16.mxu0 %v3301
    %3404 = vmatpush1.bf16.msra.mxu0 %v3300
    %3405 = vmatprep.subr.bf16.mxu0 %v3305
    %3406 = vmatpush1.bf16.msra.mxu0 %v3304
    %3407 = vmatprep.subr.bf16.mxu0 %v3309
    %3408 = vmatpush1.bf16.msra.mxu0 %v3308
    %3409 = vmatprep.subr.bf16.mxu0 %v3313
    %3410 = vmatpush1.bf16.msra.mxu0 %v3312
    %3411 = vmatprep.subr.bf16.mxu0 %v3317
    %3412 = vmatpush1.bf16.msra.mxu0 %v3316
    %3413 = vmatprep.subr.bf16.mxu0 %v3321
    %3414 = vmatpush1.bf16.msra.mxu0 %v3320
    %3415 = vmatprep.subr.bf16.mxu0 %v3325
    %3416 = vmatpush1.bf16.msra.mxu0 %v3324
    %3417 = vmatprep.subr.bf16.mxu0 %v3329
    %3418 = vmatpush1.bf16.msra.mxu0 %v3328
    %3419 = vmatprep.subr.bf16.mxu0 0
    %3420 = vmatpush1.bf16.msra.mxu0 0
    %3421 = vmatprep.subr.bf16.mxu0 0
    %3422 = vmatpush1.bf16.msra.mxu0 0
    %3423 = vmatprep.subr.bf16.mxu0 0
    %3424 = vmatpush1.bf16.msra.mxu0 0
    %3425 = vmatprep.subr.bf16.mxu0 0
    %3426 = vmatpush1.bf16.msra.mxu0 0
    %3427 = vmatprep.subr.bf16.mxu0 0
    %3428 = vmatpush1.bf16.msra.mxu0 0
    %3429 = vmatprep.subr.bf16.mxu0 0
    %3430 = vmatpush1.bf16.msra.mxu0 0
    %3431 = vmatprep.subr.bf16.mxu0 0
    %3432 = vmatpush1.bf16.msra.mxu0 0
    %3433 = vmatprep.subr.bf16.mxu0 0
    %3434 = vmatpush1.bf16.msra.mxu0 0
    %3435 = vmatprep.mubr.bf16.mxu0 0
    %3436 = vmatmul.mubr.bf16.gmra.mrb[0].mxu0 %v3201
    %v3437 = vpop.f32.mrb[0].mxu0
    %v3438 = vadd.f32 0.0, %v3437
    %v3439 = vpop.f32.mrb[0].mxu0
    %v3440 = vadd.f32 0.0, %v3439
    %v3441 = vpop.f32.mrb[0].mxu0
    %v3442 = vpop.f32.mrb[0].mxu0
    %3443 = vdwg.mxu0
    %v3476 = vunpack.c.l.b16 %v3136
    %v3477 = vunpack.c.h.b16 %v3136
    %v3478 = vunpack.c.l.b16 %v3137
    %v3479 = vunpack.c.h.b16 %v3137
    %v3480 = vunpack.c.l.b16 %v3138
    %v3481 = vunpack.c.h.b16 %v3138
    %v3482 = vunpack.c.l.b16 %v3139
    %v3483 = vunpack.c.h.b16 %v3139
    %v3484 = vunpack.c.l.b16 %v3140
    %v3485 = vunpack.c.h.b16 %v3140
    %v3486 = vunpack.c.l.b16 %v3141
    %v3487 = vunpack.c.h.b16 %v3141
    %v3488 = vunpack.c.l.b16 %v3142
    %v3489 = vunpack.c.h.b16 %v3142
    %v3490 = vunpack.c.l.b16 %v3143
    %v3491 = vunpack.c.h.b16 %v3143
    %v3492 = vunpack.c.l.b16 %v3144
    %v3493 = vunpack.c.h.b16 %v3144
    %v3494 = vunpack.c.l.b16 %v3145
    %v3495 = vunpack.c.h.b16 %v3145
    %v3496 = vunpack.c.l.b16 %v3146
    %v3497 = vunpack.c.h.b16 %v3146
    %v3498 = vunpack.c.l.b16 %v3147
    %v3499 = vunpack.c.h.b16 %v3147
    %v3500 = vunpack.c.l.b16 %v3148
    %v3501 = vunpack.c.h.b16 %v3148
    %v3502 = vunpack.c.l.b16 %v3149
    %v3503 = vunpack.c.h.b16 %v3149
    %v3504 = vunpack.c.l.b16 %v3150
    %v3505 = vunpack.c.h.b16 %v3150
    %v3506 = vunpack.c.l.b16 %v3151
    %v3507 = vunpack.c.h.b16 %v3151
    %v3508 = vunpack.c.l.b16 %v3152
    %v3509 = vunpack.c.h.b16 %v3152
    %v3510 = vunpack.c.l.b16 %v3153
    %v3511 = vunpack.c.h.b16 %v3153
    %v3512 = vunpack.c.l.b16 %v3154
    %v3513 = vunpack.c.h.b16 %v3154
    %v3514 = vunpack.c.l.b16 %v3155
    %v3515 = vunpack.c.h.b16 %v3155
    %v3516 = vunpack.c.l.b16 %v3156
    %v3517 = vunpack.c.h.b16 %v3156
    %v3518 = vunpack.c.l.b16 %v3157
    %v3519 = vunpack.c.h.b16 %v3157
    %v3520 = vunpack.c.l.b16 %v3158
    %v3521 = vunpack.c.h.b16 %v3158
    %v3522 = vunpack.c.l.b16 %v3159
    %v3523 = vunpack.c.h.b16 %v3159
    %v3524 = vunpack.c.l.b16 %v3160
    %v3525 = vunpack.c.h.b16 %v3160
    %v3526 = vunpack.c.l.b16 %v3161
    %v3527 = vunpack.c.h.b16 %v3161
    %v3528 = vunpack.c.l.b16 %v3162
    %v3529 = vunpack.c.h.b16 %v3162
    %v3530 = vunpack.c.l.b16 %v3163
    %v3531 = vunpack.c.h.b16 %v3163
    %v3532 = vunpack.c.l.b16 %v3164
    %v3533 = vunpack.c.h.b16 %v3164
    %v3534 = vunpack.c.l.b16 %v3165
    %v3535 = vunpack.c.h.b16 %v3165
    %v3536 = vunpack.c.l.b16 %v3166
    %v3537 = vunpack.c.h.b16 %v3166
    %v3538 = vunpack.c.l.b16 %v3167
    %v3539 = vunpack.c.h.b16 %v3167
    %v3540 = vpack.c.b16 %v3480, %v3476
    %v3541 = vpack.c.b16 %v3481, %v3477
    %v3542 = vpack.c.b16 %v3482, %v3478
    %v3543 = vpack.c.b16 %v3483, %v3479
    %v3544 = vpack.c.b16 %v3488, %v3484
    %v3545 = vpack.c.b16 %v3489, %v3485
    %v3546 = vpack.c.b16 %v3490, %v3486
    %v3547 = vpack.c.b16 %v3491, %v3487
    %v3548 = vpack.c.b16 %v3496, %v3492
    %v3549 = vpack.c.b16 %v3497, %v3493
    %v3550 = vpack.c.b16 %v3498, %v3494
    %v3551 = vpack.c.b16 %v3499, %v3495
    %v3552 = vpack.c.b16 %v3504, %v3500
    %v3553 = vpack.c.b16 %v3505, %v3501
    %v3554 = vpack.c.b16 %v3506, %v3502
    %v3555 = vpack.c.b16 %v3507, %v3503
    %v3556 = vpack.c.b16 %v3512, %v3508
    %v3557 = vpack.c.b16 %v3513, %v3509
    %v3558 = vpack.c.b16 %v3514, %v3510
    %v3559 = vpack.c.b16 %v3515, %v3511
    %v3560 = vpack.c.b16 %v3520, %v3516
    %v3561 = vpack.c.b16 %v3521, %v3517
    %v3562 = vpack.c.b16 %v3522, %v3518
    %v3563 = vpack.c.b16 %v3523, %v3519
    %v3564 = vpack.c.b16 %v3528, %v3524
    %v3565 = vpack.c.b16 %v3529, %v3525
    %v3566 = vpack.c.b16 %v3530, %v3526
    %v3567 = vpack.c.b16 %v3531, %v3527
    %v3568 = vpack.c.b16 %v3536, %v3532
    %v3569 = vpack.c.b16 %v3537, %v3533
    %v3570 = vpack.c.b16 %v3538, %v3534
    %v3571 = vpack.c.b16 %v3539, %v3535
    %3604 = vmatprep.subr.bf16.mxu0 %v3541
    %3605 = vmatpush1.bf16.msra.mxu0 %v3540
    %3606 = vmatprep.subr.bf16.mxu0 %v3545
    %3607 = vmatpush1.bf16.msra.mxu0 %v3544
    %3608 = vmatprep.subr.bf16.mxu0 %v3549
    %3609 = vmatpush1.bf16.msra.mxu0 %v3548
    %3610 = vmatprep.subr.bf16.mxu0 %v3553
    %3611 = vmatpush1.bf16.msra.mxu0 %v3552
    %3612 = vmatprep.subr.bf16.mxu0 %v3557
    %3613 = vmatpush1.bf16.msra.mxu0 %v3556
    %3614 = vmatprep.subr.bf16.mxu0 %v3561
    %3615 = vmatpush1.bf16.msra.mxu0 %v3560
    %3616 = vmatprep.subr.bf16.mxu0 %v3565
    %3617 = vmatpush1.bf16.msra.mxu0 %v3564
    %3618 = vmatprep.subr.bf16.mxu0 %v3569
    %3619 = vmatpush1.bf16.msra.mxu0 %v3568
    %3620 = vmatprep.subr.bf16.mxu0 0
    %3621 = vmatpush1.bf16.msra.mxu0 0
    %3622 = vmatprep.subr.bf16.mxu0 0
    %3623 = vmatpush1.bf16.msra.mxu0 0
    %3624 = vmatprep.subr.bf16.mxu0 0
    %3625 = vmatpush1.bf16.msra.mxu0 0
    %3626 = vmatprep.subr.bf16.mxu0 0
    %3627 = vmatpush1.bf16.msra.mxu0 0
    %3628 = vmatprep.subr.bf16.mxu0 0
    %3629 = vmatpush1.bf16.msra.mxu0 0
    %3630 = vmatprep.subr.bf16.mxu0 0
    %3631 = vmatpush1.bf16.msra.mxu0 0
    %3632 = vmatprep.subr.bf16.mxu0 0
    %3633 = vmatpush1.bf16.msra.mxu0 0
    %3634 = vmatprep.subr.bf16.mxu0 0
    %3635 = vmatpush1.bf16.msra.mxu0 0
    %3636 = vmatprep.mubr.bf16.mxu0 0
    %3637 = vmatmul.mubr.bf16.gmra.mrb[0].mxu0 %v3200
    %v3638 = vpop.f32.mrb[0].mxu0
    %v3639 = vadd.f32 %v3397, %v3638
    %v3640 = vpop.f32.mrb[0].mxu0
    %v3641 = vadd.f32 %v3399, %v3640
    %v3642 = vpop.f32.mrb[0].mxu0
    %v3643 = vpop.f32.mrb[0].mxu0
    %3644 = vdwg.mxu0
    %3645 = vmatprep.subr.bf16.mxu0 %v3543
    %3646 = vmatpush1.bf16.msra.mxu0 %v3542
    %3647 = vmatprep.subr.bf16.mxu0 %v3547
    %3648 = vmatpush1.bf16.msra.mxu0 %v3546
    %3649 = vmatprep.subr.bf16.mxu0 %v3551
    %3650 = vmatpush1.bf16.msra.mxu0 %v3550
    %3651 = vmatprep.subr.bf16.mxu0 %v3555
    %3652 = vmatpush1.bf16.msra.mxu0 %v3554
    %3653 = vmatprep.subr.bf16.mxu0 %v3559
    %3654 = vmatpush1.bf16.msra.mxu0 %v3558
    %3655 = vmatprep.subr.bf16.mxu0 %v3563
    %3656 = vmatpush1.bf16.msra.mxu0 %v3562
    %3657 = vmatprep.subr.bf16.mxu0 %v3567
    %3658 = vmatpush1.bf16.msra.mxu0 %v3566
    %3659 = vmatprep.subr.bf16.mxu0 %v3571
    %3660 = vmatpush1.bf16.msra.mxu0 %v3570
    %3661 = vmatprep.subr.bf16.mxu0 0
    %3662 = vmatpush1.bf16.msra.mxu0 0
    %3663 = vmatprep.subr.bf16.mxu0 0
    %3664 = vmatpush1.bf16.msra.mxu0 0
    %3665 = vmatprep.subr.bf16.mxu0 0
    %3666 = vmatpush1.bf16.msra.mxu0 0
    %3667 = vmatprep.subr.bf16.mxu0 0
    %3668 = vmatpush1.bf16.msra.mxu0 0
    %3669 = vmatprep.subr.bf16.mxu0 0
    %3670 = vmatpush1.bf16.msra.mxu0 0
    %3671 = vmatprep.subr.bf16.mxu0 0
    %3672 = vmatpush1.bf16.msra.mxu0 0
    %3673 = vmatprep.subr.bf16.mxu0 0
    %3674 = vmatpush1.bf16.msra.mxu0 0
    %3675 = vmatprep.subr.bf16.mxu0 0
    %3676 = vmatpush1.bf16.msra.mxu0 0
    %3677 = vmatprep.mubr.bf16.mxu0 0
    %3678 = vmatmul.mubr.bf16.gmra.mrb[0].mxu0 %v3200
    %v3679 = vpop.f32.mrb[0].mxu0
    %v3680 = vadd.f32 %v3438, %v3679
    %v3681 = vpop.f32.mrb[0].mxu0
    %v3682 = vadd.f32 %v3440, %v3681
    %v3683 = vpop.f32.mrb[0].mxu0
    %v3684 = vpop.f32.mrb[0].mxu0
    %3685 = vdwg.mxu0
    %v3686 = vld [vmem:[%s14] sm:$0xf]
    %v3688 = vlaneseq
    %v3689 = vshrl.u32 %v3688, 7
    %v3690 = vsub.s32 0, %v3689
    %v3691 = vrot.slane %v3686, %v3690
    %v3692 = vlaneseq
    %v3693 = vshrl.u32 %v3692, 7
    %v3694 = vsub.s32 1, %v3693
    %v3695 = vrot.slane %v3686, %v3694
    %v3696 = vlaneseq
    %v3697 = vshrl.u32 %v3696, 7
    %v3698 = vsub.s32 2, %v3697
    %v3699 = vrot.slane %v3686, %v3698
    %v3700 = vlaneseq
    %v3701 = vshrl.u32 %v3700, 7
    %v3702 = vsub.s32 3, %v3701
    %v3703 = vrot.slane %v3686, %v3702
    %v3708 = vadd.f32 %v3639, %v3691
    %v3709 = vadd.f32 %v3641, %v3695
    %v3710 = vadd.f32 %v3680, %v3699
    %v3711 = vadd.f32 %v3682, %v3703
    %v3712 = vmax.f32 %v3708, 0.0
    %v3713 = vmax.f32 %v3709, 0.0
    %v3714 = vmax.f32 %v3710, 0.0
    %v3715 = vmax.f32 %v3711, 0.0
    %v3716 = vld [vmem:[#allocation11] sm:$0xff]
    %v3717 = vld [vmem:[#allocation11 + $0x8] sm:$0xff]
    %v3718 = vld [vmem:[#allocation11 + $0x10] sm:$0xff]
    %v3719 = vld [vmem:[#allocation11 + $0x18] sm:$0xff]
    %v3720 = vld [vmem:[#allocation11 + $0x20] sm:$0xff]
    %v3721 = vld [vmem:[#allocation11 + $0x28] sm:$0xff]
    %v3722 = vld [vmem:[#allocation11 + $0x30] sm:$0xff]
    %v3723 = vld [vmem:[#allocation11 + $0x38] sm:$0xff]
    %v3724 = vld [vmem:[#allocation11 + $0x40] sm:$0xff]
    %v3725 = vld [vmem:[#allocation11 + $0x48] sm:$0xff]
    %v3726 = vld [vmem:[#allocation11 + $0x50] sm:$0xff]
    %v3727 = vld [vmem:[#allocation11 + $0x58] sm:$0xff]
    %v3728 = vld [vmem:[#allocation11 + $0x60] sm:$0xff]
    %v3729 = vld [vmem:[#allocation11 + $0x68] sm:$0xff]
    %v3730 = vld [vmem:[#allocation11 + $0x70] sm:$0xff]
    %v3731 = vld [vmem:[#allocation11 + $0x78] sm:$0xff]
    %v3732 = vld [vmem:[#allocation11 + $0x80] sm:$0xff]
    %v3733 = vld [vmem:[#allocation11 + $0x88] sm:$0xff]
    %v3734 = vld [vmem:[#allocation11 + $0x90] sm:$0xff]
    %v3735 = vld [vmem:[#allocation11 + $0x98] sm:$0xff]
    %v3736 = vld [vmem:[#allocation11 + $0xa0] sm:$0xff]
    %v3737 = vld [vmem:[#allocation11 + $0xa8] sm:$0xff]
    %v3738 = vld [vmem:[#allocation11 + $0xb0] sm:$0xff]
    %v3739 = vld [vmem:[#allocation11 + $0xb8] sm:$0xff]
    %v3740 = vld [vmem:[#allocation11 + $0xc0] sm:$0xff]
    %v3741 = vld [vmem:[#allocation11 + $0xc8] sm:$0xff]
    %v3742 = vld [vmem:[#allocation11 + $0xd0] sm:$0xff]
    %v3743 = vld [vmem:[#allocation11 + $0xd8] sm:$0xff]
    %v3744 = vld [vmem:[#allocation11 + $0xe0] sm:$0xff]
    %v3745 = vld [vmem:[#allocation11 + $0xe8] sm:$0xff]
    %v3746 = vld [vmem:[#allocation11 + $0xf0] sm:$0xff]
    %v3747 = vld [vmem:[#allocation11 + $0xf8] sm:$0xff]
    %v3748 = vld [vmem:[#allocation11 + $0x100] sm:$0xff]
    %v3749 = vld [vmem:[#allocation11 + $0x108] sm:$0xff]
    %v3750 = vld [vmem:[#allocation11 + $0x110] sm:$0xff]
    %v3751 = vld [vmem:[#allocation11 + $0x118] sm:$0xff]
    %v3752 = vld [vmem:[#allocation11 + $0x120] sm:$0xff]
    %v3753 = vld [vmem:[#allocation11 + $0x128] sm:$0xff]
    %v3754 = vld [vmem:[#allocation11 + $0x130] sm:$0xff]
    %v3755 = vld [vmem:[#allocation11 + $0x138] sm:$0xff]
    %v3756 = vld [vmem:[#allocation11 + $0x140] sm:$0xff]
    %v3757 = vld [vmem:[#allocation11 + $0x148] sm:$0xff]
    %v3758 = vld [vmem:[#allocation11 + $0x150] sm:$0xff]
    %v3759 = vld [vmem:[#allocation11 + $0x158] sm:$0xff]
    %v3760 = vld [vmem:[#allocation11 + $0x160] sm:$0xff]
    %v3761 = vld [vmem:[#allocation11 + $0x168] sm:$0xff]
    %v3762 = vld [vmem:[#allocation11 + $0x170] sm:$0xff]
    %v3763 = vld [vmem:[#allocation11 + $0x178] sm:$0xff]
    %v3764 = vld [vmem:[#allocation11 + $0x180] sm:$0xff]
    %v3765 = vld [vmem:[#allocation11 + $0x188] sm:$0xff]
    %v3766 = vld [vmem:[#allocation11 + $0x190] sm:$0xff]
    %v3767 = vld [vmem:[#allocation11 + $0x198] sm:$0xff]
    %v3768 = vld [vmem:[#allocation11 + $0x1a0] sm:$0xff]
    %v3769 = vld [vmem:[#allocation11 + $0x1a8] sm:$0xff]
    %v3770 = vld [vmem:[#allocation11 + $0x1b0] sm:$0xff]
    %v3771 = vld [vmem:[#allocation11 + $0x1b8] sm:$0xff]
    %v3772 = vld [vmem:[#allocation11 + $0x1c0] sm:$0xff]
    %v3773 = vld [vmem:[#allocation11 + $0x1c8] sm:$0xff]
    %v3774 = vld [vmem:[#allocation11 + $0x1d0] sm:$0xff]
    %v3775 = vld [vmem:[#allocation11 + $0x1d8] sm:$0xff]
    %v3776 = vld [vmem:[#allocation11 + $0x1e0] sm:$0xff]
    %v3777 = vld [vmem:[#allocation11 + $0x1e8] sm:$0xff]
    %v3778 = vld [vmem:[#allocation11 + $0x1f0] sm:$0xff]
    %v3779 = vld [vmem:[#allocation11 + $0x1f8] sm:$0xff]
    %v3780 = vld [vmem:[#allocation11 + $0x200] sm:$0xff]
    %v3781 = vld [vmem:[#allocation11 + $0x208] sm:$0xff]
    %v3782 = vld [vmem:[#allocation11 + $0x210] sm:$0xff]
    %v3783 = vld [vmem:[#allocation11 + $0x218] sm:$0xff]
    %v3784 = vld [vmem:[#allocation11 + $0x220] sm:$0xff]
    %v3785 = vld [vmem:[#allocation11 + $0x228] sm:$0xff]
    %v3786 = vld [vmem:[#allocation11 + $0x230] sm:$0xff]
    %v3787 = vld [vmem:[#allocation11 + $0x238] sm:$0xff]
    %v3788 = vld [vmem:[#allocation11 + $0x240] sm:$0xff]
    %v3789 = vld [vmem:[#allocation11 + $0x248] sm:$0xff]
    %v3790 = vld [vmem:[#allocation11 + $0x250] sm:$0xff]
    %v3791 = vld [vmem:[#allocation11 + $0x258] sm:$0xff]
    %v3792 = vld [vmem:[#allocation11 + $0x260] sm:$0xff]
    %v3793 = vld [vmem:[#allocation11 + $0x268] sm:$0xff]
    %v3794 = vld [vmem:[#allocation11 + $0x270] sm:$0xff]
    %v3795 = vld [vmem:[#allocation11 + $0x278] sm:$0xff]
    %v3796 = vld [vmem:[#allocation11 + $0x280] sm:$0xff]
    %v3797 = vld [vmem:[#allocation11 + $0x288] sm:$0xff]
    %v3798 = vld [vmem:[#allocation11 + $0x290] sm:$0xff]
    %v3799 = vld [vmem:[#allocation11 + $0x298] sm:$0xff]
    %v3800 = vld [vmem:[#allocation11 + $0x2a0] sm:$0xff]
    %v3801 = vld [vmem:[#allocation11 + $0x2a8] sm:$0xff]
    %v3802 = vld [vmem:[#allocation11 + $0x2b0] sm:$0xff]
    %v3803 = vld [vmem:[#allocation11 + $0x2b8] sm:$0xff]
    %v3804 = vld [vmem:[#allocation11 + $0x2c0] sm:$0xff]
    %v3805 = vld [vmem:[#allocation11 + $0x2c8] sm:$0xff]
    %v3806 = vld [vmem:[#allocation11 + $0x2d0] sm:$0xff]
    %v3807 = vld [vmem:[#allocation11 + $0x2d8] sm:$0xff]
    %v3808 = vld [vmem:[#allocation11 + $0x2e0] sm:$0xff]
    %v3809 = vld [vmem:[#allocation11 + $0x2e8] sm:$0xff]
    %v3810 = vld [vmem:[#allocation11 + $0x2f0] sm:$0xff]
    %v3811 = vld [vmem:[#allocation11 + $0x2f8] sm:$0xff]
    %v3812 = vld [vmem:[#allocation11 + $0x300] sm:$0xff]
    %v3813 = vld [vmem:[#allocation11 + $0x308] sm:$0xff]
    %v3814 = vld [vmem:[#allocation11 + $0x310] sm:$0xff]
    %v3815 = vld [vmem:[#allocation11 + $0x318] sm:$0xff]
    %v3816 = vld [vmem:[#allocation11 + $0x320] sm:$0xff]
    %v3817 = vld [vmem:[#allocation11 + $0x328] sm:$0xff]
    %v3818 = vld [vmem:[#allocation11 + $0x330] sm:$0xff]
    %v3819 = vld [vmem:[#allocation11 + $0x338] sm:$0xff]
    %v3820 = vld [vmem:[#allocation11 + $0x340] sm:$0xff]
    %v3821 = vld [vmem:[#allocation11 + $0x348] sm:$0xff]
    %v3822 = vld [vmem:[#allocation11 + $0x350] sm:$0xff]
    %v3823 = vld [vmem:[#allocation11 + $0x358] sm:$0xff]
    %v3824 = vld [vmem:[#allocation11 + $0x360] sm:$0xff]
    %v3825 = vld [vmem:[#allocation11 + $0x368] sm:$0xff]
    %v3826 = vld [vmem:[#allocation11 + $0x370] sm:$0xff]
    %v3827 = vld [vmem:[#allocation11 + $0x378] sm:$0xff]
    %v3828 = vld [vmem:[#allocation11 + $0x380] sm:$0xff]
    %v3829 = vld [vmem:[#allocation11 + $0x388] sm:$0xff]
    %v3830 = vld [vmem:[#allocation11 + $0x390] sm:$0xff]
    %v3831 = vld [vmem:[#allocation11 + $0x398] sm:$0xff]
    %v3832 = vld [vmem:[#allocation11 + $0x3a0] sm:$0xff]
    %v3833 = vld [vmem:[#allocation11 + $0x3a8] sm:$0xff]
    %v3834 = vld [vmem:[#allocation11 + $0x3b0] sm:$0xff]
    %v3835 = vld [vmem:[#allocation11 + $0x3b8] sm:$0xff]
    %v3836 = vld [vmem:[#allocation11 + $0x3c0] sm:$0xff]
    %v3837 = vld [vmem:[#allocation11 + $0x3c8] sm:$0xff]
    %v3838 = vld [vmem:[#allocation11 + $0x3d0] sm:$0xff]
    %v3839 = vld [vmem:[#allocation11 + $0x3d8] sm:$0xff]
    %v3840 = vld [vmem:[#allocation11 + $0x3e0] sm:$0xff]
    %v3841 = vld [vmem:[#allocation11 + $0x3e8] sm:$0xff]
    %v3842 = vld [vmem:[#allocation11 + $0x3f0] sm:$0xff]
    %v3843 = vld [vmem:[#allocation11 + $0x3f8] sm:$0xff]
    %v3844 = vpack.c.bf16 %v3712, %v3712
    %v3845 = vpack.c.bf16 %v3713, %v3713
    %v3846 = vpack.c.bf16 %v3714, %v3714
    %v3847 = vpack.c.bf16 %v3715, %v3715
    %v3848 = vld [vmem:[%s16] sm:$0xf]
    %v3850 = vlaneseq
    %v3851 = vshrl.u32 %v3850, 7
    %v3852 = vsub.s32 0, %v3851
    %v3853 = vrot.slane %v3848, %v3852
    %v3854 = vlaneseq
    %v3855 = vshrl.u32 %v3854, 7
    %v3856 = vsub.s32 1, %v3855
    %v3857 = vrot.slane %v3848, %v3856
    %v3858 = vlaneseq
    %v3859 = vshrl.u32 %v3858, 7
    %v3860 = vsub.s32 2, %v3859
    %v3861 = vrot.slane %v3848, %v3860
    %v3862 = vlaneseq
    %v3863 = vshrl.u32 %v3862, 7
    %v3864 = vsub.s32 3, %v3863
    %v3865 = vrot.slane %v3848, %v3864
    %v3998 = vunpack.c.l.b16 %v3716
    %v3999 = vunpack.c.h.b16 %v3716
    %v4000 = vunpack.c.l.b16 %v3717
    %v4001 = vunpack.c.h.b16 %v3717
    %v4002 = vunpack.c.l.b16 %v3718
    %v4003 = vunpack.c.h.b16 %v3718
    %v4004 = vunpack.c.l.b16 %v3719
    %v4005 = vunpack.c.h.b16 %v3719
    %v4006 = vunpack.c.l.b16 %v3720
    %v4007 = vunpack.c.h.b16 %v3720
    %v4008 = vunpack.c.l.b16 %v3721
    %v4009 = vunpack.c.h.b16 %v3721
    %v4010 = vunpack.c.l.b16 %v3722
    %v4011 = vunpack.c.h.b16 %v3722
    %v4012 = vunpack.c.l.b16 %v3723
    %v4013 = vunpack.c.h.b16 %v3723
    %v4014 = vunpack.c.l.b16 %v3724
    %v4015 = vunpack.c.h.b16 %v3724
    %v4016 = vunpack.c.l.b16 %v3725
    %v4017 = vunpack.c.h.b16 %v3725
    %v4018 = vunpack.c.l.b16 %v3726
    %v4019 = vunpack.c.h.b16 %v3726
    %v4020 = vunpack.c.l.b16 %v3727
    %v4021 = vunpack.c.h.b16 %v3727
    %v4022 = vunpack.c.l.b16 %v3728
    %v4023 = vunpack.c.h.b16 %v3728
    %v4024 = vunpack.c.l.b16 %v3729
    %v4025 = vunpack.c.h.b16 %v3729
    %v4026 = vunpack.c.l.b16 %v3730
    %v4027 = vunpack.c.h.b16 %v3730
    %v4028 = vunpack.c.l.b16 %v3731
    %v4029 = vunpack.c.h.b16 %v3731
    %v4030 = vunpack.c.l.b16 %v3732
    %v4031 = vunpack.c.h.b16 %v3732
    %v4032 = vunpack.c.l.b16 %v3733
    %v4033 = vunpack.c.h.b16 %v3733
    %v4034 = vunpack.c.l.b16 %v3734
    %v4035 = vunpack.c.h.b16 %v3734
    %v4036 = vunpack.c.l.b16 %v3735
    %v4037 = vunpack.c.h.b16 %v3735
    %v4038 = vunpack.c.l.b16 %v3736
    %v4039 = vunpack.c.h.b16 %v3736
    %v4040 = vunpack.c.l.b16 %v3737
    %v4041 = vunpack.c.h.b16 %v3737
    %v4042 = vunpack.c.l.b16 %v3738
    %v4043 = vunpack.c.h.b16 %v3738
    %v4044 = vunpack.c.l.b16 %v3739
    %v4045 = vunpack.c.h.b16 %v3739
    %v4046 = vunpack.c.l.b16 %v3740
    %v4047 = vunpack.c.h.b16 %v3740
    %v4048 = vunpack.c.l.b16 %v3741
    %v4049 = vunpack.c.h.b16 %v3741
    %v4050 = vunpack.c.l.b16 %v3742
    %v4051 = vunpack.c.h.b16 %v3742
    %v4052 = vunpack.c.l.b16 %v3743
    %v4053 = vunpack.c.h.b16 %v3743
    %v4054 = vunpack.c.l.b16 %v3744
    %v4055 = vunpack.c.h.b16 %v3744
    %v4056 = vunpack.c.l.b16 %v3745
    %v4057 = vunpack.c.h.b16 %v3745
    %v4058 = vunpack.c.l.b16 %v3746
    %v4059 = vunpack.c.h.b16 %v3746
    %v4060 = vunpack.c.l.b16 %v3747
    %v4061 = vunpack.c.h.b16 %v3747
    %v4062 = vunpack.c.l.b16 %v3748
    %v4063 = vunpack.c.h.b16 %v3748
    %v4064 = vunpack.c.l.b16 %v3749
    %v4065 = vunpack.c.h.b16 %v3749
    %v4066 = vunpack.c.l.b16 %v3750
    %v4067 = vunpack.c.h.b16 %v3750
    %v4068 = vunpack.c.l.b16 %v3751
    %v4069 = vunpack.c.h.b16 %v3751
    %v4070 = vunpack.c.l.b16 %v3752
    %v4071 = vunpack.c.h.b16 %v3752
    %v4072 = vunpack.c.l.b16 %v3753
    %v4073 = vunpack.c.h.b16 %v3753
    %v4074 = vunpack.c.l.b16 %v3754
    %v4075 = vunpack.c.h.b16 %v3754
    %v4076 = vunpack.c.l.b16 %v3755
    %v4077 = vunpack.c.h.b16 %v3755
    %v4078 = vunpack.c.l.b16 %v3756
    %v4079 = vunpack.c.h.b16 %v3756
    %v4080 = vunpack.c.l.b16 %v3757
    %v4081 = vunpack.c.h.b16 %v3757
    %v4082 = vunpack.c.l.b16 %v3758
    %v4083 = vunpack.c.h.b16 %v3758
    %v4084 = vunpack.c.l.b16 %v3759
    %v4085 = vunpack.c.h.b16 %v3759
    %v4086 = vunpack.c.l.b16 %v3760
    %v4087 = vunpack.c.h.b16 %v3760
    %v4088 = vunpack.c.l.b16 %v3761
    %v4089 = vunpack.c.h.b16 %v3761
    %v4090 = vunpack.c.l.b16 %v3762
    %v4091 = vunpack.c.h.b16 %v3762
    %v4092 = vunpack.c.l.b16 %v3763
    %v4093 = vunpack.c.h.b16 %v3763
    %v4094 = vunpack.c.l.b16 %v3764
    %v4095 = vunpack.c.h.b16 %v3764
    %v4096 = vunpack.c.l.b16 %v3765
    %v4097 = vunpack.c.h.b16 %v3765
    %v4098 = vunpack.c.l.b16 %v3766
    %v4099 = vunpack.c.h.b16 %v3766
    %v4100 = vunpack.c.l.b16 %v3767
    %v4101 = vunpack.c.h.b16 %v3767
    %v4102 = vunpack.c.l.b16 %v3768
    %v4103 = vunpack.c.h.b16 %v3768
    %v4104 = vunpack.c.l.b16 %v3769
    %v4105 = vunpack.c.h.b16 %v3769
    %v4106 = vunpack.c.l.b16 %v3770
    %v4107 = vunpack.c.h.b16 %v3770
    %v4108 = vunpack.c.l.b16 %v3771
    %v4109 = vunpack.c.h.b16 %v3771
    %v4110 = vunpack.c.l.b16 %v3772
    %v4111 = vunpack.c.h.b16 %v3772
    %v4112 = vunpack.c.l.b16 %v3773
    %v4113 = vunpack.c.h.b16 %v3773
    %v4114 = vunpack.c.l.b16 %v3774
    %v4115 = vunpack.c.h.b16 %v3774
    %v4116 = vunpack.c.l.b16 %v3775
    %v4117 = vunpack.c.h.b16 %v3775
    %v4118 = vunpack.c.l.b16 %v3776
    %v4119 = vunpack.c.h.b16 %v3776
    %v4120 = vunpack.c.l.b16 %v3777
    %v4121 = vunpack.c.h.b16 %v3777
    %v4122 = vunpack.c.l.b16 %v3778
    %v4123 = vunpack.c.h.b16 %v3778
    %v4124 = vunpack.c.l.b16 %v3779
    %v4125 = vunpack.c.h.b16 %v3779
    %v4126 = vunpack.c.l.b16 %v3780
    %v4127 = vunpack.c.h.b16 %v3780
    %v4128 = vunpack.c.l.b16 %v3781
    %v4129 = vunpack.c.h.b16 %v3781
    %v4130 = vunpack.c.l.b16 %v3782
    %v4131 = vunpack.c.h.b16 %v3782
    %v4132 = vunpack.c.l.b16 %v3783
    %v4133 = vunpack.c.h.b16 %v3783
    %v4134 = vunpack.c.l.b16 %v3784
    %v4135 = vunpack.c.h.b16 %v3784
    %v4136 = vunpack.c.l.b16 %v3785
    %v4137 = vunpack.c.h.b16 %v3785
    %v4138 = vunpack.c.l.b16 %v3786
    %v4139 = vunpack.c.h.b16 %v3786
    %v4140 = vunpack.c.l.b16 %v3787
    %v4141 = vunpack.c.h.b16 %v3787
    %v4142 = vunpack.c.l.b16 %v3788
    %v4143 = vunpack.c.h.b16 %v3788
    %v4144 = vunpack.c.l.b16 %v3789
    %v4145 = vunpack.c.h.b16 %v3789
    %v4146 = vunpack.c.l.b16 %v3790
    %v4147 = vunpack.c.h.b16 %v3790
    %v4148 = vunpack.c.l.b16 %v3791
    %v4149 = vunpack.c.h.b16 %v3791
    %v4150 = vunpack.c.l.b16 %v3792
    %v4151 = vunpack.c.h.b16 %v3792
    %v4152 = vunpack.c.l.b16 %v3793
    %v4153 = vunpack.c.h.b16 %v3793
    %v4154 = vunpack.c.l.b16 %v3794
    %v4155 = vunpack.c.h.b16 %v3794
    %v4156 = vunpack.c.l.b16 %v3795
    %v4157 = vunpack.c.h.b16 %v3795
    %v4158 = vunpack.c.l.b16 %v3796
    %v4159 = vunpack.c.h.b16 %v3796
    %v4160 = vunpack.c.l.b16 %v3797
    %v4161 = vunpack.c.h.b16 %v3797
    %v4162 = vunpack.c.l.b16 %v3798
    %v4163 = vunpack.c.h.b16 %v3798
    %v4164 = vunpack.c.l.b16 %v3799
    %v4165 = vunpack.c.h.b16 %v3799
    %v4166 = vunpack.c.l.b16 %v3800
    %v4167 = vunpack.c.h.b16 %v3800
    %v4168 = vunpack.c.l.b16 %v3801
    %v4169 = vunpack.c.h.b16 %v3801
    %v4170 = vunpack.c.l.b16 %v3802
    %v4171 = vunpack.c.h.b16 %v3802
    %v4172 = vunpack.c.l.b16 %v3803
    %v4173 = vunpack.c.h.b16 %v3803
    %v4174 = vunpack.c.l.b16 %v3804
    %v4175 = vunpack.c.h.b16 %v3804
    %v4176 = vunpack.c.l.b16 %v3805
    %v4177 = vunpack.c.h.b16 %v3805
    %v4178 = vunpack.c.l.b16 %v3806
    %v4179 = vunpack.c.h.b16 %v3806
    %v4180 = vunpack.c.l.b16 %v3807
    %v4181 = vunpack.c.h.b16 %v3807
    %v4182 = vunpack.c.l.b16 %v3808
    %v4183 = vunpack.c.h.b16 %v3808
    %v4184 = vunpack.c.l.b16 %v3809
    %v4185 = vunpack.c.h.b16 %v3809
    %v4186 = vunpack.c.l.b16 %v3810
    %v4187 = vunpack.c.h.b16 %v3810
    %v4188 = vunpack.c.l.b16 %v3811
    %v4189 = vunpack.c.h.b16 %v3811
    %v4190 = vunpack.c.l.b16 %v3812
    %v4191 = vunpack.c.h.b16 %v3812
    %v4192 = vunpack.c.l.b16 %v3813
    %v4193 = vunpack.c.h.b16 %v3813
    %v4194 = vunpack.c.l.b16 %v3814
    %v4195 = vunpack.c.h.b16 %v3814
    %v4196 = vunpack.c.l.b16 %v3815
    %v4197 = vunpack.c.h.b16 %v3815
    %v4198 = vunpack.c.l.b16 %v3816
    %v4199 = vunpack.c.h.b16 %v3816
    %v4200 = vunpack.c.l.b16 %v3817
    %v4201 = vunpack.c.h.b16 %v3817
    %v4202 = vunpack.c.l.b16 %v3818
    %v4203 = vunpack.c.h.b16 %v3818
    %v4204 = vunpack.c.l.b16 %v3819
    %v4205 = vunpack.c.h.b16 %v3819
    %v4206 = vunpack.c.l.b16 %v3820
    %v4207 = vunpack.c.h.b16 %v3820
    %v4208 = vunpack.c.l.b16 %v3821
    %v4209 = vunpack.c.h.b16 %v3821
    %v4210 = vunpack.c.l.b16 %v3822
    %v4211 = vunpack.c.h.b16 %v3822
    %v4212 = vunpack.c.l.b16 %v3823
    %v4213 = vunpack.c.h.b16 %v3823
    %v4214 = vunpack.c.l.b16 %v3824
    %v4215 = vunpack.c.h.b16 %v3824
    %v4216 = vunpack.c.l.b16 %v3825
    %v4217 = vunpack.c.h.b16 %v3825
    %v4218 = vunpack.c.l.b16 %v3826
    %v4219 = vunpack.c.h.b16 %v3826
    %v4220 = vunpack.c.l.b16 %v3827
    %v4221 = vunpack.c.h.b16 %v3827
    %v4222 = vunpack.c.l.b16 %v3828
    %v4223 = vunpack.c.h.b16 %v3828
    %v4224 = vunpack.c.l.b16 %v3829
    %v4225 = vunpack.c.h.b16 %v3829
    %v4226 = vunpack.c.l.b16 %v3830
    %v4227 = vunpack.c.h.b16 %v3830
    %v4228 = vunpack.c.l.b16 %v3831
    %v4229 = vunpack.c.h.b16 %v3831
    %v4230 = vunpack.c.l.b16 %v3832
    %v4231 = vunpack.c.h.b16 %v3832
    %v4232 = vunpack.c.l.b16 %v3833
    %v4233 = vunpack.c.h.b16 %v3833
    %v4234 = vunpack.c.l.b16 %v3834
    %v4235 = vunpack.c.h.b16 %v3834
    %v4236 = vunpack.c.l.b16 %v3835
    %v4237 = vunpack.c.h.b16 %v3835
    %v4238 = vunpack.c.l.b16 %v3836
    %v4239 = vunpack.c.h.b16 %v3836
    %v4240 = vunpack.c.l.b16 %v3837
    %v4241 = vunpack.c.h.b16 %v3837
    %v4242 = vunpack.c.l.b16 %v3838
    %v4243 = vunpack.c.h.b16 %v3838
    %v4244 = vunpack.c.l.b16 %v3839
    %v4245 = vunpack.c.h.b16 %v3839
    %v4246 = vunpack.c.l.b16 %v3840
    %v4247 = vunpack.c.h.b16 %v3840
    %v4248 = vunpack.c.l.b16 %v3841
    %v4249 = vunpack.c.h.b16 %v3841
    %v4250 = vunpack.c.l.b16 %v3842
    %v4251 = vunpack.c.h.b16 %v3842
    %v4252 = vunpack.c.l.b16 %v3843
    %v4253 = vunpack.c.h.b16 %v3843
    %v4254 = vpack.c.b16 %v4002, %v3998
    %v4255 = vpack.c.b16 %v4003, %v3999
    %v4256 = vpack.c.b16 %v4004, %v4000
    %v4257 = vpack.c.b16 %v4005, %v4001
    %v4258 = vpack.c.b16 %v4010, %v4006
    %v4259 = vpack.c.b16 %v4011, %v4007
    %v4260 = vpack.c.b16 %v4012, %v4008
    %v4261 = vpack.c.b16 %v4013, %v4009
    %v4262 = vpack.c.b16 %v4018, %v4014
    %v4263 = vpack.c.b16 %v4019, %v4015
    %v4264 = vpack.c.b16 %v4020, %v4016
    %v4265 = vpack.c.b16 %v4021, %v4017
    %v4266 = vpack.c.b16 %v4026, %v4022
    %v4267 = vpack.c.b16 %v4027, %v4023
    %v4268 = vpack.c.b16 %v4028, %v4024
    %v4269 = vpack.c.b16 %v4029, %v4025
    %v4270 = vpack.c.b16 %v4034, %v4030
    %v4271 = vpack.c.b16 %v4035, %v4031
    %v4272 = vpack.c.b16 %v4036, %v4032
    %v4273 = vpack.c.b16 %v4037, %v4033
    %v4274 = vpack.c.b16 %v4042, %v4038
    %v4275 = vpack.c.b16 %v4043, %v4039
    %v4276 = vpack.c.b16 %v4044, %v4040
    %v4277 = vpack.c.b16 %v4045, %v4041
    %v4278 = vpack.c.b16 %v4050, %v4046
    %v4279 = vpack.c.b16 %v4051, %v4047
    %v4280 = vpack.c.b16 %v4052, %v4048
    %v4281 = vpack.c.b16 %v4053, %v4049
    %v4282 = vpack.c.b16 %v4058, %v4054
    %v4283 = vpack.c.b16 %v4059, %v4055
    %v4284 = vpack.c.b16 %v4060, %v4056
    %v4285 = vpack.c.b16 %v4061, %v4057
    %v4286 = vpack.c.b16 %v4066, %v4062
    %v4287 = vpack.c.b16 %v4067, %v4063
    %v4288 = vpack.c.b16 %v4068, %v4064
    %v4289 = vpack.c.b16 %v4069, %v4065
    %v4290 = vpack.c.b16 %v4074, %v4070
    %v4291 = vpack.c.b16 %v4075, %v4071
    %v4292 = vpack.c.b16 %v4076, %v4072
    %v4293 = vpack.c.b16 %v4077, %v4073
    %v4294 = vpack.c.b16 %v4082, %v4078
    %v4295 = vpack.c.b16 %v4083, %v4079
    %v4296 = vpack.c.b16 %v4084, %v4080
    %v4297 = vpack.c.b16 %v4085, %v4081
    %v4298 = vpack.c.b16 %v4090, %v4086
    %v4299 = vpack.c.b16 %v4091, %v4087
    %v4300 = vpack.c.b16 %v4092, %v4088
    %v4301 = vpack.c.b16 %v4093, %v4089
    %v4302 = vpack.c.b16 %v4098, %v4094
    %v4303 = vpack.c.b16 %v4099, %v4095
    %v4304 = vpack.c.b16 %v4100, %v4096
    %v4305 = vpack.c.b16 %v4101, %v4097
    %v4306 = vpack.c.b16 %v4106, %v4102
    %v4307 = vpack.c.b16 %v4107, %v4103
    %v4308 = vpack.c.b16 %v4108, %v4104
    %v4309 = vpack.c.b16 %v4109, %v4105
    %v4310 = vpack.c.b16 %v4114, %v4110
    %v4311 = vpack.c.b16 %v4115, %v4111
    %v4312 = vpack.c.b16 %v4116, %v4112
    %v4313 = vpack.c.b16 %v4117, %v4113
    %v4314 = vpack.c.b16 %v4122, %v4118
    %v4315 = vpack.c.b16 %v4123, %v4119
    %v4316 = vpack.c.b16 %v4124, %v4120
    %v4317 = vpack.c.b16 %v4125, %v4121
    %v4318 = vpack.c.b16 %v4130, %v4126
    %v4319 = vpack.c.b16 %v4131, %v4127
    %v4320 = vpack.c.b16 %v4132, %v4128
    %v4321 = vpack.c.b16 %v4133, %v4129
    %v4322 = vpack.c.b16 %v4138, %v4134
    %v4323 = vpack.c.b16 %v4139, %v4135
    %v4324 = vpack.c.b16 %v4140, %v4136
    %v4325 = vpack.c.b16 %v4141, %v4137
    %v4326 = vpack.c.b16 %v4146, %v4142
    %v4327 = vpack.c.b16 %v4147, %v4143
    %v4328 = vpack.c.b16 %v4148, %v4144
    %v4329 = vpack.c.b16 %v4149, %v4145
    %v4330 = vpack.c.b16 %v4154, %v4150
    %v4331 = vpack.c.b16 %v4155, %v4151
    %v4332 = vpack.c.b16 %v4156, %v4152
    %v4333 = vpack.c.b16 %v4157, %v4153
    %v4334 = vpack.c.b16 %v4162, %v4158
    %v4335 = vpack.c.b16 %v4163, %v4159
    %v4336 = vpack.c.b16 %v4164, %v4160
    %v4337 = vpack.c.b16 %v4165, %v4161
    %v4338 = vpack.c.b16 %v4170, %v4166
    %v4339 = vpack.c.b16 %v4171, %v4167
    %v4340 = vpack.c.b16 %v4172, %v4168
    %v4341 = vpack.c.b16 %v4173, %v4169
    %v4342 = vpack.c.b16 %v4178, %v4174
    %v4343 = vpack.c.b16 %v4179, %v4175
    %v4344 = vpack.c.b16 %v4180, %v4176
    %v4345 = vpack.c.b16 %v4181, %v4177
    %v4346 = vpack.c.b16 %v4186, %v4182
    %v4347 = vpack.c.b16 %v4187, %v4183
    %v4348 = vpack.c.b16 %v4188, %v4184
    %v4349 = vpack.c.b16 %v4189, %v4185
    %v4350 = vpack.c.b16 %v4194, %v4190
    %v4351 = vpack.c.b16 %v4195, %v4191
    %v4352 = vpack.c.b16 %v4196, %v4192
    %v4353 = vpack.c.b16 %v4197, %v4193
    %v4354 = vpack.c.b16 %v4202, %v4198
    %v4355 = vpack.c.b16 %v4203, %v4199
    %v4356 = vpack.c.b16 %v4204, %v4200
    %v4357 = vpack.c.b16 %v4205, %v4201
    %v4358 = vpack.c.b16 %v4210, %v4206
    %v4359 = vpack.c.b16 %v4211, %v4207
    %v4360 = vpack.c.b16 %v4212, %v4208
    %v4361 = vpack.c.b16 %v4213, %v4209
    %v4362 = vpack.c.b16 %v4218, %v4214
    %v4363 = vpack.c.b16 %v4219, %v4215
    %v4364 = vpack.c.b16 %v4220, %v4216
    %v4365 = vpack.c.b16 %v4221, %v4217
    %v4366 = vpack.c.b16 %v4226, %v4222
    %v4367 = vpack.c.b16 %v4227, %v4223
    %v4368 = vpack.c.b16 %v4228, %v4224
    %v4369 = vpack.c.b16 %v4229, %v4225
    %v4370 = vpack.c.b16 %v4234, %v4230
    %v4371 = vpack.c.b16 %v4235, %v4231
    %v4372 = vpack.c.b16 %v4236, %v4232
    %v4373 = vpack.c.b16 %v4237, %v4233
    %v4374 = vpack.c.b16 %v4242, %v4238
    %v4375 = vpack.c.b16 %v4243, %v4239
    %v4376 = vpack.c.b16 %v4244, %v4240
    %v4377 = vpack.c.b16 %v4245, %v4241
    %v4378 = vpack.c.b16 %v4250, %v4246
    %v4379 = vpack.c.b16 %v4251, %v4247
    %v4380 = vpack.c.b16 %v4252, %v4248
    %v4381 = vpack.c.b16 %v4253, %v4249
    %4510 = vmatprep.subr.bf16.mxu0 %v4255
    %4511 = vmatpush1.bf16.msra.mxu0 %v4254
    %4512 = vmatprep.subr.bf16.mxu0 %v4259
    %4513 = vmatpush1.bf16.msra.mxu0 %v4258
    %4514 = vmatprep.subr.bf16.mxu0 %v4263
    %4515 = vmatpush1.bf16.msra.mxu0 %v4262
    %4516 = vmatprep.subr.bf16.mxu0 %v4267
    %4517 = vmatpush1.bf16.msra.mxu0 %v4266
    %4518 = vmatprep.subr.bf16.mxu0 %v4271
    %4519 = vmatpush1.bf16.msra.mxu0 %v4270
    %4520 = vmatprep.subr.bf16.mxu0 %v4275
    %4521 = vmatpush1.bf16.msra.mxu0 %v4274
    %4522 = vmatprep.subr.bf16.mxu0 %v4279
    %4523 = vmatpush1.bf16.msra.mxu0 %v4278
    %4524 = vmatprep.subr.bf16.mxu0 %v4283
    %4525 = vmatpush1.bf16.msra.mxu0 %v4282
    %4526 = vmatprep.subr.bf16.mxu0 %v4287
    %4527 = vmatpush1.bf16.msra.mxu0 %v4286
    %4528 = vmatprep.subr.bf16.mxu0 %v4291
    %4529 = vmatpush1.bf16.msra.mxu0 %v4290
    %4530 = vmatprep.subr.bf16.mxu0 %v4295
    %4531 = vmatpush1.bf16.msra.mxu0 %v4294
    %4532 = vmatprep.subr.bf16.mxu0 %v4299
    %4533 = vmatpush1.bf16.msra.mxu0 %v4298
    %4534 = vmatprep.subr.bf16.mxu0 %v4303
    %4535 = vmatpush1.bf16.msra.mxu0 %v4302
    %4536 = vmatprep.subr.bf16.mxu0 %v4307
    %4537 = vmatpush1.bf16.msra.mxu0 %v4306
    %4538 = vmatprep.subr.bf16.mxu0 %v4311
    %4539 = vmatpush1.bf16.msra.mxu0 %v4310
    %4540 = vmatprep.subr.bf16.mxu0 %v4315
    %4541 = vmatpush1.bf16.msra.mxu0 %v4314
    %4542 = vmatprep.mubr.bf16.mxu0 %v3845
    %4543 = vmatmul.mubr.bf16.gmra.mrb[0].mxu0 %v3844
    %v4544 = vpop.f32.mrb[0].mxu0
    %v4545 = vadd.f32 %v3853, %v4544
    %v4546 = vpop.f32.mrb[0].mxu0
    %v4547 = vadd.f32 %v3857, %v4546
    %v4548 = vpop.f32.mrb[0].mxu0
    %v4549 = vpop.f32.mrb[0].mxu0
    %4550 = vdwg.mxu0
    %4551 = vmatprep.subr.bf16.mxu0 %v4319
    %4552 = vmatpush1.bf16.msra.mxu0 %v4318
    %4553 = vmatprep.subr.bf16.mxu0 %v4323
    %4554 = vmatpush1.bf16.msra.mxu0 %v4322
    %4555 = vmatprep.subr.bf16.mxu0 %v4327
    %4556 = vmatpush1.bf16.msra.mxu0 %v4326
    %4557 = vmatprep.subr.bf16.mxu0 %v4331
    %4558 = vmatpush1.bf16.msra.mxu0 %v4330
    %4559 = vmatprep.subr.bf16.mxu0 %v4335
    %4560 = vmatpush1.bf16.msra.mxu0 %v4334
    %4561 = vmatprep.subr.bf16.mxu0 %v4339
    %4562 = vmatpush1.bf16.msra.mxu0 %v4338
    %4563 = vmatprep.subr.bf16.mxu0 %v4343
    %4564 = vmatpush1.bf16.msra.mxu0 %v4342
    %4565 = vmatprep.subr.bf16.mxu0 %v4347
    %4566 = vmatpush1.bf16.msra.mxu0 %v4346
    %4567 = vmatprep.subr.bf16.mxu0 %v4351
    %4568 = vmatpush1.bf16.msra.mxu0 %v4350
    %4569 = vmatprep.subr.bf16.mxu0 %v4355
    %4570 = vmatpush1.bf16.msra.mxu0 %v4354
    %4571 = vmatprep.subr.bf16.mxu0 %v4359
    %4572 = vmatpush1.bf16.msra.mxu0 %v4358
    %4573 = vmatprep.subr.bf16.mxu0 %v4363
    %4574 = vmatpush1.bf16.msra.mxu0 %v4362
    %4575 = vmatprep.subr.bf16.mxu0 %v4367
    %4576 = vmatpush1.bf16.msra.mxu0 %v4366
    %4577 = vmatprep.subr.bf16.mxu0 %v4371
    %4578 = vmatpush1.bf16.msra.mxu0 %v4370
    %4579 = vmatprep.subr.bf16.mxu0 %v4375
    %4580 = vmatpush1.bf16.msra.mxu0 %v4374
    %4581 = vmatprep.subr.bf16.mxu0 %v4379
    %4582 = vmatpush1.bf16.msra.mxu0 %v4378
    %4583 = vmatprep.mubr.bf16.mxu0 %v3847
    %4584 = vmatmul.mubr.bf16.gmra.mrb[0].mxu0 %v3846
    %v4585 = vpop.f32.mrb[0].mxu0
    %v4586 = vadd.f32 %v4545, %v4585
    %v4587 = vpop.f32.mrb[0].mxu0
    %v4588 = vadd.f32 %v4547, %v4587
    %v4589 = vpop.f32.mrb[0].mxu0
    %v4590 = vpop.f32.mrb[0].mxu0
    %4591 = vdwg.mxu0
    %4592 = vmatprep.subr.bf16.mxu0 %v4257
    %4593 = vmatpush1.bf16.msra.mxu0 %v4256
    %4594 = vmatprep.subr.bf16.mxu0 %v4261
    %4595 = vmatpush1.bf16.msra.mxu0 %v4260
    %4596 = vmatprep.subr.bf16.mxu0 %v4265
    %4597 = vmatpush1.bf16.msra.mxu0 %v4264
    %4598 = vmatprep.subr.bf16.mxu0 %v4269
    %4599 = vmatpush1.bf16.msra.mxu0 %v4268
    %4600 = vmatprep.subr.bf16.mxu0 %v4273
    %4601 = vmatpush1.bf16.msra.mxu0 %v4272
    %4602 = vmatprep.subr.bf16.mxu0 %v4277
    %4603 = vmatpush1.bf16.msra.mxu0 %v4276
    %4604 = vmatprep.subr.bf16.mxu0 %v4281
    %4605 = vmatpush1.bf16.msra.mxu0 %v4280
    %4606 = vmatprep.subr.bf16.mxu0 %v4285
    %4607 = vmatpush1.bf16.msra.mxu0 %v4284
    %4608 = vmatprep.subr.bf16.mxu0 %v4289
    %4609 = vmatpush1.bf16.msra.mxu0 %v4288
    %4610 = vmatprep.subr.bf16.mxu0 %v4293
    %4611 = vmatpush1.bf16.msra.mxu0 %v4292
    %4612 = vmatprep.subr.bf16.mxu0 %v4297
    %4613 = vmatpush1.bf16.msra.mxu0 %v4296
    %4614 = vmatprep.subr.bf16.mxu0 %v4301
    %4615 = vmatpush1.bf16.msra.mxu0 %v4300
    %4616 = vmatprep.subr.bf16.mxu0 %v4305
    %4617 = vmatpush1.bf16.msra.mxu0 %v4304
    %4618 = vmatprep.subr.bf16.mxu0 %v4309
    %4619 = vmatpush1.bf16.msra.mxu0 %v4308
    %4620 = vmatprep.subr.bf16.mxu0 %v4313
    %4621 = vmatpush1.bf16.msra.mxu0 %v4312
    %4622 = vmatprep.subr.bf16.mxu0 %v4317
    %4623 = vmatpush1.bf16.msra.mxu0 %v4316
    %4624 = vmatprep.mubr.bf16.mxu0 %v3845
    %4625 = vmatmul.mubr.bf16.gmra.mrb[0].mxu0 %v3844
    %v4626 = vpop.f32.mrb[0].mxu0
    %v4627 = vadd.f32 %v3861, %v4626
    %v4628 = vpop.f32.mrb[0].mxu0
    %v4629 = vadd.f32 %v3865, %v4628
    %v4630 = vpop.f32.mrb[0].mxu0
    %v4631 = vpop.f32.mrb[0].mxu0
    %4632 = vdwg.mxu0
    %4633 = vmatprep.subr.bf16.mxu0 %v4321
    %4634 = vmatpush1.bf16.msra.mxu0 %v4320
    %4635 = vmatprep.subr.bf16.mxu0 %v4325
    %4636 = vmatpush1.bf16.msra.mxu0 %v4324
    %4637 = vmatprep.subr.bf16.mxu0 %v4329
    %4638 = vmatpush1.bf16.msra.mxu0 %v4328
    %4639 = vmatprep.subr.bf16.mxu0 %v4333
    %4640 = vmatpush1.bf16.msra.mxu0 %v4332
    %4641 = vmatprep.subr.bf16.mxu0 %v4337
    %4642 = vmatpush1.bf16.msra.mxu0 %v4336
    %4643 = vmatprep.subr.bf16.mxu0 %v4341
    %4644 = vmatpush1.bf16.msra.mxu0 %v4340
    %4645 = vmatprep.subr.bf16.mxu0 %v4345
    %4646 = vmatpush1.bf16.msra.mxu0 %v4344
    %4647 = vmatprep.subr.bf16.mxu0 %v4349
    %4648 = vmatpush1.bf16.msra.mxu0 %v4348
    %4649 = vmatprep.subr.bf16.mxu0 %v4353
    %4650 = vmatpush1.bf16.msra.mxu0 %v4352
    %4651 = vmatprep.subr.bf16.mxu0 %v4357
    %4652 = vmatpush1.bf16.msra.mxu0 %v4356
    %4653 = vmatprep.subr.bf16.mxu0 %v4361
    %4654 = vmatpush1.bf16.msra.mxu0 %v4360
    %4655 = vmatprep.subr.bf16.mxu0 %v4365
    %4656 = vmatpush1.bf16.msra.mxu0 %v4364
    %4657 = vmatprep.subr.bf16.mxu0 %v4369
    %4658 = vmatpush1.bf16.msra.mxu0 %v4368
    %4659 = vmatprep.subr.bf16.mxu0 %v4373
    %4660 = vmatpush1.bf16.msra.mxu0 %v4372
    %4661 = vmatprep.subr.bf16.mxu0 %v4377
    %4662 = vmatpush1.bf16.msra.mxu0 %v4376
    %4663 = vmatprep.subr.bf16.mxu0 %v4381
    %4664 = vmatpush1.bf16.msra.mxu0 %v4380
    %4665 = vmatprep.mubr.bf16.mxu0 %v3847
    %4666 = vmatmul.mubr.bf16.gmra.mrb[0].mxu0 %v3846
    %v4667 = vpop.f32.mrb[0].mxu0
    %v4668 = vadd.f32 %v4627, %v4667
    %v4669 = vpop.f32.mrb[0].mxu0
    %v4670 = vadd.f32 %v4629, %v4669
    %v4671 = vpop.f32.mrb[0].mxu0
    %v4672 = vpop.f32.mrb[0].mxu0
    %4673 = vdwg.mxu0
    %v4674 = vmax.f32 %v4586, 0.0
    %v4675 = vmax.f32 %v4588, 0.0
    %v4676 = vmax.f32 %v4668, 0.0
    %v4677 = vmax.f32 %v4670, 0.0
    %v4678 = vld [vmem:[%s17] sm:$0xf]
    %v4679 = vld [vmem:[%s17 + $0x4] sm:$0xf]
    %v4680 = vld [vmem:[%s17 + $0x8] sm:$0xf]
    %v4681 = vld [vmem:[%s17 + $0xc] sm:$0xf]
    %v4682 = vld [vmem:[%s17 + $0x10] sm:$0xf]
    %v4683 = vld [vmem:[%s17 + $0x14] sm:$0xf]
    %v4684 = vld [vmem:[%s17 + $0x18] sm:$0xf]
    %v4685 = vld [vmem:[%s17 + $0x1c] sm:$0xf]
    %v4686 = vld [vmem:[%s17 + $0x20] sm:$0xf]
    %v4687 = vld [vmem:[%s17 + $0x24] sm:$0xf]
    %v4688 = vld [vmem:[%s17 + $0x28] sm:$0xf]
    %v4689 = vld [vmem:[%s17 + $0x2c] sm:$0xf]
    %v4690 = vld [vmem:[%s17 + $0x30] sm:$0xf]
    %v4691 = vld [vmem:[%s17 + $0x34] sm:$0xf]
    %v4692 = vld [vmem:[%s17 + $0x38] sm:$0xf]
    %v4693 = vld [vmem:[%s17 + $0x3c] sm:$0xf]
    %v4694 = vld [vmem:[%s17 + $0x40] sm:$0xf]
    %v4695 = vld [vmem:[%s17 + $0x44] sm:$0xf]
    %v4696 = vld [vmem:[%s17 + $0x48] sm:$0xf]
    %v4697 = vld [vmem:[%s17 + $0x4c] sm:$0xf]
    %v4698 = vld [vmem:[%s17 + $0x50] sm:$0xf]
    %v4699 = vld [vmem:[%s17 + $0x54] sm:$0xf]
    %v4700 = vld [vmem:[%s17 + $0x58] sm:$0xf]
    %v4701 = vld [vmem:[%s17 + $0x5c] sm:$0xf]
    %v4702 = vld [vmem:[%s17 + $0x60] sm:$0xf]
    %v4703 = vld [vmem:[%s17 + $0x64] sm:$0xf]
    %v4704 = vld [vmem:[%s17 + $0x68] sm:$0xf]
    %v4705 = vld [vmem:[%s17 + $0x6c] sm:$0xf]
    %v4706 = vld [vmem:[%s17 + $0x70] sm:$0xf]
    %v4707 = vld [vmem:[%s17 + $0x74] sm:$0xf]
    %v4708 = vld [vmem:[%s17 + $0x78] sm:$0xf]
    %v4709 = vld [vmem:[%s17 + $0x7c] sm:$0xf]
    %v4710 = vld [vmem:[%s17 + $0x80] sm:$0xf]
    %v4711 = vld [vmem:[%s17 + $0x84] sm:$0xf]
    %v4712 = vld [vmem:[%s17 + $0x88] sm:$0xf]
    %v4713 = vld [vmem:[%s17 + $0x8c] sm:$0xf]
    %v4714 = vld [vmem:[%s17 + $0x90] sm:$0xf]
    %v4715 = vld [vmem:[%s17 + $0x94] sm:$0xf]
    %v4716 = vld [vmem:[%s17 + $0x98] sm:$0xf]
    %v4717 = vld [vmem:[%s17 + $0x9c] sm:$0xf]
    %v4718 = vld [vmem:[%s17 + $0xa0] sm:$0xf]
    %v4719 = vld [vmem:[%s17 + $0xa4] sm:$0xf]
    %v4720 = vld [vmem:[%s17 + $0xa8] sm:$0xf]
    %v4721 = vld [vmem:[%s17 + $0xac] sm:$0xf]
    %v4722 = vld [vmem:[%s17 + $0xb0] sm:$0xf]
    %v4723 = vld [vmem:[%s17 + $0xb4] sm:$0xf]
    %v4724 = vld [vmem:[%s17 + $0xb8] sm:$0xf]
    %v4725 = vld [vmem:[%s17 + $0xbc] sm:$0xf]
    %v4726 = vld [vmem:[%s17 + $0xc0] sm:$0xf]
    %v4727 = vld [vmem:[%s17 + $0xc4] sm:$0xf]
    %v4728 = vld [vmem:[%s17 + $0xc8] sm:$0xf]
    %v4729 = vld [vmem:[%s17 + $0xcc] sm:$0xf]
    %v4730 = vld [vmem:[%s17 + $0xd0] sm:$0xf]
    %v4731 = vld [vmem:[%s17 + $0xd4] sm:$0xf]
    %v4732 = vld [vmem:[%s17 + $0xd8] sm:$0xf]
    %v4733 = vld [vmem:[%s17 + $0xdc] sm:$0xf]
    %v4734 = vld [vmem:[%s17 + $0xe0] sm:$0xf]
    %v4735 = vld [vmem:[%s17 + $0xe4] sm:$0xf]
    %v4736 = vld [vmem:[%s17 + $0xe8] sm:$0xf]
    %v4737 = vld [vmem:[%s17 + $0xec] sm:$0xf]
    %v4738 = vld [vmem:[%s17 + $0xf0] sm:$0xf]
    %v4739 = vld [vmem:[%s17 + $0xf4] sm:$0xf]
    %v4740 = vld [vmem:[%s17 + $0xf8] sm:$0xf]
    %v4741 = vld [vmem:[%s17 + $0xfc] sm:$0xf]
    %v4742 = vpack.c.bf16 %v4674, %v4674
    %v4743 = vpack.c.bf16 %v4675, %v4675
    %v4744 = vpack.c.bf16 %v4676, %v4676
    %v4745 = vpack.c.bf16 %v4677, %v4677
    %v4746 = vld [vmem:[#allocation2] sm:$0x1]
    %v4748 = vlaneseq
    %v4749 = vshrl.u32 %v4748, 7
    %v4750 = vsub.s32 0, %v4749
    %v4751 = vrot.slane %v4746, %v4750
    %v4817 = vunpack.c.l.b16 %v4678
    %v4818 = vunpack.c.l.b16 %v4679
    %v4819 = vunpack.c.l.b16 %v4680
    %v4820 = vunpack.c.l.b16 %v4681
    %v4821 = vunpack.c.l.b16 %v4682
    %v4822 = vunpack.c.l.b16 %v4683
    %v4823 = vunpack.c.l.b16 %v4684
    %v4824 = vunpack.c.l.b16 %v4685
    %v4825 = vunpack.c.l.b16 %v4686
    %v4826 = vunpack.c.l.b16 %v4687
    %v4827 = vunpack.c.l.b16 %v4688
    %v4828 = vunpack.c.l.b16 %v4689
    %v4829 = vunpack.c.l.b16 %v4690
    %v4830 = vunpack.c.l.b16 %v4691
    %v4831 = vunpack.c.l.b16 %v4692
    %v4832 = vunpack.c.l.b16 %v4693
    %v4833 = vunpack.c.l.b16 %v4694
    %v4834 = vunpack.c.l.b16 %v4695
    %v4835 = vunpack.c.l.b16 %v4696
    %v4836 = vunpack.c.l.b16 %v4697
    %v4837 = vunpack.c.l.b16 %v4698
    %v4838 = vunpack.c.l.b16 %v4699
    %v4839 = vunpack.c.l.b16 %v4700
    %v4840 = vunpack.c.l.b16 %v4701
    %v4841 = vunpack.c.l.b16 %v4702
    %v4842 = vunpack.c.l.b16 %v4703
    %v4843 = vunpack.c.l.b16 %v4704
    %v4844 = vunpack.c.l.b16 %v4705
    %v4845 = vunpack.c.l.b16 %v4706
    %v4846 = vunpack.c.l.b16 %v4707
    %v4847 = vunpack.c.l.b16 %v4708
    %v4848 = vunpack.c.l.b16 %v4709
    %v4849 = vunpack.c.l.b16 %v4710
    %v4850 = vunpack.c.l.b16 %v4711
    %v4851 = vunpack.c.l.b16 %v4712
    %v4852 = vunpack.c.l.b16 %v4713
    %v4853 = vunpack.c.l.b16 %v4714
    %v4854 = vunpack.c.l.b16 %v4715
    %v4855 = vunpack.c.l.b16 %v4716
    %v4856 = vunpack.c.l.b16 %v4717
    %v4857 = vunpack.c.l.b16 %v4718
    %v4858 = vunpack.c.l.b16 %v4719
    %v4859 = vunpack.c.l.b16 %v4720
    %v4860 = vunpack.c.l.b16 %v4721
    %v4861 = vunpack.c.l.b16 %v4722
    %v4862 = vunpack.c.l.b16 %v4723
    %v4863 = vunpack.c.l.b16 %v4724
    %v4864 = vunpack.c.l.b16 %v4725
    %v4865 = vunpack.c.l.b16 %v4726
    %v4866 = vunpack.c.l.b16 %v4727
    %v4867 = vunpack.c.l.b16 %v4728
    %v4868 = vunpack.c.l.b16 %v4729
    %v4869 = vunpack.c.l.b16 %v4730
    %v4870 = vunpack.c.l.b16 %v4731
    %v4871 = vunpack.c.l.b16 %v4732
    %v4872 = vunpack.c.l.b16 %v4733
    %v4873 = vunpack.c.l.b16 %v4734
    %v4874 = vunpack.c.l.b16 %v4735
    %v4875 = vunpack.c.l.b16 %v4736
    %v4876 = vunpack.c.l.b16 %v4737
    %v4877 = vunpack.c.l.b16 %v4738
    %v4878 = vunpack.c.l.b16 %v4739
    %v4879 = vunpack.c.l.b16 %v4740
    %v4880 = vunpack.c.l.b16 %v4741
    %v4881 = vpack.c.b16 %v4818, %v4817
    %v4882 = vpack.c.b16 %v4820, %v4819
    %v4883 = vpack.c.b16 %v4822, %v4821
    %v4884 = vpack.c.b16 %v4824, %v4823
    %v4885 = vpack.c.b16 %v4826, %v4825
    %v4886 = vpack.c.b16 %v4828, %v4827
    %v4887 = vpack.c.b16 %v4830, %v4829
    %v4888 = vpack.c.b16 %v4832, %v4831
    %v4889 = vpack.c.b16 %v4834, %v4833
    %v4890 = vpack.c.b16 %v4836, %v4835
    %v4891 = vpack.c.b16 %v4838, %v4837
    %v4892 = vpack.c.b16 %v4840, %v4839
    %v4893 = vpack.c.b16 %v4842, %v4841
    %v4894 = vpack.c.b16 %v4844, %v4843
    %v4895 = vpack.c.b16 %v4846, %v4845
    %v4896 = vpack.c.b16 %v4848, %v4847
    %v4897 = vpack.c.b16 %v4850, %v4849
    %v4898 = vpack.c.b16 %v4852, %v4851
    %v4899 = vpack.c.b16 %v4854, %v4853
    %v4900 = vpack.c.b16 %v4856, %v4855
    %v4901 = vpack.c.b16 %v4858, %v4857
    %v4902 = vpack.c.b16 %v4860, %v4859
    %v4903 = vpack.c.b16 %v4862, %v4861
    %v4904 = vpack.c.b16 %v4864, %v4863
    %v4905 = vpack.c.b16 %v4866, %v4865
    %v4906 = vpack.c.b16 %v4868, %v4867
    %v4907 = vpack.c.b16 %v4870, %v4869
    %v4908 = vpack.c.b16 %v4872, %v4871
    %v4909 = vpack.c.b16 %v4874, %v4873
    %v4910 = vpack.c.b16 %v4876, %v4875
    %v4911 = vpack.c.b16 %v4878, %v4877
    %v4912 = vpack.c.b16 %v4880, %v4879
    %4945 = vmatprep.subr.bf16.mxu0 0
    %4946 = vmatpush1.bf16.msra.mxu0 %v4881
    %4947 = vmatprep.subr.bf16.mxu0 0
    %4948 = vmatpush1.bf16.msra.mxu0 %v4882
    %4949 = vmatprep.subr.bf16.mxu0 0
    %4950 = vmatpush1.bf16.msra.mxu0 %v4883
    %4951 = vmatprep.subr.bf16.mxu0 0
    %4952 = vmatpush1.bf16.msra.mxu0 %v4884
    %4953 = vmatprep.subr.bf16.mxu0 0
    %4954 = vmatpush1.bf16.msra.mxu0 %v4885
    %4955 = vmatprep.subr.bf16.mxu0 0
    %4956 = vmatpush1.bf16.msra.mxu0 %v4886
    %4957 = vmatprep.subr.bf16.mxu0 0
    %4958 = vmatpush1.bf16.msra.mxu0 %v4887
    %4959 = vmatprep.subr.bf16.mxu0 0
    %4960 = vmatpush1.bf16.msra.mxu0 %v4888
    %4961 = vmatprep.subr.bf16.mxu0 0
    %4962 = vmatpush1.bf16.msra.mxu0 %v4889
    %4963 = vmatprep.subr.bf16.mxu0 0
    %4964 = vmatpush1.bf16.msra.mxu0 %v4890
    %4965 = vmatprep.subr.bf16.mxu0 0
    %4966 = vmatpush1.bf16.msra.mxu0 %v4891
    %4967 = vmatprep.subr.bf16.mxu0 0
    %4968 = vmatpush1.bf16.msra.mxu0 %v4892
    %4969 = vmatprep.subr.bf16.mxu0 0
    %4970 = vmatpush1.bf16.msra.mxu0 %v4893
    %4971 = vmatprep.subr.bf16.mxu0 0
    %4972 = vmatpush1.bf16.msra.mxu0 %v4894
    %4973 = vmatprep.subr.bf16.mxu0 0
    %4974 = vmatpush1.bf16.msra.mxu0 %v4895
    %4975 = vmatprep.subr.bf16.mxu0 0
    %4976 = vmatpush1.bf16.msra.mxu0 %v4896
    %4977 = vmatprep.mubr.bf16.mxu0 %v4743
    %4978 = vmatmul.mubr.bf16.gmra.mrb[0].mxu0 %v4742
    %v4979 = vpop.f32.mrb[0].mxu0
    %v4980 = vadd.f32 %v4751, %v4979
    %v4981 = vpop.f32.mrb[0].mxu0
    %v4982 = vpop.f32.mrb[0].mxu0
    %v4983 = vpop.f32.mrb[0].mxu0
    %4984 = vdwg.mxu0
    %4985 = vmatprep.subr.bf16.mxu0 0
    %4986 = vmatpush1.bf16.msra.mxu0 %v4897
    %4987 = vmatprep.subr.bf16.mxu0 0
    %4988 = vmatpush1.bf16.msra.mxu0 %v4898
    %4989 = vmatprep.subr.bf16.mxu0 0
    %4990 = vmatpush1.bf16.msra.mxu0 %v4899
    %4991 = vmatprep.subr.bf16.mxu0 0
    %4992 = vmatpush1.bf16.msra.mxu0 %v4900
    %4993 = vmatprep.subr.bf16.mxu0 0
    %4994 = vmatpush1.bf16.msra.mxu0 %v4901
    %4995 = vmatprep.subr.bf16.mxu0 0
    %4996 = vmatpush1.bf16.msra.mxu0 %v4902
    %4997 = vmatprep.subr.bf16.mxu0 0
    %4998 = vmatpush1.bf16.msra.mxu0 %v4903
    %4999 = vmatprep.subr.bf16.mxu0 0
    %5000 = vmatpush1.bf16.msra.mxu0 %v4904
    %5001 = vmatprep.subr.bf16.mxu0 0
    %5002 = vmatpush1.bf16.msra.mxu0 %v4905
    %5003 = vmatprep.subr.bf16.mxu0 0
    %5004 = vmatpush1.bf16.msra.mxu0 %v4906
    %5005 = vmatprep.subr.bf16.mxu0 0
    %5006 = vmatpush1.bf16.msra.mxu0 %v4907
    %5007 = vmatprep.subr.bf16.mxu0 0
    %5008 = vmatpush1.bf16.msra.mxu0 %v4908
    %5009 = vmatprep.subr.bf16.mxu0 0
    %5010 = vmatpush1.bf16.msra.mxu0 %v4909
    %5011 = vmatprep.subr.bf16.mxu0 0
    %5012 = vmatpush1.bf16.msra.mxu0 %v4910
    %5013 = vmatprep.subr.bf16.mxu0 0
    %5014 = vmatpush1.bf16.msra.mxu0 %v4911
    %5015 = vmatprep.subr.bf16.mxu0 0
    %5016 = vmatpush1.bf16.msra.mxu0 %v4912
    %5017 = vmatprep.mubr.bf16.mxu0 %v4745
    %5018 = vmatmul.mubr.bf16.gmra.mrb[0].mxu0 %v4744
    %v5019 = vpop.f32.mrb[0].mxu0
    %v5020 = vadd.f32 %v4980, %v5019
    %v5021 = vpop.f32.mrb[0].mxu0
    %v5022 = vpop.f32.mrb[0].mxu0
    %v5023 = vpop.f32.mrb[0].mxu0
    %5024 = vdwg.mxu0
    %vm5025 = vcmask 7168
    %5026 = vst.msk [vmem:[%s19] sm:$0xff] %vm5025, %v5020
    // Predicated region
    $region102: #{tpu_custom_call.1} parent=1 // pred_check
      _
    $region103: #{tpu_custom_call.1} parent=1 // pred_check_branch
      %5028 = sbr.rel (0) target = $region105
    $region104: #{tpu_custom_call.1} parent=1 // pred_region
      _
    $region105: #{tpu_custom_call.1} parent=1 // pred_fallthru
      _
    // Predicated region
    $region106: #{tpu_custom_call.1} parent=1 // pred_check
      _
    $region107: #{tpu_custom_call.1} parent=1 // pred_check_branch
      %5030 = sbr.rel (0) target = $region109
    $region108: #{tpu_custom_call.1} parent=1 // pred_region
      _
    $region109: #{tpu_custom_call.1} parent=1 // pred_fallthru
      _
    %5031 = vsyncpa [#allocation4], 1
    %5032 = vsyncpa [#allocation6], 1
    %5033 = vsyncpa [#allocation9], 1
    %5034 = vsyncpa [#allocation12], 1

</llo_original>
